<compile_context>
chip_gen: v7x
topology: tpu7x:2x2x1
jax: 0.10.0
libtpu: 0.0.40
codegen_flags: <defaults>
</compile_context>

<pallas_src>
import jax
import jax.numpy as jnp
from jax.experimental import pallas as pl
from jax.experimental.pallas import tpu as pltpu

EPS = 1e-6


def sublayer_connection_kernel(x_ref, a2_ref, b2_ref, w_ref, bias_ref, o_ref):
    # x_ref : (TM, D) row tile of tokens (streamed per grid step, bf16 or f32)
    # a2/b2 : (1, D)  LayerNorm gain / bias (VMEM-resident, f32)
    # w_ref : (D, D)  sublayer Linear weight (VMEM-resident, MXU dtype)
    # bias  : (1, D)  sublayer Linear bias (f32)
    xf = x_ref[...].astype(jnp.float32)                       # f32 LN statistics
    d = xf.shape[-1]

    # ---- LayerNorm (PyTorch custom: unbiased std, divide by (std + eps)) ----
    # One-pass stats: sum and sum-of-squares are independent XLU reductions.
    s1 = jnp.sum(xf, axis=-1, keepdims=True)
    s2 = jnp.sum(xf * xf, axis=-1, keepdims=True)
    mean = s1 * (1.0 / d)
    var_unbiased = jnp.maximum((s2 - s1 * mean) * (1.0 / (d - 1)), 0.0)
    # Approximate reciprocal runs on the EUP slot (frees the VALU path).
    inv = pl.reciprocal(jnp.sqrt(var_unbiased) + EPS, approx=True)   # (TM, 1)
    normed = (xf - mean) * (inv * a2_ref[...]) + b2_ref[...]          # (TM, D)

    # ---- sublayer: Linear(D -> D) on the MXU, bf16 operands / f32 accum ----
    y = jnp.dot(normed.astype(w_ref.dtype), w_ref[...],
                preferred_element_type=jnp.float32)
    y = y + bias_ref[...]

    # ---- dropout (eval mode => identity) + residual ----
    # Re-read x here so the f32 copy is not kept live across the matmul.
    o_ref[...] = (x_ref[...].astype(jnp.float32) + y).astype(o_ref.dtype)
    # TODO(synk): training-mode dropout (Bernoulli mask via pltpu.prng_*) not
    # implemented; eval-mode dropout is an exact identity.


def _vmem_capacity_bytes():
    """Physical VMEM of the attached TPU (128 MiB on v5e/v6e, 64 MiB on v7x)."""
    try:
        return int(pltpu.get_tpu_info().vmem_capacity_bytes)
    except Exception:
        return 128 << 20


def _row_axis_semantics():
    """CORE_PARALLEL on v7x (2 TensorCores/chip -> both sets of DMA engines pull
    from HBM); plain "parallel" on single-TC chips (v5e/v6e)."""
    try:
        kind = jax.devices()[0].device_kind.lower()
        if "v7" in kind or "7x" in kind:
            return (pltpu.CORE_PARALLEL,)
    except Exception:
        pass
    return ("parallel",)


def _build_call(N, D, x_dtype, tm, vmem_limit, cost, semantics,
                single_buffer_residents):
    if single_buffer_residents:
        # Constant-index blocks never change across grid steps; single-buffer
        # them so the resident weight is not double-buffered (matters at big D,
        # especially within v7x's 64 MiB VMEM).
        def resident(shape, index_map):
            return pl.BlockSpec(shape, index_map, pipeline_mode=pl.Buffered(1))
    else:
        def resident(shape, index_map):
            return pl.BlockSpec(shape, index_map)

    return pl.pallas_call(
        sublayer_connection_kernel,
        out_shape=jax.ShapeDtypeStruct((N, D), x_dtype),
        grid_spec=pltpu.PrefetchScalarGridSpec(
            num_scalar_prefetch=0,
            grid=(pl.cdiv(N, tm),),
            in_specs=[
                pl.BlockSpec((tm, D), lambda i: (i, 0)),   # x row tile (streamed)
                resident((1, D), lambda i: (0, 0)),        # a_2 (resident)
                resident((1, D), lambda i: (0, 0)),        # b_2 (resident)
                resident((D, D), lambda i: (0, 0)),        # sublayer weight (resident)
                resident((1, D), lambda i: (0, 0)),        # sublayer bias (resident)
            ],
            out_specs=pl.BlockSpec((tm, D), lambda i: (i, 0)),
        ),
        compiler_params=pltpu.CompilerParams(
            dimension_semantics=semantics,
            vmem_limit_bytes=vmem_limit),
        cost_estimate=cost,
    )


def sublayer_connection(x, a2, b2, w, bias, *, block_rows=2048,
                        mxu_dtype=jnp.bfloat16):
    """x: (B, S, D), bf16 preferred (streamed in its own dtype).
    a2/b2/bias: (1, D) f32. w: (D, D), pass pre-cast to `mxu_dtype` (cast once
    at parameter-load time, not per call). Returns (B, S, D) in x.dtype."""
    B, S, D = x.shape
    N = B * S
    x2 = x.reshape(N, D)
    if w.dtype != mxu_dtype:
        # Fallback only: a per-call cast is an extra full weight pass over HBM
        # at production D. Prefer casting once when loading parameters.
        w = w.astype(mxu_dtype)

    x_item = x2.dtype.itemsize            # 2 bytes when caller streams bf16
    w_bytes = D * D * jnp.dtype(mxu_dtype).itemsize
    param_bytes = (a2.size + b2.size + bias.size) * 4

    # ---- generation-aware VMEM budget (~15% headroom for compiler scratch) ----
    vmem_budget = int(0.85 * _vmem_capacity_bytes())
    resident_bytes = w_bytes + param_bytes
    slack = 2 << 20
    # 2 pipeline buffers each for the streamed x tile and the out tile.
    stream_bytes_per_row = 2 * 2 * D * x_item
    tm_budget = max(8, (vmem_budget - 2 * resident_bytes - slack)
                    // stream_bytes_per_row)

    # ---- row-tile size: large, multiple of 256, preferably dividing N ----
    row_mult = 256
    tm = int(min(block_rows, N, tm_budget))
    if tm != N:
        if tm >= row_mult:
            tm = (tm // row_mult) * row_mult
            t = tm
            while t >= row_mult and N % t != 0:   # avoid a ragged last tile
                t -= row_mult
            if t >= row_mult and N % t == 0:
                tm = t
        else:
            tm = max(8, (tm // 8) * 8)

    vmem_needed = tm * stream_bytes_per_row + 2 * resident_bytes + slack
    vmem_limit = int(min(max(vmem_needed, 16 << 20), vmem_budget))

    cost = pl.CostEstimate(
        flops=2 * N * D * D + 8 * N * D,
        transcendentals=2 * N,                      # sqrt + reciprocal per row
        bytes_accessed=2 * N * D * x_item + w_bytes + param_bytes,
    )
    semantics = _row_axis_semantics()

    args = (x2, a2, b2, w, bias)
    try:
        out = _build_call(N, D, x2.dtype, tm, vmem_limit, cost, semantics,
                          single_buffer_residents=True)(*args)
    except Exception:
        # Conservative fallback (double-buffered residents, plain "parallel")
        # in case Buffered(1) / CORE_PARALLEL is unsupported on this jax/chip.
        out = _build_call(N, D, x2.dtype, tm, vmem_limit, cost, ("parallel",),
                          single_buffer_residents=False)(*args)
    return out.reshape(B, S, D)


def reference_f32(x, a2, b2, w, bias):
    # Pure-JAX f32 reference mirroring the PyTorch module exactly.
    mean = jnp.mean(x, axis=-1, keepdims=True)
    diff = x - mean
    var = jnp.sum(diff * diff, axis=-1, keepdims=True) / (x.shape[-1] - 1)
    std = jnp.sqrt(var)
    normed = a2[0] * diff / (std + EPS) + b2[0]
    y = normed @ w + bias[0]
    return x + y


if __name__ == "__main__":
    # Small but lane-dense shapes: D=128 (multiple of 128), N = B*S = 512 rows.
    B, S, D = 2, 256, 128

    key = jax.random.PRNGKey(0)
    kx, kw, ka, kb, kc = jax.random.split(key, 5)

    # bf16 activation streaming: x (and hence out) travel as bf16.
    x = jax.random.normal(kx, (B, S, D), dtype=jnp.float32).astype(jnp.bfloat16)

    # LayerNorm params (perturbed from init values to exercise all paths).
    a2 = 1.0 + 0.1 * jax.random.normal(ka, (1, D), dtype=jnp.float32)
    b2 = 0.1 * jax.random.normal(kb, (1, D), dtype=jnp.float32)

    # Deterministic sublayer Linear(D, D) weights; weight cast to bf16 ONCE at
    # "parameter-load time" (no per-call cast in the wrapper).
    w_f32 = jax.random.normal(kw, (D, D), dtype=jnp.float32) * (1.0 / jnp.sqrt(D))
    bias = 0.1 * jax.random.normal(kc, (1, D), dtype=jnp.float32)
    w_bf16 = w_f32.astype(jnp.bfloat16)

    # block_rows=256 forces a 2-step grid at this small N so the pipelined path,
    # tm rounding and the resident-parameter blocks are exercised; the
    # production default stays 2048.
    out = sublayer_connection(x, a2, b2, w_bf16, bias, block_rows=256)
    out = jax.block_until_ready(out)

    ref = reference_f32(x.astype(jnp.float32), a2, b2, w_f32, bias)
    assert out.shape == (B, S, D)
    assert out.dtype == x.dtype
    outf = out.astype(jnp.float32)
    assert bool(jnp.all(jnp.isfinite(outf)))
    # Tolerance accounts for bf16 streamed activations, bf16 MXU operands and
    # the EUP approximate reciprocal (LN stats and accumulation stay f32).
    assert jnp.allclose(outf, ref, atol=5e-2, rtol=5e-2), "mismatch vs reference"

    print("KERNEL_OK")
</pallas_src>

<mosaic_0001>
module attributes {stable_mosaic.version = 11 : i64} {
  func.func @sublayer_connection_kernel(%arg0: i32, %arg1: memref<256x128xbf16, #tpu.memory_space<vmem>>, %arg2: memref<1x128xf32, #tpu.memory_space<vmem>>, %arg3: memref<1x128xf32, #tpu.memory_space<vmem>>, %arg4: memref<128x128xbf16, #tpu.memory_space<vmem>>, %arg5: memref<1x128xf32, #tpu.memory_space<vmem>>, %arg6: memref<256x128xbf16, #tpu.memory_space<vmem>>) attributes {dimension_semantics = [#tpu.dimension_semantics<parallel>], iteration_bounds = array<i64: 2>, scalar_prefetch = 0 : i64, scratch_operands = 0 : i64, tpu.core_type = #tpu.core_type<tc>, window_params = [{transform_indices = @transform_0, window_bounds = array<i64: 256, 128>}, {pipeline_mode = #tpu.pipeline_mode<synchronous>, transform_indices = @transform_1, window_bounds = array<i64: 1, 128>}, {pipeline_mode = #tpu.pipeline_mode<synchronous>, transform_indices = @transform_2, window_bounds = array<i64: 1, 128>}, {pipeline_mode = #tpu.pipeline_mode<synchronous>, transform_indices = @transform_3, window_bounds = array<i64: 128, 128>}, {pipeline_mode = #tpu.pipeline_mode<synchronous>, transform_indices = @transform_4, window_bounds = array<i64: 1, 128>}, {transform_indices = @transform_5, window_bounds = array<i64: 256, 128>}]} {
    %c0 = arith.constant 0 : index
    %c0_0 = arith.constant 0 : index
    %0 = vector.load %arg1[%c0, %c0_0] : memref<256x128xbf16, #tpu.memory_space<vmem>>, vector<256x128xbf16>
    %1 = arith.extf %0 : vector<256x128xbf16> to vector<256x128xf32>
    %cst = arith.constant dense<0.000000e+00> : vector<256xf32>
    %2 = vector.multi_reduction <add>, %1, %cst [1] : vector<256x128xf32> to vector<256xf32>
    %3 = vector.shape_cast %2 : vector<256xf32> to vector<256x1xf32>
    %4 = arith.mulf %1, %1 : vector<256x128xf32>
    %cst_1 = arith.constant dense<0.000000e+00> : vector<256xf32>
    %5 = vector.multi_reduction <add>, %4, %cst_1 [1] : vector<256x128xf32> to vector<256xf32>
    %6 = vector.shape_cast %5 : vector<256xf32> to vector<256x1xf32>
    %cst_2 = arith.constant 7.812500e-03 : f32
    %7 = vector.broadcast %cst_2 : f32 to vector<256x1xf32>
    %8 = arith.mulf %3, %7 : vector<256x1xf32>
    %9 = arith.mulf %3, %8 : vector<256x1xf32>
    %10 = arith.subf %6, %9 : vector<256x1xf32>
    %cst_3 = arith.constant 0.00787401571 : f32
    %11 = vector.broadcast %cst_3 : f32 to vector<256x1xf32>
    %12 = arith.mulf %10, %11 : vector<256x1xf32>
    %cst_4 = arith.constant 0.000000e+00 : f32
    %13 = vector.broadcast %cst_4 : f32 to vector<256x1xf32>
    %14 = arith.maximumf %12, %13 : vector<256x1xf32>
    %15 = math.sqrt %14 : vector<256x1xf32>
    %cst_5 = arith.constant 9.99999997E-7 : f32
    %16 = vector.broadcast %cst_5 : f32 to vector<256x1xf32>
    %17 = arith.addf %15, %16 : vector<256x1xf32>
    %18 = tpu.reciprocal %17 {approx = true} : vector<256x1xf32> -> vector<256x1xf32>
    %19 = vector.broadcast %8 : vector<256x1xf32> to vector<256x128xf32>
    %20 = arith.subf %1, %19 : vector<256x128xf32>
    %c0_6 = arith.constant 0 : index
    %c0_7 = arith.constant 0 : index
    %21 = vector.load %arg2[%c0_6, %c0_7] : memref<1x128xf32, #tpu.memory_space<vmem>>, vector<1x128xf32>
    %22 = vector.broadcast %18 : vector<256x1xf32> to vector<256x128xf32>
    %23 = vector.broadcast %21 : vector<1x128xf32> to vector<256x128xf32>
    %24 = arith.mulf %22, %23 : vector<256x128xf32>
    %25 = arith.mulf %20, %24 : vector<256x128xf32>
    %c0_8 = arith.constant 0 : index
    %c0_9 = arith.constant 0 : index
    %26 = vector.load %arg3[%c0_8, %c0_9] : memref<1x128xf32, #tpu.memory_space<vmem>>, vector<1x128xf32>
    %27 = vector.broadcast %26 : vector<1x128xf32> to vector<256x128xf32>
    %28 = arith.addf %25, %27 : vector<256x128xf32>
    %29 = arith.truncf %28 : vector<256x128xf32> to vector<256x128xbf16>
    %c0_10 = arith.constant 0 : index
    %c0_11 = arith.constant 0 : index
    %30 = vector.load %arg4[%c0_10, %c0_11] : memref<128x128xbf16, #tpu.memory_space<vmem>>, vector<128x128xbf16>
    %cst_12 = arith.constant dense<0.000000e+00> : vector<256x128xf32>
    %31 = tpu.matmul %29, %30, %cst_12 {dimension_numbers = #tpu.dot_dimension_numbers<[1], [0], [0], [1], [0, 0, 1, 1], [], []>} : vector<256x128xbf16>, vector<128x128xbf16>, vector<256x128xf32> -> vector<256x128xf32>
    %c0_13 = arith.constant 0 : index
    %c0_14 = arith.constant 0 : index
    %32 = vector.load %arg5[%c0_13, %c0_14] : memref<1x128xf32, #tpu.memory_space<vmem>>, vector<1x128xf32>
    %33 = vector.broadcast %32 : vector<1x128xf32> to vector<256x128xf32>
    %34 = arith.addf %31, %33 : vector<256x128xf32>
    %c0_15 = arith.constant 0 : index
    %c0_16 = arith.constant 0 : index
    %35 = vector.load %arg1[%c0_15, %c0_16] : memref<256x128xbf16, #tpu.memory_space<vmem>>, vector<256x128xbf16>
    %36 = arith.extf %35 : vector<256x128xbf16> to vector<256x128xf32>
    %37 = arith.addf %36, %34 : vector<256x128xf32>
    %38 = arith.truncf %37 : vector<256x128xf32> to vector<256x128xbf16>
    %c0_17 = arith.constant 0 : index
    %c0_18 = arith.constant 0 : index
    %39 = vector.load %arg6[%c0_17, %c0_18] : memref<256x128xbf16, #tpu.memory_space<vmem>>, vector<256x128xbf16>
    tpu.vector_store %arg6[%c0_17, %c0_18], %38 {strides = array<i32>} : memref<256x128xbf16, #tpu.memory_space<vmem>>, vector<256x128xbf16>,
    return
  }
  func.func @transform_0(%arg0: i32) -> (i32, i32) {
    %c0_i32 = arith.constant 0 : i32
    %c0_i32_0 = arith.constant 0 : i32
    return %arg0, %c0_i32 : i32, i32
  }
  func.func @transform_1(%arg0: i32) -> (i32, i32) {
    %c0_i32 = arith.constant 0 : i32
    %c0_i32_0 = arith.constant 0 : i32
    %c0_i32_1 = arith.constant 0 : i32
    return %c0_i32, %c0_i32_0 : i32, i32
  }
  func.func @transform_2(%arg0: i32) -> (i32, i32) {
    %c0_i32 = arith.constant 0 : i32
    %c0_i32_0 = arith.constant 0 : i32
    %c0_i32_1 = arith.constant 0 : i32
    return %c0_i32, %c0_i32_0 : i32, i32
  }
  func.func @transform_3(%arg0: i32) -> (i32, i32) {
    %c0_i32 = arith.constant 0 : i32
    %c0_i32_0 = arith.constant 0 : i32
    %c0_i32_1 = arith.constant 0 : i32
    return %c0_i32, %c0_i32_0 : i32, i32
  }
  func.func @transform_4(%arg0: i32) -> (i32, i32) {
    %c0_i32 = arith.constant 0 : i32
    %c0_i32_0 = arith.constant 0 : i32
    %c0_i32_1 = arith.constant 0 : i32
    return %c0_i32, %c0_i32_0 : i32, i32
  }
  func.func @transform_5(%arg0: i32) -> (i32, i32) {
    %c0_i32 = arith.constant 0 : i32
    %c0_i32_0 = arith.constant 0 : i32
    return %arg0, %c0_i32 : i32, i32
  }
}

module attributes {stable_mosaic.version = 11 : i64} {
  func.func @sublayer_connection_kernel(%arg0: i32, %arg1: memref<256x128xbf16, #tpu.memory_space<vmem>>, %arg2: memref<1x128xf32, #tpu.memory_space<vmem>>, %arg3: memref<1x128xf32, #tpu.memory_space<vmem>>, %arg4: memref<128x128xbf16, #tpu.memory_space<vmem>>, %arg5: memref<1x128xf32, #tpu.memory_space<vmem>>, %arg6: memref<256x128xbf16, #tpu.memory_space<vmem>>) attributes {dimension_semantics = [#tpu.dimension_semantics<parallel>], iteration_bounds = array<i64: 2>, scalar_prefetch = 0 : i64, scratch_operands = 0 : i64, tpu.core_type = #tpu.core_type<tc>, window_params = [{transform_indices = @transform_0, window_bounds = array<i64: 256, 128>}, {pipeline_mode = #tpu.pipeline_mode<synchronous>, transform_indices = @transform_1, window_bounds = array<i64: 1, 128>}, {pipeline_mode = #tpu.pipeline_mode<synchronous>, transform_indices = @transform_2, window_bounds = array<i64: 1, 128>}, {pipeline_mode = #tpu.pipeline_mode<synchronous>, transform_indices = @transform_3, window_bounds = array<i64: 128, 128>}, {pipeline_mode = #tpu.pipeline_mode<synchronous>, transform_indices = @transform_4, window_bounds = array<i64: 1, 128>}, {transform_indices = @transform_5, window_bounds = array<i64: 256, 128>}]} {
    %c0 = arith.constant 0 : index
    %c0_0 = arith.constant 0 : index
    %0 = vector.load %arg1[%c0, %c0_0] : memref<256x128xbf16, #tpu.memory_space<vmem>>, vector<256x128xbf16>
    %1 = arith.extf %0 : vector<256x128xbf16> to vector<256x128xf32>
    %cst = arith.constant dense<0.000000e+00> : vector<256xf32>
    %2 = vector.multi_reduction <add>, %1, %cst [1] : vector<256x128xf32> to vector<256xf32>
    %3 = vector.shape_cast %2 : vector<256xf32> to vector<256x1xf32>
    %4 = arith.mulf %1, %1 : vector<256x128xf32>
    %cst_1 = arith.constant dense<0.000000e+00> : vector<256xf32>
    %5 = vector.multi_reduction <add>, %4, %cst_1 [1] : vector<256x128xf32> to vector<256xf32>
    %6 = vector.shape_cast %5 : vector<256xf32> to vector<256x1xf32>
    %cst_2 = arith.constant 7.812500e-03 : f32
    %7 = vector.broadcast %cst_2 : f32 to vector<256x1xf32>
    %8 = arith.mulf %3, %7 : vector<256x1xf32>
    %9 = arith.mulf %3, %8 : vector<256x1xf32>
    %10 = arith.subf %6, %9 : vector<256x1xf32>
    %cst_3 = arith.constant 0.00787401571 : f32
    %11 = vector.broadcast %cst_3 : f32 to vector<256x1xf32>
    %12 = arith.mulf %10, %11 : vector<256x1xf32>
    %cst_4 = arith.constant 0.000000e+00 : f32
    %13 = vector.broadcast %cst_4 : f32 to vector<256x1xf32>
    %14 = arith.maximumf %12, %13 : vector<256x1xf32>
    %15 = math.sqrt %14 : vector<256x1xf32>
    %cst_5 = arith.constant 9.99999997E-7 : f32
    %16 = vector.broadcast %cst_5 : f32 to vector<256x1xf32>
    %17 = arith.addf %15, %16 : vector<256x1xf32>
    %18 = tpu.reciprocal %17 {approx = true} : vector<256x1xf32> -> vector<256x1xf32>
    %19 = vector.broadcast %8 : vector<256x1xf32> to vector<256x128xf32>
    %20 = arith.subf %1, %19 : vector<256x128xf32>
    %c0_6 = arith.constant 0 : index
    %c0_7 = arith.constant 0 : index
    %21 = vector.load %arg2[%c0_6, %c0_7] : memref<1x128xf32, #tpu.memory_space<vmem>>, vector<1x128xf32>
    %22 = vector.broadcast %18 : vector<256x1xf32> to vector<256x128xf32>
    %23 = vector.broadcast %21 : vector<1x128xf32> to vector<256x128xf32>
    %24 = arith.mulf %22, %23 : vector<256x128xf32>
    %25 = arith.mulf %20, %24 : vector<256x128xf32>
    %c0_8 = arith.constant 0 : index
    %c0_9 = arith.constant 0 : index
    %26 = vector.load %arg3[%c0_8, %c0_9] : memref<1x128xf32, #tpu.memory_space<vmem>>, vector<1x128xf32>
    %27 = vector.broadcast %26 : vector<1x128xf32> to vector<256x128xf32>
    %28 = arith.addf %25, %27 : vector<256x128xf32>
    %29 = arith.truncf %28 : vector<256x128xf32> to vector<256x128xbf16>
    %c0_10 = arith.constant 0 : index
    %c0_11 = arith.constant 0 : index
    %30 = vector.load %arg4[%c0_10, %c0_11] : memref<128x128xbf16, #tpu.memory_space<vmem>>, vector<128x128xbf16>
    %cst_12 = arith.constant dense<0.000000e+00> : vector<256x128xf32>
    %31 = tpu.matmul %29, %30, %cst_12 {dimension_numbers = #tpu.dot_dimension_numbers<[1], [0], [0], [1], [0, 0, 1, 1], [], []>} : vector<256x128xbf16>, vector<128x128xbf16>, vector<256x128xf32> -> vector<256x128xf32>
    %c0_13 = arith.constant 0 : index
    %c0_14 = arith.constant 0 : index
    %32 = vector.load %arg5[%c0_13, %c0_14] : memref<1x128xf32, #tpu.memory_space<vmem>>, vector<1x128xf32>
    %33 = vector.broadcast %32 : vector<1x128xf32> to vector<256x128xf32>
    %34 = arith.addf %31, %33 : vector<256x128xf32>
    %c0_15 = arith.constant 0 : index
    %c0_16 = arith.constant 0 : index
    %35 = vector.load %arg1[%c0_15, %c0_16] : memref<256x128xbf16, #tpu.memory_space<vmem>>, vector<256x128xbf16>
    %36 = arith.extf %35 : vector<256x128xbf16> to vector<256x128xf32>
    %37 = arith.addf %36, %34 : vector<256x128xf32>
    %38 = arith.truncf %37 : vector<256x128xf32> to vector<256x128xbf16>
    %c0_17 = arith.constant 0 : index
    %c0_18 = arith.constant 0 : index
    %39 = vector.load %arg6[%c0_17, %c0_18] : memref<256x128xbf16, #tpu.memory_space<vmem>>, vector<256x128xbf16>
    tpu.vector_store %arg6[%c0_17, %c0_18], %38 {strides = array<i32>} : memref<256x128xbf16, #tpu.memory_space<vmem>>, vector<256x128xbf16>,
    return
  }
  func.func @transform_0(%arg0: i32) -> (i32, i32) {
    %c0_i32 = arith.constant 0 : i32
    %c0_i32_0 = arith.constant 0 : i32
    return %arg0, %c0_i32 : i32, i32
  }
  func.func @transform_1(%arg0: i32) -> (i32, i32) {
    %c0_i32 = arith.constant 0 : i32
    %c0_i32_0 = arith.constant 0 : i32
    %c0_i32_1 = arith.constant 0 : i32
    return %c0_i32, %c0_i32_0 : i32, i32
  }
  func.func @transform_2(%arg0: i32) -> (i32, i32) {
    %c0_i32 = arith.constant 0 : i32
    %c0_i32_0 = arith.constant 0 : i32
    %c0_i32_1 = arith.constant 0 : i32
    return %c0_i32, %c0_i32_0 : i32, i32
  }
  func.func @transform_3(%arg0: i32) -> (i32, i32) {
    %c0_i32 = arith.constant 0 : i32
    %c0_i32_0 = arith.constant 0 : i32
    %c0_i32_1 = arith.constant 0 : i32
    return %c0_i32, %c0_i32_0 : i32, i32
  }
  func.func @transform_4(%arg0: i32) -> (i32, i32) {
    %c0_i32 = arith.constant 0 : i32
    %c0_i32_0 = arith.constant 0 : i32
    %c0_i32_1 = arith.constant 0 : i32
    return %c0_i32, %c0_i32_0 : i32, i32
  }
  func.func @transform_5(%arg0: i32) -> (i32, i32) {
    %c0_i32 = arith.constant 0 : i32
    %c0_i32_0 = arith.constant 0 : i32
    return %arg0, %c0_i32 : i32, i32
  }
}

</mosaic_0001>

<llo_original>
// kernel: tpu_custom_call.1
$region0: #{tpu_custom_call.1}
  #allocation0 [shape = 'u32[]', space=smem, size = 0x4, offset = 0x4, fixed_abs, tag = 'smem constant byte address 0x4 - core index']
  #allocation1 [shape = 'u32[144,128]{1,0:T(1,128)}', space=vmem, size = 0x12000, scoped, tag = 'internal scratch']
  %s0 = inlined_call_operand.hbm [shape: bf16[512,128], index: 0, kind: input, shape index: {}]
  %s1 = inlined_call_operand.vmem [shape: f32[1,128], index: 1, kind: input, shape index: {}]
  %s2 = inlined_call_operand.vmem [shape: f32[1,128], index: 2, kind: input, shape index: {}]
  %s3 = inlined_call_operand.hbm [shape: bf16[128,128], index: 3, kind: input, shape index: {}]
  %s4 = inlined_call_operand.vmem [shape: f32[1,128], index: 4, kind: input, shape index: {}]
  %s5 = inlined_call_operand.hbm [shape: bf16[512,128], index: 5, kind: output, shape index: {}]
  %s6 = sld [smem:[#allocation0]]
  $region61: #{tpu_custom_call.1} parent=0
    _
  %s8 = ssub.s32 1, %s6
  %s9 = scalar_select 0, %s8, %s6
  $region1: #{tpu_custom_call.1} parent=0
    #allocation2 [shape = 'u8[131072]{0}', space=vmem, size = 0x20000, scoped, tag = 'input window, operand 0']
    #allocation3 [shape = 's32[2]{0}', space=sflag, size = 0x8, scoped, tag = 'scoped memory for tpu_custom_call.1']
    #allocation4 [shape = 's32[2]{0}', space=sflag, size = 0x8, scoped, tag = 'scoped memory for tpu_custom_call.1']
    #allocation5 [shape = 'u8[32768]{0}', space=vmem, size = 0x8000, scoped, tag = 'input window, operand 3, single buffered']
    #allocation6 [shape = 's32[1]{0}', space=sflag, size = 0x4, scoped, tag = 'scoped memory for tpu_custom_call.1']
    #allocation7 [shape = 'u8[131072]{0}', space=vmem, size = 0x20000, scoped, tag = 'output window, operand 0']
    %10 = vsyncpa [#allocation3], 0
    %s11 = scalar_lea.sflag [#allocation3], 1
    %12 = vsyncpa %s11, 0
    %13 = vsyncpa [#allocation6], 0
    %14 = vsyncpa [#allocation4], 0
    %s15 = scalar_lea.sflag [#allocation4], 1
    %16 = vsyncpa %s15, 0
    loop: start=0, step=1, limit=4
    $region2: #{tpu_custom_call.1} parent=1 // loop_pre_header
      _
    $region3: #{tpu_custom_call.1} parent=1 // loop_header
      %s18 = sphi 0, %s22
      %p19 = scmp.ge.s32.totalorder %s18, 4
      %s28 = sphi 0, %s30
      %s31 = sphi 0, %s28
      %s32 = sphi 0, %s31
      %s48 = sphi 0, %s32
      %s52 = sphi 0, %s52
      %s54 = sphi 0, %s52
      %s55 = sphi 0, %s54
      %s69 = sphi 0, %s55
      %s73 = sphi 0, %s73
      %s75 = sphi 0, %s73
      %s76 = sphi 0, %s75
      %s90 = sphi 0, %s76
      %s94 = sphi 0, %s94
      %s96 = sphi 0, %s94
      %s97 = sphi 0, %s96
      %s111 = sphi 0, %s97
      %s115 = sphi 0, %s115
      %s117 = sphi 0, %s115
      %s118 = sphi 0, %s117
      %s132 = sphi 0, %s118
      %s138 = sphi 0, %s140
      %s141 = sphi 0, %s138
      %s142 = sphi 0, %s141
      %s158 = sphi 0, %s142
    $region4: #{tpu_custom_call.1} parent=1 // loop_header_branch
      %21 = sbr.rel (%p19) target = $region8
    $region5: #{tpu_custom_call.1} parent=1 // loop_body
      %s23 = ssub.s32 %s18, 1
      %s24 = ssub.s32 %s18, 2
      %s25 = sadd.s32 %s18, 1
      %s26 = ssub.s32 %s18, %s25
      %p27 = scmp.eq.s32.totalorder %s26, 0
      %s29 = sadd.s32 %s28, 1
      %s30 = scalar_select %p27, %s28, %s29
      %p33 = pneg %p27
      %p34 = scmp.eq.s32.totalorder %s18, 1
      %p35 = por %p33, %p34
      %p36 = scmp.ne.s32.totalorder %s28, %s31
      %p37 = scmp.eq.s32.totalorder %s18, 0
      %p38 = por %p36, %p37
      %p39 = scmp.ne.s32.totalorder %s28, %s31
      %p40 = scmp.eq.s32.totalorder %s23, 1
      %p41 = por %p39, %p40
      %p42 = scmp.ne.s32.totalorder %s31, %s32
      %p43 = scmp.eq.s32.totalorder %s23, 0
      %p44 = por %p42, %p43
      %p45 = scmp.ne.s32.totalorder %s31, %s32
      %p46 = scmp.eq.s32.totalorder %s24, 1
      %p47 = por %p45, %p46
      %p49 = scmp.ne.s32.totalorder %s32, %s48
      %p50 = scmp.eq.s32.totalorder %s24, 0
      %p51 = por %p49, %p50
      %s53 = sadd.s32 %s52, 1
      %p56 = scmp.eq.s32.totalorder %s18, 1
      %p57 = scmp.ne.s32.totalorder %s52, %s54
      %p58 = scmp.eq.s32.totalorder %s18, 0
      %p59 = por %p57, %p58
      %p60 = scmp.ne.s32.totalorder %s52, %s54
      %p61 = scmp.eq.s32.totalorder %s23, 1
      %p62 = por %p60, %p61
      %p63 = scmp.ne.s32.totalorder %s54, %s55
      %p64 = scmp.eq.s32.totalorder %s23, 0
      %p65 = por %p63, %p64
      %p66 = scmp.ne.s32.totalorder %s54, %s55
      %p67 = scmp.eq.s32.totalorder %s24, 1
      %p68 = por %p66, %p67
      %p70 = scmp.ne.s32.totalorder %s55, %s69
      %p71 = scmp.eq.s32.totalorder %s24, 0
      %p72 = por %p70, %p71
      %s74 = sadd.s32 %s73, 1
      %p77 = scmp.eq.s32.totalorder %s18, 1
      %p78 = scmp.ne.s32.totalorder %s73, %s75
      %p79 = scmp.eq.s32.totalorder %s18, 0
      %p80 = por %p78, %p79
      %p81 = scmp.ne.s32.totalorder %s73, %s75
      %p82 = scmp.eq.s32.totalorder %s23, 1
      %p83 = por %p81, %p82
      %p84 = scmp.ne.s32.totalorder %s75, %s76
      %p85 = scmp.eq.s32.totalorder %s23, 0
      %p86 = por %p84, %p85
      %p87 = scmp.ne.s32.totalorder %s75, %s76
      %p88 = scmp.eq.s32.totalorder %s24, 1
      %p89 = por %p87, %p88
      %p91 = scmp.ne.s32.totalorder %s76, %s90
      %p92 = scmp.eq.s32.totalorder %s24, 0
      %p93 = por %p91, %p92
      %s95 = sadd.s32 %s94, 1
      %p98 = scmp.eq.s32.totalorder %s18, 1
      %p99 = scmp.ne.s32.totalorder %s94, %s96
      %p100 = scmp.eq.s32.totalorder %s18, 0
      %p101 = por %p99, %p100
      %p102 = scmp.ne.s32.totalorder %s94, %s96
      %p103 = scmp.eq.s32.totalorder %s23, 1
      %p104 = por %p102, %p103
      %p105 = scmp.ne.s32.totalorder %s96, %s97
      %p106 = scmp.eq.s32.totalorder %s23, 0
      %p107 = por %p105, %p106
      %p108 = scmp.ne.s32.totalorder %s96, %s97
      %p109 = scmp.eq.s32.totalorder %s24, 1
      %p110 = por %p108, %p109
      %p112 = scmp.ne.s32.totalorder %s97, %s111
      %p113 = scmp.eq.s32.totalorder %s24, 0
      %p114 = por %p112, %p113
      %s116 = sadd.s32 %s115, 1
      %p119 = scmp.eq.s32.totalorder %s18, 1
      %p120 = scmp.ne.s32.totalorder %s115, %s117
      %p121 = scmp.eq.s32.totalorder %s18, 0
      %p122 = por %p120, %p121
      %p123 = scmp.ne.s32.totalorder %s115, %s117
      %p124 = scmp.eq.s32.totalorder %s23, 1
      %p125 = por %p123, %p124
      %p126 = scmp.ne.s32.totalorder %s117, %s118
      %p127 = scmp.eq.s32.totalorder %s23, 0
      %p128 = por %p126, %p127
      %p129 = scmp.ne.s32.totalorder %s117, %s118
      %p130 = scmp.eq.s32.totalorder %s24, 1
      %p131 = por %p129, %p130
      %p133 = scmp.ne.s32.totalorder %s118, %s132
      %p134 = scmp.eq.s32.totalorder %s24, 0
      %p135 = por %p133, %p134
      %s136 = ssub.s32 %s18, %s25
      %p137 = scmp.eq.s32.totalorder %s136, 0
      %s139 = sadd.s32 %s138, 1
      %s140 = scalar_select %p137, %s138, %s139
      %p143 = pneg %p137
      %p144 = scmp.eq.s32.totalorder %s18, 1
      %p145 = por %p143, %p144
      %p146 = scmp.ne.s32.totalorder %s138, %s141
      %p147 = scmp.eq.s32.totalorder %s18, 0
      %p148 = por %p146, %p147
      %p149 = scmp.ne.s32.totalorder %s138, %s141
      %p150 = scmp.eq.s32.totalorder %s23, 1
      %p151 = por %p149, %p150
      %p152 = scmp.ne.s32.totalorder %s141, %s142
      %p153 = scmp.eq.s32.totalorder %s23, 0
      %p154 = por %p152, %p153
      %p155 = scmp.ne.s32.totalorder %s141, %s142
      %p156 = scmp.eq.s32.totalorder %s24, 1
      %p157 = por %p155, %p156
      %p159 = scmp.ne.s32.totalorder %s142, %s158
      %p160 = scmp.eq.s32.totalorder %s24, 0
      %p161 = por %p159, %p160
      %p162 = scmp.le.s32.totalorder 1, %s18
      %p163 = scmp.lt.s32.totalorder %s18, 3
      %p164 = pnand %p162, %p163
      %p165 = pneg %p164
      // Predicated region
      $region9: #{tpu_custom_call.1} parent=5 // pred_check
        _
      $region10: #{tpu_custom_call.1} parent=5 // pred_check_branch
        %167 = sbr.rel (%p164) target = $region12
      $region11: #{tpu_custom_call.1} parent=5 // pred_region
        %s168 = ssub.s32 %s18, 1
        // Predicated region
        $region13: #{tpu_custom_call.1} parent=11 // pred_check
          %p169 = pneg %p65
        $region14: #{tpu_custom_call.1} parent=11 // pred_check_branch
          %171 = sbr.rel (%p169) target = $region16
        $region15: #{tpu_custom_call.1} parent=11 // pred_region
          _
        $region16: #{tpu_custom_call.1} parent=11 // pred_fallthru
          _
        // Predicated region
        $region17: #{tpu_custom_call.1} parent=11 // pred_check
          %p172 = pneg %p86
        $region18: #{tpu_custom_call.1} parent=11 // pred_check_branch
          %174 = sbr.rel (%p172) target = $region20
        $region19: #{tpu_custom_call.1} parent=11 // pred_region
          _
        $region20: #{tpu_custom_call.1} parent=11 // pred_fallthru
          _
        // Predicated region
        $region21: #{tpu_custom_call.1} parent=11 // pred_check
          %p175 = pneg %p107
        $region22: #{tpu_custom_call.1} parent=11 // pred_check_branch
          %177 = sbr.rel (%p175) target = $region24
        $region23: #{tpu_custom_call.1} parent=11 // pred_region
          %s179 = ssub.s32 1024, 1024
          %180 = vsyncadd [#allocation6], %s179
          %s181 = sshll.u32 [#allocation5], 4
          %s182 = int_to_ptr.vmem [resolvable:$true] %s181
          %187 = dma.hbm_to_vmem [thread:$0]  %s3, 1024, %s182, [#allocation6], 64, 64, 4
        $region24: #{tpu_custom_call.1} parent=11 // pred_fallthru
          _
        // Predicated region
        $region25: #{tpu_custom_call.1} parent=11 // pred_check
          %p188 = pneg %p128
        $region26: #{tpu_custom_call.1} parent=11 // pred_check_branch
          %190 = sbr.rel (%p188) target = $region28
        $region27: #{tpu_custom_call.1} parent=11 // pred_region
          _
        $region28: #{tpu_custom_call.1} parent=11 // pred_fallthru
          _
      $region12: #{tpu_custom_call.1} parent=5 // pred_fallthru
        _
      %p191 = scmp.lt.s32.totalorder %s18, 2
      // Predicated region
      $region29: #{tpu_custom_call.1} parent=5 // pred_check
        %p192 = pneg %p191
      $region30: #{tpu_custom_call.1} parent=5 // pred_check_branch
        %194 = sbr.rel (%p192) target = $region32
      $region31: #{tpu_custom_call.1} parent=5 // pred_region
        // Predicated region
        $region33: #{tpu_custom_call.1} parent=31 // pred_check
          %p195 = pneg %p38
        $region34: #{tpu_custom_call.1} parent=31 // pred_check_branch
          %197 = sbr.rel (%p195) target = $region36
        $region35: #{tpu_custom_call.1} parent=31 // pred_region
          %s198 = sand.u32 %s28, 1
          %s199 = scalar_lea.sflag [#allocation3], %s198
          %s200 = sand.u32 %s28, 1
          %s201 = smul.addr %s200, 128
          %s202 = scalar_lea.vmem [#allocation2], %s201
          %s203 = smul.u32 32, %s18
          %s205 = ssub.s32 2048, 2048
          %206 = vsyncadd %s199, %s205
          %s207 = smul.addr %s203, 64
          %s208 = scalar_lea.hbm %s0, %s207
          %s209 = sshll.u32 %s202, 4
          %s210 = int_to_ptr.vmem [resolvable:$true] %s209
          %215 = dma.hbm_to_vmem [thread:$0]  %s208, 2048, %s210, %s199, 64, 64, 4
        $region36: #{tpu_custom_call.1} parent=31 // pred_fallthru
          _
      $region32: #{tpu_custom_call.1} parent=5 // pred_fallthru
        _
      %p216 = scmp.le.s32.totalorder 1, %s18
      %p217 = scmp.lt.s32.totalorder %s18, 3
      %p218 = pnand %p216, %p217
      %p219 = pneg %p218
      // Predicated region
      $region37: #{tpu_custom_call.1} parent=5 // pred_check
        _
      $region38: #{tpu_custom_call.1} parent=5 // pred_check_branch
        %221 = sbr.rel (%p218) target = $region40
      $region39: #{tpu_custom_call.1} parent=5 // pred_region
        %s222 = ssub.s32 %s18, 1
        %s223 = sand.u32 %s31, 1
        %s224 = scalar_lea.sflag [#allocation3], %s223
        %s225 = sand.u32 %s31, 1
        %s226 = smul.addr %s225, 128
        %s227 = scalar_lea.vmem [#allocation2], %s226
        // Predicated region
        $region41: #{tpu_custom_call.1} parent=39 // pred_check
          %p228 = pneg %p44
        $region42: #{tpu_custom_call.1} parent=39 // pred_check_branch
          %230 = sbr.rel (%p228) target = $region44
        $region43: #{tpu_custom_call.1} parent=39 // pred_region
          %231 = dma.done %s224, 2048
        $region44: #{tpu_custom_call.1} parent=39 // pred_fallthru
          _
        // Predicated region
        $region45: #{tpu_custom_call.1} parent=39 // pred_check
          %p232 = pneg %p107
        $region46: #{tpu_custom_call.1} parent=39 // pred_check_branch
          %234 = sbr.rel (%p232) target = $region48
        $region47: #{tpu_custom_call.1} parent=39 // pred_region
          %235 = dma.done [#allocation6], 1024
        $region48: #{tpu_custom_call.1} parent=39 // pred_fallthru
          _
        %s236 = sand.u32 %s31, 1
        %s237 = scalar_lea.sflag [#allocation3], %s236
        %s238 = sand.u32 %s31, 1
        %s239 = smul.addr %s238, 128
        %s240 = scalar_lea.vmem [#allocation2], %s239
        %p241 = pneg %p44
        %p242 = pneg %p41
        %p243 = pneg %p65
        %p244 = pneg %p62
        %p245 = pneg %p86
        %p246 = pneg %p83
        %p247 = pneg %p107
        %p248 = pneg %p104
        %p249 = pneg %p128
        %p250 = pneg %p125
        %p251 = pneg %p154
        %p252 = pneg %p151
        %s253 = sand.u32 %s141, 1
        %s254 = scalar_lea.sflag [#allocation4], %s253
        %s255 = sand.u32 %s141, 1
        %s256 = smul.addr %s255, 128
        %s257 = scalar_lea.vmem [#allocation7], %s256
        %s258 = smul.u32 32, %s23
        %s259 = smul.u32 32, %s23
        %v261 = vld [vmem:[%s227] sm:$0xf]
        %v262 = vld [vmem:[%s227 + $0x4] sm:$0xf]
        %v263 = vld [vmem:[%s227 + $0x8] sm:$0xf]
        %v264 = vld [vmem:[%s227 + $0xc] sm:$0xf]
        %v265 = vld [vmem:[%s227 + $0x10] sm:$0xf]
        %v266 = vld [vmem:[%s227 + $0x14] sm:$0xf]
        %v267 = vld [vmem:[%s227 + $0x18] sm:$0xf]
        %v268 = vld [vmem:[%s227 + $0x1c] sm:$0xf]
        %v269 = vld [vmem:[%s227 + $0x20] sm:$0xf]
        %v270 = vld [vmem:[%s227 + $0x24] sm:$0xf]
        %v271 = vld [vmem:[%s227 + $0x28] sm:$0xf]
        %v272 = vld [vmem:[%s227 + $0x2c] sm:$0xf]
        %v273 = vld [vmem:[%s227 + $0x30] sm:$0xf]
        %v274 = vld [vmem:[%s227 + $0x34] sm:$0xf]
        %v275 = vld [vmem:[%s227 + $0x38] sm:$0xf]
        %v276 = vld [vmem:[%s227 + $0x3c] sm:$0xf]
        %v277 = vld [vmem:[%s227 + $0x40] sm:$0xf]
        %v278 = vld [vmem:[%s227 + $0x44] sm:$0xf]
        %v279 = vld [vmem:[%s227 + $0x48] sm:$0xf]
        %v280 = vld [vmem:[%s227 + $0x4c] sm:$0xf]
        %v281 = vld [vmem:[%s227 + $0x50] sm:$0xf]
        %v282 = vld [vmem:[%s227 + $0x54] sm:$0xf]
        %v283 = vld [vmem:[%s227 + $0x58] sm:$0xf]
        %v284 = vld [vmem:[%s227 + $0x5c] sm:$0xf]
        %v285 = vld [vmem:[%s227 + $0x60] sm:$0xf]
        %v286 = vld [vmem:[%s227 + $0x64] sm:$0xf]
        %v287 = vld [vmem:[%s227 + $0x68] sm:$0xf]
        %v288 = vld [vmem:[%s227 + $0x6c] sm:$0xf]
        %v289 = vld [vmem:[%s227 + $0x70] sm:$0xf]
        %v290 = vld [vmem:[%s227 + $0x74] sm:$0xf]
        %v291 = vld [vmem:[%s227 + $0x78] sm:$0xf]
        %v292 = vld [vmem:[%s227 + $0x7c] sm:$0xf]
        %v293 = vunpack.c.l.bf16 %v261
        %v294 = vunpack.c.l.bf16 %v262
        %v295 = vunpack.c.l.bf16 %v263
        %v296 = vunpack.c.l.bf16 %v264
        %v297 = vunpack.c.l.bf16 %v265
        %v298 = vunpack.c.l.bf16 %v266
        %v299 = vunpack.c.l.bf16 %v267
        %v300 = vunpack.c.l.bf16 %v268
        %v301 = vunpack.c.l.bf16 %v269
        %v302 = vunpack.c.l.bf16 %v270
        %v303 = vunpack.c.l.bf16 %v271
        %v304 = vunpack.c.l.bf16 %v272
        %v305 = vunpack.c.l.bf16 %v273
        %v306 = vunpack.c.l.bf16 %v274
        %v307 = vunpack.c.l.bf16 %v275
        %v308 = vunpack.c.l.bf16 %v276
        %v309 = vunpack.c.l.bf16 %v277
        %v310 = vunpack.c.l.bf16 %v278
        %v311 = vunpack.c.l.bf16 %v279
        %v312 = vunpack.c.l.bf16 %v280
        %v313 = vunpack.c.l.bf16 %v281
        %v314 = vunpack.c.l.bf16 %v282
        %v315 = vunpack.c.l.bf16 %v283
        %v316 = vunpack.c.l.bf16 %v284
        %v317 = vunpack.c.l.bf16 %v285
        %v318 = vunpack.c.l.bf16 %v286
        %v319 = vunpack.c.l.bf16 %v287
        %v320 = vunpack.c.l.bf16 %v288
        %v321 = vunpack.c.l.bf16 %v289
        %v322 = vunpack.c.l.bf16 %v290
        %v323 = vunpack.c.l.bf16 %v291
        %v324 = vunpack.c.l.bf16 %v292
        %325 = vadd.xlane.f32.xlu0 %v293
        %v326 = vpop.xlane.xlu0 %325
        %327 = vadd.xlane.f32.xlu0 %v294
        %v328 = vpop.xlane.xlu0 %327
        %329 = vadd.xlane.f32.xlu0 %v295
        %v330 = vpop.xlane.xlu0 %329
        %331 = vadd.xlane.f32.xlu0 %v296
        %v332 = vpop.xlane.xlu0 %331
        %333 = vadd.xlane.f32.xlu0 %v297
        %v334 = vpop.xlane.xlu0 %333
        %335 = vadd.xlane.f32.xlu0 %v298
        %v336 = vpop.xlane.xlu0 %335
        %337 = vadd.xlane.f32.xlu0 %v299
        %v338 = vpop.xlane.xlu0 %337
        %339 = vadd.xlane.f32.xlu0 %v300
        %v340 = vpop.xlane.xlu0 %339
        %341 = vadd.xlane.f32.xlu0 %v301
        %v342 = vpop.xlane.xlu0 %341
        %343 = vadd.xlane.f32.xlu0 %v302
        %v344 = vpop.xlane.xlu0 %343
        %345 = vadd.xlane.f32.xlu0 %v303
        %v346 = vpop.xlane.xlu0 %345
        %347 = vadd.xlane.f32.xlu0 %v304
        %v348 = vpop.xlane.xlu0 %347
        %349 = vadd.xlane.f32.xlu0 %v305
        %v350 = vpop.xlane.xlu0 %349
        %351 = vadd.xlane.f32.xlu0 %v306
        %v352 = vpop.xlane.xlu0 %351
        %353 = vadd.xlane.f32.xlu0 %v307
        %v354 = vpop.xlane.xlu0 %353
        %355 = vadd.xlane.f32.xlu0 %v308
        %v356 = vpop.xlane.xlu0 %355
        %357 = vadd.xlane.f32.xlu0 %v309
        %v358 = vpop.xlane.xlu0 %357
        %359 = vadd.xlane.f32.xlu0 %v310
        %v360 = vpop.xlane.xlu0 %359
        %361 = vadd.xlane.f32.xlu0 %v311
        %v362 = vpop.xlane.xlu0 %361
        %363 = vadd.xlane.f32.xlu0 %v312
        %v364 = vpop.xlane.xlu0 %363
        %365 = vadd.xlane.f32.xlu0 %v313
        %v366 = vpop.xlane.xlu0 %365
        %367 = vadd.xlane.f32.xlu0 %v314
        %v368 = vpop.xlane.xlu0 %367
        %369 = vadd.xlane.f32.xlu0 %v315
        %v370 = vpop.xlane.xlu0 %369
        %371 = vadd.xlane.f32.xlu0 %v316
        %v372 = vpop.xlane.xlu0 %371
        %373 = vadd.xlane.f32.xlu0 %v317
        %v374 = vpop.xlane.xlu0 %373
        %375 = vadd.xlane.f32.xlu0 %v318
        %v376 = vpop.xlane.xlu0 %375
        %377 = vadd.xlane.f32.xlu0 %v319
        %v378 = vpop.xlane.xlu0 %377
        %379 = vadd.xlane.f32.xlu0 %v320
        %v380 = vpop.xlane.xlu0 %379
        %381 = vadd.xlane.f32.xlu0 %v321
        %v382 = vpop.xlane.xlu0 %381
        %383 = vadd.xlane.f32.xlu0 %v322
        %v384 = vpop.xlane.xlu0 %383
        %385 = vadd.xlane.f32.xlu0 %v323
        %v386 = vpop.xlane.xlu0 %385
        %387 = vadd.xlane.f32.xlu0 %v324
        %v388 = vpop.xlane.xlu0 %387
        %v389 = vmul.f32 %v293, %v293
        %v390 = vmul.f32 %v294, %v294
        %v391 = vmul.f32 %v295, %v295
        %v392 = vmul.f32 %v296, %v296
        %v393 = vmul.f32 %v297, %v297
        %v394 = vmul.f32 %v298, %v298
        %v395 = vmul.f32 %v299, %v299
        %v396 = vmul.f32 %v300, %v300
        %v397 = vmul.f32 %v301, %v301
        %v398 = vmul.f32 %v302, %v302
        %v399 = vmul.f32 %v303, %v303
        %v400 = vmul.f32 %v304, %v304
        %v401 = vmul.f32 %v305, %v305
        %v402 = vmul.f32 %v306, %v306
        %v403 = vmul.f32 %v307, %v307
        %v404 = vmul.f32 %v308, %v308
        %v405 = vmul.f32 %v309, %v309
        %v406 = vmul.f32 %v310, %v310
        %v407 = vmul.f32 %v311, %v311
        %v408 = vmul.f32 %v312, %v312
        %v409 = vmul.f32 %v313, %v313
        %v410 = vmul.f32 %v314, %v314
        %v411 = vmul.f32 %v315, %v315
        %v412 = vmul.f32 %v316, %v316
        %v413 = vmul.f32 %v317, %v317
        %v414 = vmul.f32 %v318, %v318
        %v415 = vmul.f32 %v319, %v319
        %v416 = vmul.f32 %v320, %v320
        %v417 = vmul.f32 %v321, %v321
        %v418 = vmul.f32 %v322, %v322
        %v419 = vmul.f32 %v323, %v323
        %v420 = vmul.f32 %v324, %v324
        %421 = vadd.xlane.f32.xlu0 %v389
        %v422 = vpop.xlane.xlu0 %421
        %423 = vadd.xlane.f32.xlu0 %v390
        %v424 = vpop.xlane.xlu0 %423
        %425 = vadd.xlane.f32.xlu0 %v391
        %v426 = vpop.xlane.xlu0 %425
        %427 = vadd.xlane.f32.xlu0 %v392
        %v428 = vpop.xlane.xlu0 %427
        %429 = vadd.xlane.f32.xlu0 %v393
        %v430 = vpop.xlane.xlu0 %429
        %431 = vadd.xlane.f32.xlu0 %v394
        %v432 = vpop.xlane.xlu0 %431
        %433 = vadd.xlane.f32.xlu0 %v395
        %v434 = vpop.xlane.xlu0 %433
        %435 = vadd.xlane.f32.xlu0 %v396
        %v436 = vpop.xlane.xlu0 %435
        %437 = vadd.xlane.f32.xlu0 %v397
        %v438 = vpop.xlane.xlu0 %437
        %439 = vadd.xlane.f32.xlu0 %v398
        %v440 = vpop.xlane.xlu0 %439
        %441 = vadd.xlane.f32.xlu0 %v399
        %v442 = vpop.xlane.xlu0 %441
        %443 = vadd.xlane.f32.xlu0 %v400
        %v444 = vpop.xlane.xlu0 %443
        %445 = vadd.xlane.f32.xlu0 %v401
        %v446 = vpop.xlane.xlu0 %445
        %447 = vadd.xlane.f32.xlu0 %v402
        %v448 = vpop.xlane.xlu0 %447
        %449 = vadd.xlane.f32.xlu0 %v403
        %v450 = vpop.xlane.xlu0 %449
        %451 = vadd.xlane.f32.xlu0 %v404
        %v452 = vpop.xlane.xlu0 %451
        %453 = vadd.xlane.f32.xlu0 %v405
        %v454 = vpop.xlane.xlu0 %453
        %455 = vadd.xlane.f32.xlu0 %v406
        %v456 = vpop.xlane.xlu0 %455
        %457 = vadd.xlane.f32.xlu0 %v407
        %v458 = vpop.xlane.xlu0 %457
        %459 = vadd.xlane.f32.xlu0 %v408
        %v460 = vpop.xlane.xlu0 %459
        %461 = vadd.xlane.f32.xlu0 %v409
        %v462 = vpop.xlane.xlu0 %461
        %463 = vadd.xlane.f32.xlu0 %v410
        %v464 = vpop.xlane.xlu0 %463
        %465 = vadd.xlane.f32.xlu0 %v411
        %v466 = vpop.xlane.xlu0 %465
        %467 = vadd.xlane.f32.xlu0 %v412
        %v468 = vpop.xlane.xlu0 %467
        %469 = vadd.xlane.f32.xlu0 %v413
        %v470 = vpop.xlane.xlu0 %469
        %471 = vadd.xlane.f32.xlu0 %v414
        %v472 = vpop.xlane.xlu0 %471
        %473 = vadd.xlane.f32.xlu0 %v415
        %v474 = vpop.xlane.xlu0 %473
        %475 = vadd.xlane.f32.xlu0 %v416
        %v476 = vpop.xlane.xlu0 %475
        %477 = vadd.xlane.f32.xlu0 %v417
        %v478 = vpop.xlane.xlu0 %477
        %479 = vadd.xlane.f32.xlu0 %v418
        %v480 = vpop.xlane.xlu0 %479
        %481 = vadd.xlane.f32.xlu0 %v419
        %v482 = vpop.xlane.xlu0 %481
        %483 = vadd.xlane.f32.xlu0 %v420
        %v484 = vpop.xlane.xlu0 %483
        %v485 = vmul.f32 %v326, 0.0078125
        %v486 = vmul.f32 %v328, 0.0078125
        %v487 = vmul.f32 %v330, 0.0078125
        %v488 = vmul.f32 %v332, 0.0078125
        %v489 = vmul.f32 %v334, 0.0078125
        %v490 = vmul.f32 %v336, 0.0078125
        %v491 = vmul.f32 %v338, 0.0078125
        %v492 = vmul.f32 %v340, 0.0078125
        %v493 = vmul.f32 %v342, 0.0078125
        %v494 = vmul.f32 %v344, 0.0078125
        %v495 = vmul.f32 %v346, 0.0078125
        %v496 = vmul.f32 %v348, 0.0078125
        %v497 = vmul.f32 %v350, 0.0078125
        %v498 = vmul.f32 %v352, 0.0078125
        %v499 = vmul.f32 %v354, 0.0078125
        %v500 = vmul.f32 %v356, 0.0078125
        %v501 = vmul.f32 %v358, 0.0078125
        %v502 = vmul.f32 %v360, 0.0078125
        %v503 = vmul.f32 %v362, 0.0078125
        %v504 = vmul.f32 %v364, 0.0078125
        %v505 = vmul.f32 %v366, 0.0078125
        %v506 = vmul.f32 %v368, 0.0078125
        %v507 = vmul.f32 %v370, 0.0078125
        %v508 = vmul.f32 %v372, 0.0078125
        %v509 = vmul.f32 %v374, 0.0078125
        %v510 = vmul.f32 %v376, 0.0078125
        %v511 = vmul.f32 %v378, 0.0078125
        %v512 = vmul.f32 %v380, 0.0078125
        %v513 = vmul.f32 %v382, 0.0078125
        %v514 = vmul.f32 %v384, 0.0078125
        %v515 = vmul.f32 %v386, 0.0078125
        %v516 = vmul.f32 %v388, 0.0078125
        %v517 = vmul.f32 %v326, %v485
        %v518 = vmul.f32 %v328, %v486
        %v519 = vmul.f32 %v330, %v487
        %v520 = vmul.f32 %v332, %v488
        %v521 = vmul.f32 %v334, %v489
        %v522 = vmul.f32 %v336, %v490
        %v523 = vmul.f32 %v338, %v491
        %v524 = vmul.f32 %v340, %v492
        %v525 = vmul.f32 %v342, %v493
        %v526 = vmul.f32 %v344, %v494
        %v527 = vmul.f32 %v346, %v495
        %v528 = vmul.f32 %v348, %v496
        %v529 = vmul.f32 %v350, %v497
        %v530 = vmul.f32 %v352, %v498
        %v531 = vmul.f32 %v354, %v499
        %v532 = vmul.f32 %v356, %v500
        %v533 = vmul.f32 %v358, %v501
        %v534 = vmul.f32 %v360, %v502
        %v535 = vmul.f32 %v362, %v503
        %v536 = vmul.f32 %v364, %v504
        %v537 = vmul.f32 %v366, %v505
        %v538 = vmul.f32 %v368, %v506
        %v539 = vmul.f32 %v370, %v507
        %v540 = vmul.f32 %v372, %v508
        %v541 = vmul.f32 %v374, %v509
        %v542 = vmul.f32 %v376, %v510
        %v543 = vmul.f32 %v378, %v511
        %v544 = vmul.f32 %v380, %v512
        %v545 = vmul.f32 %v382, %v513
        %v546 = vmul.f32 %v384, %v514
        %v547 = vmul.f32 %v386, %v515
        %v548 = vmul.f32 %v388, %v516
        %v549 = vsub.f32 %v422, %v517
        %v550 = vsub.f32 %v424, %v518
        %v551 = vsub.f32 %v426, %v519
        %v552 = vsub.f32 %v428, %v520
        %v553 = vsub.f32 %v430, %v521
        %v554 = vsub.f32 %v432, %v522
        %v555 = vsub.f32 %v434, %v523
        %v556 = vsub.f32 %v436, %v524
        %v557 = vsub.f32 %v438, %v525
        %v558 = vsub.f32 %v440, %v526
        %v559 = vsub.f32 %v442, %v527
        %v560 = vsub.f32 %v444, %v528
        %v561 = vsub.f32 %v446, %v529
        %v562 = vsub.f32 %v448, %v530
        %v563 = vsub.f32 %v450, %v531
        %v564 = vsub.f32 %v452, %v532
        %v565 = vsub.f32 %v454, %v533
        %v566 = vsub.f32 %v456, %v534
        %v567 = vsub.f32 %v458, %v535
        %v568 = vsub.f32 %v460, %v536
        %v569 = vsub.f32 %v462, %v537
        %v570 = vsub.f32 %v464, %v538
        %v571 = vsub.f32 %v466, %v539
        %v572 = vsub.f32 %v468, %v540
        %v573 = vsub.f32 %v470, %v541
        %v574 = vsub.f32 %v472, %v542
        %v575 = vsub.f32 %v474, %v543
        %v576 = vsub.f32 %v476, %v544
        %v577 = vsub.f32 %v478, %v545
        %v578 = vsub.f32 %v480, %v546
        %v579 = vsub.f32 %v482, %v547
        %v580 = vsub.f32 %v484, %v548
        %v581 = vmul.f32 %v549, 0.007874016
        %v582 = vmul.f32 %v550, 0.007874016
        %v583 = vmul.f32 %v551, 0.007874016
        %v584 = vmul.f32 %v552, 0.007874016
        %v585 = vmul.f32 %v553, 0.007874016
        %v586 = vmul.f32 %v554, 0.007874016
        %v587 = vmul.f32 %v555, 0.007874016
        %v588 = vmul.f32 %v556, 0.007874016
        %v589 = vmul.f32 %v557, 0.007874016
        %v590 = vmul.f32 %v558, 0.007874016
        %v591 = vmul.f32 %v559, 0.007874016
        %v592 = vmul.f32 %v560, 0.007874016
        %v593 = vmul.f32 %v561, 0.007874016
        %v594 = vmul.f32 %v562, 0.007874016
        %v595 = vmul.f32 %v563, 0.007874016
        %v596 = vmul.f32 %v564, 0.007874016
        %v597 = vmul.f32 %v565, 0.007874016
        %v598 = vmul.f32 %v566, 0.007874016
        %v599 = vmul.f32 %v567, 0.007874016
        %v600 = vmul.f32 %v568, 0.007874016
        %v601 = vmul.f32 %v569, 0.007874016
        %v602 = vmul.f32 %v570, 0.007874016
        %v603 = vmul.f32 %v571, 0.007874016
        %v604 = vmul.f32 %v572, 0.007874016
        %v605 = vmul.f32 %v573, 0.007874016
        %v606 = vmul.f32 %v574, 0.007874016
        %v607 = vmul.f32 %v575, 0.007874016
        %v608 = vmul.f32 %v576, 0.007874016
        %v609 = vmul.f32 %v577, 0.007874016
        %v610 = vmul.f32 %v578, 0.007874016
        %v611 = vmul.f32 %v579, 0.007874016
        %v612 = vmul.f32 %v580, 0.007874016
        %v613 = vmax.f32 %v581, 0.0
        %v614 = vmax.f32 %v582, 0.0
        %v615 = vmax.f32 %v583, 0.0
        %v616 = vmax.f32 %v584, 0.0
        %v617 = vmax.f32 %v585, 0.0
        %v618 = vmax.f32 %v586, 0.0
        %v619 = vmax.f32 %v587, 0.0
        %v620 = vmax.f32 %v588, 0.0
        %v621 = vmax.f32 %v589, 0.0
        %v622 = vmax.f32 %v590, 0.0
        %v623 = vmax.f32 %v591, 0.0
        %v624 = vmax.f32 %v592, 0.0
        %v625 = vmax.f32 %v593, 0.0
        %v626 = vmax.f32 %v594, 0.0
        %v627 = vmax.f32 %v595, 0.0
        %v628 = vmax.f32 %v596, 0.0
        %v629 = vmax.f32 %v597, 0.0
        %v630 = vmax.f32 %v598, 0.0
        %v631 = vmax.f32 %v599, 0.0
        %v632 = vmax.f32 %v600, 0.0
        %v633 = vmax.f32 %v601, 0.0
        %v634 = vmax.f32 %v602, 0.0
        %v635 = vmax.f32 %v603, 0.0
        %v636 = vmax.f32 %v604, 0.0
        %v637 = vmax.f32 %v605, 0.0
        %v638 = vmax.f32 %v606, 0.0
        %v639 = vmax.f32 %v607, 0.0
        %v640 = vmax.f32 %v608, 0.0
        %v641 = vmax.f32 %v609, 0.0
        %v642 = vmax.f32 %v610, 0.0
        %v643 = vmax.f32 %v611, 0.0
        %v644 = vmax.f32 %v612, 0.0
        %v645 = vrsqrt.pop %v613
        %v646 = vmul.f32 %v613, %v645
        %vm647 = vcmp.eq.f32.partialorder %v613, inf
        %v648 = vsel %vm647, %v613, %v646
        %vm649 = vcmp.eq.f32.partialorder %v613, 0.0
        %v650 = vand.u32 %v613, 2147483648
        %v651 = vsel %vm649, %v650, %v648
        %v652 = vrsqrt.pop %v614
        %v653 = vmul.f32 %v614, %v652
        %vm654 = vcmp.eq.f32.partialorder %v614, inf
        %v655 = vsel %vm654, %v614, %v653
        %vm656 = vcmp.eq.f32.partialorder %v614, 0.0
        %v657 = vand.u32 %v614, 2147483648
        %v658 = vsel %vm656, %v657, %v655
        %v659 = vrsqrt.pop %v615
        %v660 = vmul.f32 %v615, %v659
        %vm661 = vcmp.eq.f32.partialorder %v615, inf
        %v662 = vsel %vm661, %v615, %v660
        %vm663 = vcmp.eq.f32.partialorder %v615, 0.0
        %v664 = vand.u32 %v615, 2147483648
        %v665 = vsel %vm663, %v664, %v662
        %v666 = vrsqrt.pop %v616
        %v667 = vmul.f32 %v616, %v666
        %vm668 = vcmp.eq.f32.partialorder %v616, inf
        %v669 = vsel %vm668, %v616, %v667
        %vm670 = vcmp.eq.f32.partialorder %v616, 0.0
        %v671 = vand.u32 %v616, 2147483648
        %v672 = vsel %vm670, %v671, %v669
        %v673 = vrsqrt.pop %v617
        %v674 = vmul.f32 %v617, %v673
        %vm675 = vcmp.eq.f32.partialorder %v617, inf
        %v676 = vsel %vm675, %v617, %v674
        %vm677 = vcmp.eq.f32.partialorder %v617, 0.0
        %v678 = vand.u32 %v617, 2147483648
        %v679 = vsel %vm677, %v678, %v676
        %v680 = vrsqrt.pop %v618
        %v681 = vmul.f32 %v618, %v680
        %vm682 = vcmp.eq.f32.partialorder %v618, inf
        %v683 = vsel %vm682, %v618, %v681
        %vm684 = vcmp.eq.f32.partialorder %v618, 0.0
        %v685 = vand.u32 %v618, 2147483648
        %v686 = vsel %vm684, %v685, %v683
        %v687 = vrsqrt.pop %v619
        %v688 = vmul.f32 %v619, %v687
        %vm689 = vcmp.eq.f32.partialorder %v619, inf
        %v690 = vsel %vm689, %v619, %v688
        %vm691 = vcmp.eq.f32.partialorder %v619, 0.0
        %v692 = vand.u32 %v619, 2147483648
        %v693 = vsel %vm691, %v692, %v690
        %v694 = vrsqrt.pop %v620
        %v695 = vmul.f32 %v620, %v694
        %vm696 = vcmp.eq.f32.partialorder %v620, inf
        %v697 = vsel %vm696, %v620, %v695
        %vm698 = vcmp.eq.f32.partialorder %v620, 0.0
        %v699 = vand.u32 %v620, 2147483648
        %v700 = vsel %vm698, %v699, %v697
        %v701 = vrsqrt.pop %v621
        %v702 = vmul.f32 %v621, %v701
        %vm703 = vcmp.eq.f32.partialorder %v621, inf
        %v704 = vsel %vm703, %v621, %v702
        %vm705 = vcmp.eq.f32.partialorder %v621, 0.0
        %v706 = vand.u32 %v621, 2147483648
        %v707 = vsel %vm705, %v706, %v704
        %v708 = vrsqrt.pop %v622
        %v709 = vmul.f32 %v622, %v708
        %vm710 = vcmp.eq.f32.partialorder %v622, inf
        %v711 = vsel %vm710, %v622, %v709
        %vm712 = vcmp.eq.f32.partialorder %v622, 0.0
        %v713 = vand.u32 %v622, 2147483648
        %v714 = vsel %vm712, %v713, %v711
        %v715 = vrsqrt.pop %v623
        %v716 = vmul.f32 %v623, %v715
        %vm717 = vcmp.eq.f32.partialorder %v623, inf
        %v718 = vsel %vm717, %v623, %v716
        %vm719 = vcmp.eq.f32.partialorder %v623, 0.0
        %v720 = vand.u32 %v623, 2147483648
        %v721 = vsel %vm719, %v720, %v718
        %v722 = vrsqrt.pop %v624
        %v723 = vmul.f32 %v624, %v722
        %vm724 = vcmp.eq.f32.partialorder %v624, inf
        %v725 = vsel %vm724, %v624, %v723
        %vm726 = vcmp.eq.f32.partialorder %v624, 0.0
        %v727 = vand.u32 %v624, 2147483648
        %v728 = vsel %vm726, %v727, %v725
        %v729 = vrsqrt.pop %v625
        %v730 = vmul.f32 %v625, %v729
        %vm731 = vcmp.eq.f32.partialorder %v625, inf
        %v732 = vsel %vm731, %v625, %v730
        %vm733 = vcmp.eq.f32.partialorder %v625, 0.0
        %v734 = vand.u32 %v625, 2147483648
        %v735 = vsel %vm733, %v734, %v732
        %v736 = vrsqrt.pop %v626
        %v737 = vmul.f32 %v626, %v736
        %vm738 = vcmp.eq.f32.partialorder %v626, inf
        %v739 = vsel %vm738, %v626, %v737
        %vm740 = vcmp.eq.f32.partialorder %v626, 0.0
        %v741 = vand.u32 %v626, 2147483648
        %v742 = vsel %vm740, %v741, %v739
        %v743 = vrsqrt.pop %v627
        %v744 = vmul.f32 %v627, %v743
        %vm745 = vcmp.eq.f32.partialorder %v627, inf
        %v746 = vsel %vm745, %v627, %v744
        %vm747 = vcmp.eq.f32.partialorder %v627, 0.0
        %v748 = vand.u32 %v627, 2147483648
        %v749 = vsel %vm747, %v748, %v746
        %v750 = vrsqrt.pop %v628
        %v751 = vmul.f32 %v628, %v750
        %vm752 = vcmp.eq.f32.partialorder %v628, inf
        %v753 = vsel %vm752, %v628, %v751
        %vm754 = vcmp.eq.f32.partialorder %v628, 0.0
        %v755 = vand.u32 %v628, 2147483648
        %v756 = vsel %vm754, %v755, %v753
        %v757 = vrsqrt.pop %v629
        %v758 = vmul.f32 %v629, %v757
        %vm759 = vcmp.eq.f32.partialorder %v629, inf
        %v760 = vsel %vm759, %v629, %v758
        %vm761 = vcmp.eq.f32.partialorder %v629, 0.0
        %v762 = vand.u32 %v629, 2147483648
        %v763 = vsel %vm761, %v762, %v760
        %v764 = vrsqrt.pop %v630
        %v765 = vmul.f32 %v630, %v764
        %vm766 = vcmp.eq.f32.partialorder %v630, inf
        %v767 = vsel %vm766, %v630, %v765
        %vm768 = vcmp.eq.f32.partialorder %v630, 0.0
        %v769 = vand.u32 %v630, 2147483648
        %v770 = vsel %vm768, %v769, %v767
        %v771 = vrsqrt.pop %v631
        %v772 = vmul.f32 %v631, %v771
        %vm773 = vcmp.eq.f32.partialorder %v631, inf
        %v774 = vsel %vm773, %v631, %v772
        %vm775 = vcmp.eq.f32.partialorder %v631, 0.0
        %v776 = vand.u32 %v631, 2147483648
        %v777 = vsel %vm775, %v776, %v774
        %v778 = vrsqrt.pop %v632
        %v779 = vmul.f32 %v632, %v778
        %vm780 = vcmp.eq.f32.partialorder %v632, inf
        %v781 = vsel %vm780, %v632, %v779
        %vm782 = vcmp.eq.f32.partialorder %v632, 0.0
        %v783 = vand.u32 %v632, 2147483648
        %v784 = vsel %vm782, %v783, %v781
        %v785 = vrsqrt.pop %v633
        %v786 = vmul.f32 %v633, %v785
        %vm787 = vcmp.eq.f32.partialorder %v633, inf
        %v788 = vsel %vm787, %v633, %v786
        %vm789 = vcmp.eq.f32.partialorder %v633, 0.0
        %v790 = vand.u32 %v633, 2147483648
        %v791 = vsel %vm789, %v790, %v788
        %v792 = vrsqrt.pop %v634
        %v793 = vmul.f32 %v634, %v792
        %vm794 = vcmp.eq.f32.partialorder %v634, inf
        %v795 = vsel %vm794, %v634, %v793
        %vm796 = vcmp.eq.f32.partialorder %v634, 0.0
        %v797 = vand.u32 %v634, 2147483648
        %v798 = vsel %vm796, %v797, %v795
        %v799 = vrsqrt.pop %v635
        %v800 = vmul.f32 %v635, %v799
        %vm801 = vcmp.eq.f32.partialorder %v635, inf
        %v802 = vsel %vm801, %v635, %v800
        %vm803 = vcmp.eq.f32.partialorder %v635, 0.0
        %v804 = vand.u32 %v635, 2147483648
        %v805 = vsel %vm803, %v804, %v802
        %v806 = vrsqrt.pop %v636
        %v807 = vmul.f32 %v636, %v806
        %vm808 = vcmp.eq.f32.partialorder %v636, inf
        %v809 = vsel %vm808, %v636, %v807
        %vm810 = vcmp.eq.f32.partialorder %v636, 0.0
        %v811 = vand.u32 %v636, 2147483648
        %v812 = vsel %vm810, %v811, %v809
        %v813 = vrsqrt.pop %v637
        %v814 = vmul.f32 %v637, %v813
        %vm815 = vcmp.eq.f32.partialorder %v637, inf
        %v816 = vsel %vm815, %v637, %v814
        %vm817 = vcmp.eq.f32.partialorder %v637, 0.0
        %v818 = vand.u32 %v637, 2147483648
        %v819 = vsel %vm817, %v818, %v816
        %v820 = vrsqrt.pop %v638
        %v821 = vmul.f32 %v638, %v820
        %vm822 = vcmp.eq.f32.partialorder %v638, inf
        %v823 = vsel %vm822, %v638, %v821
        %vm824 = vcmp.eq.f32.partialorder %v638, 0.0
        %v825 = vand.u32 %v638, 2147483648
        %v826 = vsel %vm824, %v825, %v823
        %v827 = vrsqrt.pop %v639
        %v828 = vmul.f32 %v639, %v827
        %vm829 = vcmp.eq.f32.partialorder %v639, inf
        %v830 = vsel %vm829, %v639, %v828
        %vm831 = vcmp.eq.f32.partialorder %v639, 0.0
        %v832 = vand.u32 %v639, 2147483648
        %v833 = vsel %vm831, %v832, %v830
        %v834 = vrsqrt.pop %v640
        %v835 = vmul.f32 %v640, %v834
        %vm836 = vcmp.eq.f32.partialorder %v640, inf
        %v837 = vsel %vm836, %v640, %v835
        %vm838 = vcmp.eq.f32.partialorder %v640, 0.0
        %v839 = vand.u32 %v640, 2147483648
        %v840 = vsel %vm838, %v839, %v837
        %v841 = vrsqrt.pop %v641
        %v842 = vmul.f32 %v641, %v841
        %vm843 = vcmp.eq.f32.partialorder %v641, inf
        %v844 = vsel %vm843, %v641, %v842
        %vm845 = vcmp.eq.f32.partialorder %v641, 0.0
        %v846 = vand.u32 %v641, 2147483648
        %v847 = vsel %vm845, %v846, %v844
        %v848 = vrsqrt.pop %v642
        %v849 = vmul.f32 %v642, %v848
        %vm850 = vcmp.eq.f32.partialorder %v642, inf
        %v851 = vsel %vm850, %v642, %v849
        %vm852 = vcmp.eq.f32.partialorder %v642, 0.0
        %v853 = vand.u32 %v642, 2147483648
        %v854 = vsel %vm852, %v853, %v851
        %v855 = vrsqrt.pop %v643
        %v856 = vmul.f32 %v643, %v855
        %vm857 = vcmp.eq.f32.partialorder %v643, inf
        %v858 = vsel %vm857, %v643, %v856
        %vm859 = vcmp.eq.f32.partialorder %v643, 0.0
        %v860 = vand.u32 %v643, 2147483648
        %v861 = vsel %vm859, %v860, %v858
        %v862 = vrsqrt.pop %v644
        %v863 = vmul.f32 %v644, %v862
        %vm864 = vcmp.eq.f32.partialorder %v644, inf
        %v865 = vsel %vm864, %v644, %v863
        %vm866 = vcmp.eq.f32.partialorder %v644, 0.0
        %v867 = vand.u32 %v644, 2147483648
        %v868 = vsel %vm866, %v867, %v865
        %v869 = vadd.f32 %v651, 1e-06
        %v870 = vadd.f32 %v658, 1e-06
        %v871 = vadd.f32 %v665, 1e-06
        %v872 = vadd.f32 %v672, 1e-06
        %v873 = vadd.f32 %v679, 1e-06
        %v874 = vadd.f32 %v686, 1e-06
        %v875 = vadd.f32 %v693, 1e-06
        %v876 = vadd.f32 %v700, 1e-06
        %v877 = vadd.f32 %v707, 1e-06
        %v878 = vadd.f32 %v714, 1e-06
        %v879 = vadd.f32 %v721, 1e-06
        %v880 = vadd.f32 %v728, 1e-06
        %v881 = vadd.f32 %v735, 1e-06
        %v882 = vadd.f32 %v742, 1e-06
        %v883 = vadd.f32 %v749, 1e-06
        %v884 = vadd.f32 %v756, 1e-06
        %v885 = vadd.f32 %v763, 1e-06
        %v886 = vadd.f32 %v770, 1e-06
        %v887 = vadd.f32 %v777, 1e-06
        %v888 = vadd.f32 %v784, 1e-06
        %v889 = vadd.f32 %v791, 1e-06
        %v890 = vadd.f32 %v798, 1e-06
        %v891 = vadd.f32 %v805, 1e-06
        %v892 = vadd.f32 %v812, 1e-06
        %v893 = vadd.f32 %v819, 1e-06
        %v894 = vadd.f32 %v826, 1e-06
        %v895 = vadd.f32 %v833, 1e-06
        %v896 = vadd.f32 %v840, 1e-06
        %v897 = vadd.f32 %v847, 1e-06
        %v898 = vadd.f32 %v854, 1e-06
        %v899 = vadd.f32 %v861, 1e-06
        %v900 = vadd.f32 %v868, 1e-06
        %v901 = vrcp.pop %v869
        %v902 = vrcp.pop %v870
        %v903 = vrcp.pop %v871
        %v904 = vrcp.pop %v872
        %v905 = vrcp.pop %v873
        %v906 = vrcp.pop %v874
        %v907 = vrcp.pop %v875
        %v908 = vrcp.pop %v876
        %v909 = vrcp.pop %v877
        %v910 = vrcp.pop %v878
        %v911 = vrcp.pop %v879
        %v912 = vrcp.pop %v880
        %v913 = vrcp.pop %v881
        %v914 = vrcp.pop %v882
        %v915 = vrcp.pop %v883
        %v916 = vrcp.pop %v884
        %v917 = vrcp.pop %v885
        %v918 = vrcp.pop %v886
        %v919 = vrcp.pop %v887
        %v920 = vrcp.pop %v888
        %v921 = vrcp.pop %v889
        %v922 = vrcp.pop %v890
        %v923 = vrcp.pop %v891
        %v924 = vrcp.pop %v892
        %v925 = vrcp.pop %v893
        %v926 = vrcp.pop %v894
        %v927 = vrcp.pop %v895
        %v928 = vrcp.pop %v896
        %v929 = vrcp.pop %v897
        %v930 = vrcp.pop %v898
        %v931 = vrcp.pop %v899
        %v932 = vrcp.pop %v900
        %v933 = vsub.f32 %v293, %v485
        %v934 = vsub.f32 %v294, %v486
        %v935 = vsub.f32 %v295, %v487
        %v936 = vsub.f32 %v296, %v488
        %v937 = vsub.f32 %v297, %v489
        %v938 = vsub.f32 %v298, %v490
        %v939 = vsub.f32 %v299, %v491
        %v940 = vsub.f32 %v300, %v492
        %v941 = vsub.f32 %v301, %v493
        %v942 = vsub.f32 %v302, %v494
        %v943 = vsub.f32 %v303, %v495
        %v944 = vsub.f32 %v304, %v496
        %v945 = vsub.f32 %v305, %v497
        %v946 = vsub.f32 %v306, %v498
        %v947 = vsub.f32 %v307, %v499
        %v948 = vsub.f32 %v308, %v500
        %v949 = vsub.f32 %v309, %v501
        %v950 = vsub.f32 %v310, %v502
        %v951 = vsub.f32 %v311, %v503
        %v952 = vsub.f32 %v312, %v504
        %v953 = vsub.f32 %v313, %v505
        %v954 = vsub.f32 %v314, %v506
        %v955 = vsub.f32 %v315, %v507
        %v956 = vsub.f32 %v316, %v508
        %v957 = vsub.f32 %v317, %v509
        %v958 = vsub.f32 %v318, %v510
        %v959 = vsub.f32 %v319, %v511
        %v960 = vsub.f32 %v320, %v512
        %v961 = vsub.f32 %v321, %v513
        %v962 = vsub.f32 %v322, %v514
        %v963 = vsub.f32 %v323, %v515
        %v964 = vsub.f32 %v324, %v516
        %v965 = vld [vmem:[%s1] sm:$0x1]
        %v967 = vlaneseq
        %v968 = vshrl.u32 %v967, 7
        %v969 = vsub.s32 0, %v968
        %v970 = vrot.slane %v965, %v969
        %v972 = vmul.f32 %v901, %v970
        %v973 = vmul.f32 %v902, %v970
        %v974 = vmul.f32 %v903, %v970
        %v975 = vmul.f32 %v904, %v970
        %v976 = vmul.f32 %v905, %v970
        %v977 = vmul.f32 %v906, %v970
        %v978 = vmul.f32 %v907, %v970
        %v979 = vmul.f32 %v908, %v970
        %v980 = vmul.f32 %v909, %v970
        %v981 = vmul.f32 %v910, %v970
        %v982 = vmul.f32 %v911, %v970
        %v983 = vmul.f32 %v912, %v970
        %v984 = vmul.f32 %v913, %v970
        %v985 = vmul.f32 %v914, %v970
        %v986 = vmul.f32 %v915, %v970
        %v987 = vmul.f32 %v916, %v970
        %v988 = vmul.f32 %v917, %v970
        %v989 = vmul.f32 %v918, %v970
        %v990 = vmul.f32 %v919, %v970
        %v991 = vmul.f32 %v920, %v970
        %v992 = vmul.f32 %v921, %v970
        %v993 = vmul.f32 %v922, %v970
        %v994 = vmul.f32 %v923, %v970
        %v995 = vmul.f32 %v924, %v970
        %v996 = vmul.f32 %v925, %v970
        %v997 = vmul.f32 %v926, %v970
        %v998 = vmul.f32 %v927, %v970
        %v999 = vmul.f32 %v928, %v970
        %v1000 = vmul.f32 %v929, %v970
        %v1001 = vmul.f32 %v930, %v970
        %v1002 = vmul.f32 %v931, %v970
        %v1003 = vmul.f32 %v932, %v970
        %v1004 = vmul.f32 %v933, %v972
        %v1005 = vmul.f32 %v934, %v973
        %v1006 = vmul.f32 %v935, %v974
        %v1007 = vmul.f32 %v936, %v975
        %v1008 = vmul.f32 %v937, %v976
        %v1009 = vmul.f32 %v938, %v977
        %v1010 = vmul.f32 %v939, %v978
        %v1011 = vmul.f32 %v940, %v979
        %v1012 = vmul.f32 %v941, %v980
        %v1013 = vmul.f32 %v942, %v981
        %v1014 = vmul.f32 %v943, %v982
        %v1015 = vmul.f32 %v944, %v983
        %v1016 = vmul.f32 %v945, %v984
        %v1017 = vmul.f32 %v946, %v985
        %v1018 = vmul.f32 %v947, %v986
        %v1019 = vmul.f32 %v948, %v987
        %v1020 = vmul.f32 %v949, %v988
        %v1021 = vmul.f32 %v950, %v989
        %v1022 = vmul.f32 %v951, %v990
        %v1023 = vmul.f32 %v952, %v991
        %v1024 = vmul.f32 %v953, %v992
        %v1025 = vmul.f32 %v954, %v993
        %v1026 = vmul.f32 %v955, %v994
        %v1027 = vmul.f32 %v956, %v995
        %v1028 = vmul.f32 %v957, %v996
        %v1029 = vmul.f32 %v958, %v997
        %v1030 = vmul.f32 %v959, %v998
        %v1031 = vmul.f32 %v960, %v999
        %v1032 = vmul.f32 %v961, %v1000
        %v1033 = vmul.f32 %v962, %v1001
        %v1034 = vmul.f32 %v963, %v1002
        %v1035 = vmul.f32 %v964, %v1003
        %v1036 = vld [vmem:[%s2] sm:$0x1]
        %v1038 = vlaneseq
        %v1039 = vshrl.u32 %v1038, 7
        %v1040 = vsub.s32 0, %v1039
        %v1041 = vrot.slane %v1036, %v1040
        %v1043 = vadd.f32 %v1004, %v1041
        %v1044 = vadd.f32 %v1005, %v1041
        %v1045 = vadd.f32 %v1006, %v1041
        %v1046 = vadd.f32 %v1007, %v1041
        %v1047 = vadd.f32 %v1008, %v1041
        %v1048 = vadd.f32 %v1009, %v1041
        %v1049 = vadd.f32 %v1010, %v1041
        %v1050 = vadd.f32 %v1011, %v1041
        %v1051 = vadd.f32 %v1012, %v1041
        %v1052 = vadd.f32 %v1013, %v1041
        %v1053 = vadd.f32 %v1014, %v1041
        %v1054 = vadd.f32 %v1015, %v1041
        %v1055 = vadd.f32 %v1016, %v1041
        %v1056 = vadd.f32 %v1017, %v1041
        %v1057 = vadd.f32 %v1018, %v1041
        %v1058 = vadd.f32 %v1019, %v1041
        %v1059 = vadd.f32 %v1020, %v1041
        %v1060 = vadd.f32 %v1021, %v1041
        %v1061 = vadd.f32 %v1022, %v1041
        %v1062 = vadd.f32 %v1023, %v1041
        %v1063 = vadd.f32 %v1024, %v1041
        %v1064 = vadd.f32 %v1025, %v1041
        %v1065 = vadd.f32 %v1026, %v1041
        %v1066 = vadd.f32 %v1027, %v1041
        %v1067 = vadd.f32 %v1028, %v1041
        %v1068 = vadd.f32 %v1029, %v1041
        %v1069 = vadd.f32 %v1030, %v1041
        %v1070 = vadd.f32 %v1031, %v1041
        %v1071 = vadd.f32 %v1032, %v1041
        %v1072 = vadd.f32 %v1033, %v1041
        %v1073 = vadd.f32 %v1034, %v1041
        %v1074 = vadd.f32 %v1035, %v1041
        %v1075 = vpack.c.bf16 %v1044, %v1043
        %v1076 = vpack.c.bf16 %v1046, %v1045
        %v1077 = vpack.c.bf16 %v1048, %v1047
        %v1078 = vpack.c.bf16 %v1050, %v1049
        %v1079 = vpack.c.bf16 %v1052, %v1051
        %v1080 = vpack.c.bf16 %v1054, %v1053
        %v1081 = vpack.c.bf16 %v1056, %v1055
        %v1082 = vpack.c.bf16 %v1058, %v1057
        %v1083 = vpack.c.bf16 %v1060, %v1059
        %v1084 = vpack.c.bf16 %v1062, %v1061
        %v1085 = vpack.c.bf16 %v1064, %v1063
        %v1086 = vpack.c.bf16 %v1066, %v1065
        %v1087 = vpack.c.bf16 %v1068, %v1067
        %v1088 = vpack.c.bf16 %v1070, %v1069
        %v1089 = vpack.c.bf16 %v1072, %v1071
        %v1090 = vpack.c.bf16 %v1074, %v1073
        %v1091 = vld [vmem:[#allocation5] sm:$0xf]
        %v1092 = vld [vmem:[#allocation5 + $0x4] sm:$0xf]
        %v1093 = vld [vmem:[#allocation5 + $0x8] sm:$0xf]
        %v1094 = vld [vmem:[#allocation5 + $0xc] sm:$0xf]
        %v1095 = vld [vmem:[#allocation5 + $0x10] sm:$0xf]
        %v1096 = vld [vmem:[#allocation5 + $0x14] sm:$0xf]
        %v1097 = vld [vmem:[#allocation5 + $0x18] sm:$0xf]
        %v1098 = vld [vmem:[#allocation5 + $0x1c] sm:$0xf]
        %v1099 = vld [vmem:[#allocation5 + $0x20] sm:$0xf]
        %v1100 = vld [vmem:[#allocation5 + $0x24] sm:$0xf]
        %v1101 = vld [vmem:[#allocation5 + $0x28] sm:$0xf]
        %v1102 = vld [vmem:[#allocation5 + $0x2c] sm:$0xf]
        %v1103 = vld [vmem:[#allocation5 + $0x30] sm:$0xf]
        %v1104 = vld [vmem:[#allocation5 + $0x34] sm:$0xf]
        %v1105 = vld [vmem:[#allocation5 + $0x38] sm:$0xf]
        %v1106 = vld [vmem:[#allocation5 + $0x3c] sm:$0xf]
        %v1107 = vld [vmem:[%s4] sm:$0x1]
        %v1109 = vlaneseq
        %v1110 = vshrl.u32 %v1109, 7
        %v1111 = vsub.s32 0, %v1110
        %v1112 = vrot.slane %v1107, %v1111
        %v1130 = vunpack.c.l.b16 %v1091
        %v1131 = vunpack.c.l.b16 %v1092
        %v1132 = vunpack.c.l.b16 %v1093
        %v1133 = vunpack.c.l.b16 %v1094
        %v1134 = vunpack.c.l.b16 %v1095
        %v1135 = vunpack.c.l.b16 %v1096
        %v1136 = vunpack.c.l.b16 %v1097
        %v1137 = vunpack.c.l.b16 %v1098
        %v1138 = vunpack.c.l.b16 %v1099
        %v1139 = vunpack.c.l.b16 %v1100
        %v1140 = vunpack.c.l.b16 %v1101
        %v1141 = vunpack.c.l.b16 %v1102
        %v1142 = vunpack.c.l.b16 %v1103
        %v1143 = vunpack.c.l.b16 %v1104
        %v1144 = vunpack.c.l.b16 %v1105
        %v1145 = vunpack.c.l.b16 %v1106
        %v1146 = vpack.c.b16 %v1131, %v1130
        %v1147 = vpack.c.b16 %v1133, %v1132
        %v1148 = vpack.c.b16 %v1135, %v1134
        %v1149 = vpack.c.b16 %v1137, %v1136
        %v1150 = vpack.c.b16 %v1139, %v1138
        %v1151 = vpack.c.b16 %v1141, %v1140
        %v1152 = vpack.c.b16 %v1143, %v1142
        %v1153 = vpack.c.b16 %v1145, %v1144
        %1162 = vmatprep.subr.bf16.mxu0 0
        %1163 = vmatpush1.bf16.msra.mxu0 %v1146
        %1164 = vmatprep.subr.bf16.mxu0 0
        %1165 = vmatpush1.bf16.msra.mxu0 %v1147
        %1166 = vmatprep.subr.bf16.mxu0 0
        %1167 = vmatpush1.bf16.msra.mxu0 %v1148
        %1168 = vmatprep.subr.bf16.mxu0 0
        %1169 = vmatpush1.bf16.msra.mxu0 %v1149
        %1170 = vmatprep.subr.bf16.mxu0 0
        %1171 = vmatpush1.bf16.msra.mxu0 %v1150
        %1172 = vmatprep.subr.bf16.mxu0 0
        %1173 = vmatpush1.bf16.msra.mxu0 %v1151
        %1174 = vmatprep.subr.bf16.mxu0 0
        %1175 = vmatpush1.bf16.msra.mxu0 %v1152
        %1176 = vmatprep.subr.bf16.mxu0 0
        %1177 = vmatpush1.bf16.msra.mxu0 %v1153
        %1178 = vmatprep.subr.bf16.mxu0 0
        %1179 = vmatpush1.bf16.msra.mxu0 0
        %1180 = vmatprep.subr.bf16.mxu0 0
        %1181 = vmatpush1.bf16.msra.mxu0 0
        %1182 = vmatprep.subr.bf16.mxu0 0
        %1183 = vmatpush1.bf16.msra.mxu0 0
        %1184 = vmatprep.subr.bf16.mxu0 0
        %1185 = vmatpush1.bf16.msra.mxu0 0
        %1186 = vmatprep.subr.bf16.mxu0 0
        %1187 = vmatpush1.bf16.msra.mxu0 0
        %1188 = vmatprep.subr.bf16.mxu0 0
        %1189 = vmatpush1.bf16.msra.mxu0 0
        %1190 = vmatprep.subr.bf16.mxu0 0
        %1191 = vmatpush1.bf16.msra.mxu0 0
        %1192 = vmatprep.subr.bf16.mxu0 0
        %1193 = vmatpush1.bf16.msra.mxu0 0
        %1194 = vmatprep.mubr.bf16.mxu0 0
        %1195 = vmatmul.mubr.bf16.gmra.mrb[0].mxu0 %v1075
        %v1196 = vpop.f32.mrb[0].mxu0
        %v1197 = vadd.f32 %v1112, %v1196
        %v1198 = vpop.f32.mrb[0].mxu0
        %v1199 = vpop.f32.mrb[0].mxu0
        %v1200 = vadd.f32 %v1112, %v1199
        %v1201 = vpop.f32.mrb[0].mxu0
        %1202 = vmatprep.mubr.bf16.mxu0 0
        %1203 = vmatmul.mubr.bf16.gmra.mrb[0].mxu0 %v1076
        %v1204 = vpop.f32.mrb[0].mxu0
        %v1205 = vadd.f32 %v1112, %v1204
        %v1206 = vpop.f32.mrb[0].mxu0
        %v1207 = vpop.f32.mrb[0].mxu0
        %v1208 = vadd.f32 %v1112, %v1207
        %v1209 = vpop.f32.mrb[0].mxu0
        %1210 = vmatprep.mubr.bf16.mxu0 0
        %1211 = vmatmul.mubr.bf16.gmra.mrb[0].mxu0 %v1077
        %v1212 = vpop.f32.mrb[0].mxu0
        %v1213 = vadd.f32 %v1112, %v1212
        %v1214 = vpop.f32.mrb[0].mxu0
        %v1215 = vpop.f32.mrb[0].mxu0
        %v1216 = vadd.f32 %v1112, %v1215
        %v1217 = vpop.f32.mrb[0].mxu0
        %1218 = vmatprep.mubr.bf16.mxu0 0
        %1219 = vmatmul.mubr.bf16.gmra.mrb[0].mxu0 %v1078
        %v1220 = vpop.f32.mrb[0].mxu0
        %v1221 = vadd.f32 %v1112, %v1220
        %v1222 = vpop.f32.mrb[0].mxu0
        %v1223 = vpop.f32.mrb[0].mxu0
        %v1224 = vadd.f32 %v1112, %v1223
        %v1225 = vpop.f32.mrb[0].mxu0
        %1226 = vmatprep.mubr.bf16.mxu0 0
        %1227 = vmatmul.mubr.bf16.gmra.mrb[0].mxu0 %v1079
        %v1228 = vpop.f32.mrb[0].mxu0
        %v1229 = vadd.f32 %v1112, %v1228
        %v1230 = vpop.f32.mrb[0].mxu0
        %v1231 = vpop.f32.mrb[0].mxu0
        %v1232 = vadd.f32 %v1112, %v1231
        %v1233 = vpop.f32.mrb[0].mxu0
        %1234 = vmatprep.mubr.bf16.mxu0 0
        %1235 = vmatmul.mubr.bf16.gmra.mrb[0].mxu0 %v1080
        %v1236 = vpop.f32.mrb[0].mxu0
        %v1237 = vadd.f32 %v1112, %v1236
        %v1238 = vpop.f32.mrb[0].mxu0
        %v1239 = vpop.f32.mrb[0].mxu0
        %v1240 = vadd.f32 %v1112, %v1239
        %v1241 = vpop.f32.mrb[0].mxu0
        %1242 = vmatprep.mubr.bf16.mxu0 0
        %1243 = vmatmul.mubr.bf16.gmra.mrb[0].mxu0 %v1081
        %v1244 = vpop.f32.mrb[0].mxu0
        %v1245 = vadd.f32 %v1112, %v1244
        %v1246 = vpop.f32.mrb[0].mxu0
        %v1247 = vpop.f32.mrb[0].mxu0
        %v1248 = vadd.f32 %v1112, %v1247
        %v1249 = vpop.f32.mrb[0].mxu0
        %1250 = vmatprep.mubr.bf16.mxu0 0
        %1251 = vmatmul.mubr.bf16.gmra.mrb[0].mxu0 %v1082
        %v1252 = vpop.f32.mrb[0].mxu0
        %v1253 = vadd.f32 %v1112, %v1252
        %v1254 = vpop.f32.mrb[0].mxu0
        %v1255 = vpop.f32.mrb[0].mxu0
        %v1256 = vadd.f32 %v1112, %v1255
        %v1257 = vpop.f32.mrb[0].mxu0
        %1258 = vmatprep.mubr.bf16.mxu0 0
        %1259 = vmatmul.mubr.bf16.gmra.mrb[0].mxu0 %v1083
        %v1260 = vpop.f32.mrb[0].mxu0
        %v1261 = vadd.f32 %v1112, %v1260
        %v1262 = vpop.f32.mrb[0].mxu0
        %v1263 = vpop.f32.mrb[0].mxu0
        %v1264 = vadd.f32 %v1112, %v1263
        %v1265 = vpop.f32.mrb[0].mxu0
        %1266 = vmatprep.mubr.bf16.mxu0 0
        %1267 = vmatmul.mubr.bf16.gmra.mrb[0].mxu0 %v1084
        %v1268 = vpop.f32.mrb[0].mxu0
        %v1269 = vadd.f32 %v1112, %v1268
        %v1270 = vpop.f32.mrb[0].mxu0
        %v1271 = vpop.f32.mrb[0].mxu0
        %v1272 = vadd.f32 %v1112, %v1271
        %v1273 = vpop.f32.mrb[0].mxu0
        %1274 = vmatprep.mubr.bf16.mxu0 0
        %1275 = vmatmul.mubr.bf16.gmra.mrb[0].mxu0 %v1085
        %v1276 = vpop.f32.mrb[0].mxu0
        %v1277 = vadd.f32 %v1112, %v1276
        %v1278 = vpop.f32.mrb[0].mxu0
        %v1279 = vpop.f32.mrb[0].mxu0
        %v1280 = vadd.f32 %v1112, %v1279
        %v1281 = vpop.f32.mrb[0].mxu0
        %1282 = vmatprep.mubr.bf16.mxu0 0
        %1283 = vmatmul.mubr.bf16.gmra.mrb[0].mxu0 %v1086
        %v1284 = vpop.f32.mrb[0].mxu0
        %v1285 = vadd.f32 %v1112, %v1284
        %v1286 = vpop.f32.mrb[0].mxu0
        %v1287 = vpop.f32.mrb[0].mxu0
        %v1288 = vadd.f32 %v1112, %v1287
        %v1289 = vpop.f32.mrb[0].mxu0
        %1290 = vmatprep.mubr.bf16.mxu0 0
        %1291 = vmatmul.mubr.bf16.gmra.mrb[0].mxu0 %v1087
        %v1292 = vpop.f32.mrb[0].mxu0
        %v1293 = vadd.f32 %v1112, %v1292
        %v1294 = vpop.f32.mrb[0].mxu0
        %v1295 = vpop.f32.mrb[0].mxu0
        %v1296 = vadd.f32 %v1112, %v1295
        %v1297 = vpop.f32.mrb[0].mxu0
        %1298 = vmatprep.mubr.bf16.mxu0 0
        %1299 = vmatmul.mubr.bf16.gmra.mrb[0].mxu0 %v1088
        %v1300 = vpop.f32.mrb[0].mxu0
        %v1301 = vadd.f32 %v1112, %v1300
        %v1302 = vpop.f32.mrb[0].mxu0
        %v1303 = vpop.f32.mrb[0].mxu0
        %v1304 = vadd.f32 %v1112, %v1303
        %v1305 = vpop.f32.mrb[0].mxu0
        %1306 = vmatprep.mubr.bf16.mxu0 0
        %1307 = vmatmul.mubr.bf16.gmra.mrb[0].mxu0 %v1089
        %v1308 = vpop.f32.mrb[0].mxu0
        %v1309 = vadd.f32 %v1112, %v1308
        %v1310 = vpop.f32.mrb[0].mxu0
        %v1311 = vpop.f32.mrb[0].mxu0
        %v1312 = vadd.f32 %v1112, %v1311
        %v1313 = vpop.f32.mrb[0].mxu0
        %1314 = vmatprep.mubr.bf16.mxu0 0
        %1315 = vmatmul.mubr.bf16.gmra.mrb[0].mxu0 %v1090
        %v1316 = vpop.f32.mrb[0].mxu0
        %v1317 = vadd.f32 %v1112, %v1316
        %v1318 = vpop.f32.mrb[0].mxu0
        %v1319 = vpop.f32.mrb[0].mxu0
        %v1320 = vadd.f32 %v1112, %v1319
        %v1321 = vpop.f32.mrb[0].mxu0
        %1322 = vdwg.mxu0
        %v1323 = vadd.f32 %v293, %v1197
        %v1324 = vadd.f32 %v294, %v1200
        %v1325 = vadd.f32 %v295, %v1205
        %v1326 = vadd.f32 %v296, %v1208
        %v1327 = vadd.f32 %v297, %v1213
        %v1328 = vadd.f32 %v298, %v1216
        %v1329 = vadd.f32 %v299, %v1221
        %v1330 = vadd.f32 %v300, %v1224
        %v1331 = vadd.f32 %v301, %v1229
        %v1332 = vadd.f32 %v302, %v1232
        %v1333 = vadd.f32 %v303, %v1237
        %v1334 = vadd.f32 %v304, %v1240
        %v1335 = vadd.f32 %v305, %v1245
        %v1336 = vadd.f32 %v306, %v1248
        %v1337 = vadd.f32 %v307, %v1253
        %v1338 = vadd.f32 %v308, %v1256
        %v1339 = vadd.f32 %v309, %v1261
        %v1340 = vadd.f32 %v310, %v1264
        %v1341 = vadd.f32 %v311, %v1269
        %v1342 = vadd.f32 %v312, %v1272
        %v1343 = vadd.f32 %v313, %v1277
        %v1344 = vadd.f32 %v314, %v1280
        %v1345 = vadd.f32 %v315, %v1285
        %v1346 = vadd.f32 %v316, %v1288
        %v1347 = vadd.f32 %v317, %v1293
        %v1348 = vadd.f32 %v318, %v1296
        %v1349 = vadd.f32 %v319, %v1301
        %v1350 = vadd.f32 %v320, %v1304
        %v1351 = vadd.f32 %v321, %v1309
        %v1352 = vadd.f32 %v322, %v1312
        %v1353 = vadd.f32 %v323, %v1317
        %v1354 = vadd.f32 %v324, %v1320
        %v1355 = vpack.c.bf16 %v1324, %v1323
        %v1356 = vpack.c.bf16 %v1326, %v1325
        %v1357 = vpack.c.bf16 %v1328, %v1327
        %v1358 = vpack.c.bf16 %v1330, %v1329
        %v1359 = vpack.c.bf16 %v1332, %v1331
        %v1360 = vpack.c.bf16 %v1334, %v1333
        %v1361 = vpack.c.bf16 %v1336, %v1335
        %v1362 = vpack.c.bf16 %v1338, %v1337
        %v1363 = vpack.c.bf16 %v1340, %v1339
        %v1364 = vpack.c.bf16 %v1342, %v1341
        %v1365 = vpack.c.bf16 %v1344, %v1343
        %v1366 = vpack.c.bf16 %v1346, %v1345
        %v1367 = vpack.c.bf16 %v1348, %v1347
        %v1368 = vpack.c.bf16 %v1350, %v1349
        %v1369 = vpack.c.bf16 %v1352, %v1351
        %v1370 = vpack.c.bf16 %v1354, %v1353
        %v1387 = vunpack.c.l.b16 %v1355
        %v1388 = vunpack.c.h.b16 %v1355
        %v1389 = vunpack.c.l.b16 %v1356
        %v1390 = vunpack.c.h.b16 %v1356
        %v1391 = vunpack.c.l.b16 %v1357
        %v1392 = vunpack.c.h.b16 %v1357
        %v1393 = vunpack.c.l.b16 %v1358
        %v1394 = vunpack.c.h.b16 %v1358
        %v1395 = vunpack.c.l.b16 %v1359
        %v1396 = vunpack.c.h.b16 %v1359
        %v1397 = vunpack.c.l.b16 %v1360
        %v1398 = vunpack.c.h.b16 %v1360
        %v1399 = vunpack.c.l.b16 %v1361
        %v1400 = vunpack.c.h.b16 %v1361
        %v1401 = vunpack.c.l.b16 %v1362
        %v1402 = vunpack.c.h.b16 %v1362
        %v1403 = vunpack.c.l.b16 %v1363
        %v1404 = vunpack.c.h.b16 %v1363
        %v1405 = vunpack.c.l.b16 %v1364
        %v1406 = vunpack.c.h.b16 %v1364
        %v1407 = vunpack.c.l.b16 %v1365
        %v1408 = vunpack.c.h.b16 %v1365
        %v1409 = vunpack.c.l.b16 %v1366
        %v1410 = vunpack.c.h.b16 %v1366
        %v1411 = vunpack.c.l.b16 %v1367
        %v1412 = vunpack.c.h.b16 %v1367
        %v1413 = vunpack.c.l.b16 %v1368
        %v1414 = vunpack.c.h.b16 %v1368
        %v1415 = vunpack.c.l.b16 %v1369
        %v1416 = vunpack.c.h.b16 %v1369
        %v1417 = vunpack.c.l.b16 %v1370
        %v1418 = vunpack.c.h.b16 %v1370
        %v1419 = vpack.c.b16 %v1387, %v1387
        %v1420 = vpack.c.b16 %v1388, %v1388
        %v1421 = vpack.c.b16 %v1389, %v1389
        %v1422 = vpack.c.b16 %v1390, %v1390
        %v1423 = vpack.c.b16 %v1391, %v1391
        %v1424 = vpack.c.b16 %v1392, %v1392
        %v1425 = vpack.c.b16 %v1393, %v1393
        %v1426 = vpack.c.b16 %v1394, %v1394
        %v1427 = vpack.c.b16 %v1395, %v1395
        %v1428 = vpack.c.b16 %v1396, %v1396
        %v1429 = vpack.c.b16 %v1397, %v1397
        %v1430 = vpack.c.b16 %v1398, %v1398
        %v1431 = vpack.c.b16 %v1399, %v1399
        %v1432 = vpack.c.b16 %v1400, %v1400
        %v1433 = vpack.c.b16 %v1401, %v1401
        %v1434 = vpack.c.b16 %v1402, %v1402
        %v1435 = vpack.c.b16 %v1403, %v1403
        %v1436 = vpack.c.b16 %v1404, %v1404
        %v1437 = vpack.c.b16 %v1405, %v1405
        %v1438 = vpack.c.b16 %v1406, %v1406
        %v1439 = vpack.c.b16 %v1407, %v1407
        %v1440 = vpack.c.b16 %v1408, %v1408
        %v1441 = vpack.c.b16 %v1409, %v1409
        %v1442 = vpack.c.b16 %v1410, %v1410
        %v1443 = vpack.c.b16 %v1411, %v1411
        %v1444 = vpack.c.b16 %v1412, %v1412
        %v1445 = vpack.c.b16 %v1413, %v1413
        %v1446 = vpack.c.b16 %v1414, %v1414
        %v1447 = vpack.c.b16 %v1415, %v1415
        %v1448 = vpack.c.b16 %v1416, %v1416
        %v1449 = vpack.c.b16 %v1417, %v1417
        %v1450 = vpack.c.b16 %v1418, %v1418
        %1483 = vst [vmem:[%s257] sm:$0xf] %v1419
        %1484 = vst [vmem:[%s257 + $0x4] sm:$0xf] %v1420
        %1485 = vst [vmem:[%s257 + $0x8] sm:$0xf] %v1421
        %1486 = vst [vmem:[%s257 + $0xc] sm:$0xf] %v1422
        %1487 = vst [vmem:[%s257 + $0x10] sm:$0xf] %v1423
        %1488 = vst [vmem:[%s257 + $0x14] sm:$0xf] %v1424
        %1489 = vst [vmem:[%s257 + $0x18] sm:$0xf] %v1425
        %1490 = vst [vmem:[%s257 + $0x1c] sm:$0xf] %v1426
        %1491 = vst [vmem:[%s257 + $0x20] sm:$0xf] %v1427
        %1492 = vst [vmem:[%s257 + $0x24] sm:$0xf] %v1428
        %1493 = vst [vmem:[%s257 + $0x28] sm:$0xf] %v1429
        %1494 = vst [vmem:[%s257 + $0x2c] sm:$0xf] %v1430
        %1495 = vst [vmem:[%s257 + $0x30] sm:$0xf] %v1431
        %1496 = vst [vmem:[%s257 + $0x34] sm:$0xf] %v1432
        %1497 = vst [vmem:[%s257 + $0x38] sm:$0xf] %v1433
        %1498 = vst [vmem:[%s257 + $0x3c] sm:$0xf] %v1434
        %1499 = vst [vmem:[%s257 + $0x40] sm:$0xf] %v1435
        %1500 = vst [vmem:[%s257 + $0x44] sm:$0xf] %v1436
        %1501 = vst [vmem:[%s257 + $0x48] sm:$0xf] %v1437
        %1502 = vst [vmem:[%s257 + $0x4c] sm:$0xf] %v1438
        %1503 = vst [vmem:[%s257 + $0x50] sm:$0xf] %v1439
        %1504 = vst [vmem:[%s257 + $0x54] sm:$0xf] %v1440
        %1505 = vst [vmem:[%s257 + $0x58] sm:$0xf] %v1441
        %1506 = vst [vmem:[%s257 + $0x5c] sm:$0xf] %v1442
        %1507 = vst [vmem:[%s257 + $0x60] sm:$0xf] %v1443
        %1508 = vst [vmem:[%s257 + $0x64] sm:$0xf] %v1444
        %1509 = vst [vmem:[%s257 + $0x68] sm:$0xf] %v1445
        %1510 = vst [vmem:[%s257 + $0x6c] sm:$0xf] %v1446
        %1511 = vst [vmem:[%s257 + $0x70] sm:$0xf] %v1447
        %1512 = vst [vmem:[%s257 + $0x74] sm:$0xf] %v1448
        %1513 = vst [vmem:[%s257 + $0x78] sm:$0xf] %v1449
        %1514 = vst [vmem:[%s257 + $0x7c] sm:$0xf] %v1450
        %s1515 = sand.u32 %s141, 1
        %s1516 = scalar_lea.sflag [#allocation4], %s1515
        %s1517 = sand.u32 %s141, 1
        %s1518 = smul.addr %s1517, 128
        %s1519 = scalar_lea.vmem [#allocation7], %s1518
        // Predicated region
        $region49: #{tpu_custom_call.1} parent=39 // pred_check
          %p1520 = pneg %p151
        $region50: #{tpu_custom_call.1} parent=39 // pred_check_branch
          %1522 = sbr.rel (%p1520) target = $region52
        $region51: #{tpu_custom_call.1} parent=39 // pred_region
          %s1523 = smul.u32 32, %s23
          %s1525 = ssub.s32 2048, 2048
          %1526 = vsyncadd %s1516, %s1525
          %s1527 = smul.addr %s1523, 64
          %s1528 = scalar_lea.hbm %s5, %s1527
          %s1529 = sshll.u32 %s1519, 4
          %s1530 = int_to_ptr.vmem [resolvable:$true] %s1529
          %1535 = dma.vmem_to_hbm [thread:$0]  %s1530, 2048, %s1528, %s1516, 64, 64, 4
        $region52: #{tpu_custom_call.1} parent=39 // pred_fallthru
          _
      $region40: #{tpu_custom_call.1} parent=5 // pred_fallthru
        _
      %p1536 = scmp.le.s32.totalorder 2, %s18
      // Predicated region
      $region53: #{tpu_custom_call.1} parent=5 // pred_check
        %p1537 = pneg %p1536
      $region54: #{tpu_custom_call.1} parent=5 // pred_check_branch
        %1539 = sbr.rel (%p1537) target = $region56
      $region55: #{tpu_custom_call.1} parent=5 // pred_region
        %s1540 = ssub.s32 %s18, 2
        // Predicated region
        $region57: #{tpu_custom_call.1} parent=55 // pred_check
          %p1541 = pneg %p157
        $region58: #{tpu_custom_call.1} parent=55 // pred_check_branch
          %1543 = sbr.rel (%p1541) target = $region60
        $region59: #{tpu_custom_call.1} parent=55 // pred_region
          %s1544 = sand.u32 %s142, 1
          %s1545 = scalar_lea.sflag [#allocation4], %s1544
          %s1546 = sand.u32 %s142, 1
          %s1547 = smul.addr %s1546, 128
          %s1548 = scalar_lea.vmem [#allocation7], %s1547
          %1549 = dma.done %s1545, 2048
        $region60: #{tpu_custom_call.1} parent=55 // pred_fallthru
          _
      $region56: #{tpu_custom_call.1} parent=5 // pred_fallthru
        _
    $region6: #{tpu_custom_call.1} parent=1 // loop_footer
      %s22 = sadd.s32 1, %s18
    $region7: #{tpu_custom_call.1} parent=1 // loop_footer_branch
      %17 = sbr.rel target = $region3
    $region8: #{tpu_custom_call.1} parent=1 // loop_exit
      _
    %1550 = vsyncpa [#allocation3], 1
    %s1551 = scalar_lea.sflag [#allocation3], 1
    %1552 = vsyncpa %s1551, 1
    %1553 = vsyncpa [#allocation6], 1
    %1554 = vsyncpa [#allocation4], 1
    %s1555 = scalar_lea.sflag [#allocation4], 1
    %1556 = vsyncpa %s1555, 1

// kernel: tpu_custom_call.1
$region0: #{tpu_custom_call.1}
  #allocation0 [shape = 'u32[]', space=smem, size = 0x4, offset = 0x4, fixed_abs, tag = 'smem constant byte address 0x4 - core index']
  #allocation1 [shape = 'u32[144,128]{1,0:T(1,128)}', space=vmem, size = 0x12000, scoped, tag = 'internal scratch']
  %s0 = inlined_call_operand.hbm [shape: bf16[512,128], index: 0, kind: input, shape index: {}]
  %s1 = inlined_call_operand.vmem [shape: f32[1,128], index: 1, kind: input, shape index: {}]
  %s2 = inlined_call_operand.vmem [shape: f32[1,128], index: 2, kind: input, shape index: {}]
  %s3 = inlined_call_operand.hbm [shape: bf16[128,128], index: 3, kind: input, shape index: {}]
  %s4 = inlined_call_operand.vmem [shape: f32[1,128], index: 4, kind: input, shape index: {}]
  %s5 = inlined_call_operand.hbm [shape: bf16[512,128], index: 5, kind: output, shape index: {}]
  %s6 = sld [smem:[#allocation0]]
  $region61: #{tpu_custom_call.1} parent=0
    _
  %s8 = ssub.s32 1, %s6
  %s9 = scalar_select 0, %s8, %s6
  $region1: #{tpu_custom_call.1} parent=0
    #allocation2 [shape = 'u8[131072]{0}', space=vmem, size = 0x20000, scoped, tag = 'input window, operand 0']
    #allocation3 [shape = 's32[2]{0}', space=sflag, size = 0x8, scoped, tag = 'scoped memory for tpu_custom_call.1']
    #allocation4 [shape = 's32[2]{0}', space=sflag, size = 0x8, scoped, tag = 'scoped memory for tpu_custom_call.1']
    #allocation5 [shape = 'u8[32768]{0}', space=vmem, size = 0x8000, scoped, tag = 'input window, operand 3, single buffered']
    #allocation6 [shape = 's32[1]{0}', space=sflag, size = 0x4, scoped, tag = 'scoped memory for tpu_custom_call.1']
    #allocation7 [shape = 'u8[131072]{0}', space=vmem, size = 0x20000, scoped, tag = 'output window, operand 0']
    %10 = vsyncpa [#allocation3], 0
    %s11 = scalar_lea.sflag [#allocation3], 1
    %12 = vsyncpa %s11, 0
    %13 = vsyncpa [#allocation6], 0
    %14 = vsyncpa [#allocation4], 0
    %s15 = scalar_lea.sflag [#allocation4], 1
    %16 = vsyncpa %s15, 0
    loop: start=0, step=1, limit=4
    $region2: #{tpu_custom_call.1} parent=1 // loop_pre_header
      _
    $region3: #{tpu_custom_call.1} parent=1 // loop_header
      %s18 = sphi 0, %s22
      %p19 = scmp.ge.s32.totalorder %s18, 4
      %s28 = sphi 0, %s30
      %s31 = sphi 0, %s28
      %s32 = sphi 0, %s31
      %s48 = sphi 0, %s32
      %s52 = sphi 0, %s52
      %s54 = sphi 0, %s52
      %s55 = sphi 0, %s54
      %s69 = sphi 0, %s55
      %s73 = sphi 0, %s73
      %s75 = sphi 0, %s73
      %s76 = sphi 0, %s75
      %s90 = sphi 0, %s76
      %s94 = sphi 0, %s94
      %s96 = sphi 0, %s94
      %s97 = sphi 0, %s96
      %s111 = sphi 0, %s97
      %s115 = sphi 0, %s115
      %s117 = sphi 0, %s115
      %s118 = sphi 0, %s117
      %s132 = sphi 0, %s118
      %s138 = sphi 0, %s140
      %s141 = sphi 0, %s138
      %s142 = sphi 0, %s141
      %s158 = sphi 0, %s142
    $region4: #{tpu_custom_call.1} parent=1 // loop_header_branch
      %21 = sbr.rel (%p19) target = $region8
    $region5: #{tpu_custom_call.1} parent=1 // loop_body
      %s23 = ssub.s32 %s18, 1
      %s24 = ssub.s32 %s18, 2
      %s25 = sadd.s32 %s18, 1
      %s26 = ssub.s32 %s18, %s25
      %p27 = scmp.eq.s32.totalorder %s26, 0
      %s29 = sadd.s32 %s28, 1
      %s30 = scalar_select %p27, %s28, %s29
      %p33 = pneg %p27
      %p34 = scmp.eq.s32.totalorder %s18, 1
      %p35 = por %p33, %p34
      %p36 = scmp.ne.s32.totalorder %s28, %s31
      %p37 = scmp.eq.s32.totalorder %s18, 0
      %p38 = por %p36, %p37
      %p39 = scmp.ne.s32.totalorder %s28, %s31
      %p40 = scmp.eq.s32.totalorder %s23, 1
      %p41 = por %p39, %p40
      %p42 = scmp.ne.s32.totalorder %s31, %s32
      %p43 = scmp.eq.s32.totalorder %s23, 0
      %p44 = por %p42, %p43
      %p45 = scmp.ne.s32.totalorder %s31, %s32
      %p46 = scmp.eq.s32.totalorder %s24, 1
      %p47 = por %p45, %p46
      %p49 = scmp.ne.s32.totalorder %s32, %s48
      %p50 = scmp.eq.s32.totalorder %s24, 0
      %p51 = por %p49, %p50
      %s53 = sadd.s32 %s52, 1
      %p56 = scmp.eq.s32.totalorder %s18, 1
      %p57 = scmp.ne.s32.totalorder %s52, %s54
      %p58 = scmp.eq.s32.totalorder %s18, 0
      %p59 = por %p57, %p58
      %p60 = scmp.ne.s32.totalorder %s52, %s54
      %p61 = scmp.eq.s32.totalorder %s23, 1
      %p62 = por %p60, %p61
      %p63 = scmp.ne.s32.totalorder %s54, %s55
      %p64 = scmp.eq.s32.totalorder %s23, 0
      %p65 = por %p63, %p64
      %p66 = scmp.ne.s32.totalorder %s54, %s55
      %p67 = scmp.eq.s32.totalorder %s24, 1
      %p68 = por %p66, %p67
      %p70 = scmp.ne.s32.totalorder %s55, %s69
      %p71 = scmp.eq.s32.totalorder %s24, 0
      %p72 = por %p70, %p71
      %s74 = sadd.s32 %s73, 1
      %p77 = scmp.eq.s32.totalorder %s18, 1
      %p78 = scmp.ne.s32.totalorder %s73, %s75
      %p79 = scmp.eq.s32.totalorder %s18, 0
      %p80 = por %p78, %p79
      %p81 = scmp.ne.s32.totalorder %s73, %s75
      %p82 = scmp.eq.s32.totalorder %s23, 1
      %p83 = por %p81, %p82
      %p84 = scmp.ne.s32.totalorder %s75, %s76
      %p85 = scmp.eq.s32.totalorder %s23, 0
      %p86 = por %p84, %p85
      %p87 = scmp.ne.s32.totalorder %s75, %s76
      %p88 = scmp.eq.s32.totalorder %s24, 1
      %p89 = por %p87, %p88
      %p91 = scmp.ne.s32.totalorder %s76, %s90
      %p92 = scmp.eq.s32.totalorder %s24, 0
      %p93 = por %p91, %p92
      %s95 = sadd.s32 %s94, 1
      %p98 = scmp.eq.s32.totalorder %s18, 1
      %p99 = scmp.ne.s32.totalorder %s94, %s96
      %p100 = scmp.eq.s32.totalorder %s18, 0
      %p101 = por %p99, %p100
      %p102 = scmp.ne.s32.totalorder %s94, %s96
      %p103 = scmp.eq.s32.totalorder %s23, 1
      %p104 = por %p102, %p103
      %p105 = scmp.ne.s32.totalorder %s96, %s97
      %p106 = scmp.eq.s32.totalorder %s23, 0
      %p107 = por %p105, %p106
      %p108 = scmp.ne.s32.totalorder %s96, %s97
      %p109 = scmp.eq.s32.totalorder %s24, 1
      %p110 = por %p108, %p109
      %p112 = scmp.ne.s32.totalorder %s97, %s111
      %p113 = scmp.eq.s32.totalorder %s24, 0
      %p114 = por %p112, %p113
      %s116 = sadd.s32 %s115, 1
      %p119 = scmp.eq.s32.totalorder %s18, 1
      %p120 = scmp.ne.s32.totalorder %s115, %s117
      %p121 = scmp.eq.s32.totalorder %s18, 0
      %p122 = por %p120, %p121
      %p123 = scmp.ne.s32.totalorder %s115, %s117
      %p124 = scmp.eq.s32.totalorder %s23, 1
      %p125 = por %p123, %p124
      %p126 = scmp.ne.s32.totalorder %s117, %s118
      %p127 = scmp.eq.s32.totalorder %s23, 0
      %p128 = por %p126, %p127
      %p129 = scmp.ne.s32.totalorder %s117, %s118
      %p130 = scmp.eq.s32.totalorder %s24, 1
      %p131 = por %p129, %p130
      %p133 = scmp.ne.s32.totalorder %s118, %s132
      %p134 = scmp.eq.s32.totalorder %s24, 0
      %p135 = por %p133, %p134
      %s136 = ssub.s32 %s18, %s25
      %p137 = scmp.eq.s32.totalorder %s136, 0
      %s139 = sadd.s32 %s138, 1
      %s140 = scalar_select %p137, %s138, %s139
      %p143 = pneg %p137
      %p144 = scmp.eq.s32.totalorder %s18, 1
      %p145 = por %p143, %p144
      %p146 = scmp.ne.s32.totalorder %s138, %s141
      %p147 = scmp.eq.s32.totalorder %s18, 0
      %p148 = por %p146, %p147
      %p149 = scmp.ne.s32.totalorder %s138, %s141
      %p150 = scmp.eq.s32.totalorder %s23, 1
      %p151 = por %p149, %p150
      %p152 = scmp.ne.s32.totalorder %s141, %s142
      %p153 = scmp.eq.s32.totalorder %s23, 0
      %p154 = por %p152, %p153
      %p155 = scmp.ne.s32.totalorder %s141, %s142
      %p156 = scmp.eq.s32.totalorder %s24, 1
      %p157 = por %p155, %p156
      %p159 = scmp.ne.s32.totalorder %s142, %s158
      %p160 = scmp.eq.s32.totalorder %s24, 0
      %p161 = por %p159, %p160
      %p162 = scmp.le.s32.totalorder 1, %s18
      %p163 = scmp.lt.s32.totalorder %s18, 3
      %p164 = pnand %p162, %p163
      %p165 = pneg %p164
      // Predicated region
      $region9: #{tpu_custom_call.1} parent=5 // pred_check
        _
      $region10: #{tpu_custom_call.1} parent=5 // pred_check_branch
        %167 = sbr.rel (%p164) target = $region12
      $region11: #{tpu_custom_call.1} parent=5 // pred_region
        %s168 = ssub.s32 %s18, 1
        // Predicated region
        $region13: #{tpu_custom_call.1} parent=11 // pred_check
          %p169 = pneg %p65
        $region14: #{tpu_custom_call.1} parent=11 // pred_check_branch
          %171 = sbr.rel (%p169) target = $region16
        $region15: #{tpu_custom_call.1} parent=11 // pred_region
          _
        $region16: #{tpu_custom_call.1} parent=11 // pred_fallthru
          _
        // Predicated region
        $region17: #{tpu_custom_call.1} parent=11 // pred_check
          %p172 = pneg %p86
        $region18: #{tpu_custom_call.1} parent=11 // pred_check_branch
          %174 = sbr.rel (%p172) target = $region20
        $region19: #{tpu_custom_call.1} parent=11 // pred_region
          _
        $region20: #{tpu_custom_call.1} parent=11 // pred_fallthru
          _
        // Predicated region
        $region21: #{tpu_custom_call.1} parent=11 // pred_check
          %p175 = pneg %p107
        $region22: #{tpu_custom_call.1} parent=11 // pred_check_branch
          %177 = sbr.rel (%p175) target = $region24
        $region23: #{tpu_custom_call.1} parent=11 // pred_region
          %s179 = ssub.s32 1024, 1024
          %180 = vsyncadd [#allocation6], %s179
          %s181 = sshll.u32 [#allocation5], 4
          %s182 = int_to_ptr.vmem [resolvable:$true] %s181
          %187 = dma.hbm_to_vmem [thread:$0]  %s3, 1024, %s182, [#allocation6], 64, 64, 4
        $region24: #{tpu_custom_call.1} parent=11 // pred_fallthru
          _
        // Predicated region
        $region25: #{tpu_custom_call.1} parent=11 // pred_check
          %p188 = pneg %p128
        $region26: #{tpu_custom_call.1} parent=11 // pred_check_branch
          %190 = sbr.rel (%p188) target = $region28
        $region27: #{tpu_custom_call.1} parent=11 // pred_region
          _
        $region28: #{tpu_custom_call.1} parent=11 // pred_fallthru
          _
      $region12: #{tpu_custom_call.1} parent=5 // pred_fallthru
        _
      %p191 = scmp.lt.s32.totalorder %s18, 2
      // Predicated region
      $region29: #{tpu_custom_call.1} parent=5 // pred_check
        %p192 = pneg %p191
      $region30: #{tpu_custom_call.1} parent=5 // pred_check_branch
        %194 = sbr.rel (%p192) target = $region32
      $region31: #{tpu_custom_call.1} parent=5 // pred_region
        // Predicated region
        $region33: #{tpu_custom_call.1} parent=31 // pred_check
          %p195 = pneg %p38
        $region34: #{tpu_custom_call.1} parent=31 // pred_check_branch
          %197 = sbr.rel (%p195) target = $region36
        $region35: #{tpu_custom_call.1} parent=31 // pred_region
          %s198 = sand.u32 %s28, 1
          %s199 = scalar_lea.sflag [#allocation3], %s198
          %s200 = sand.u32 %s28, 1
          %s201 = smul.addr %s200, 128
          %s202 = scalar_lea.vmem [#allocation2], %s201
          %s203 = smul.u32 32, %s18
          %s205 = ssub.s32 2048, 2048
          %206 = vsyncadd %s199, %s205
          %s207 = smul.addr %s203, 64
          %s208 = scalar_lea.hbm %s0, %s207
          %s209 = sshll.u32 %s202, 4
          %s210 = int_to_ptr.vmem [resolvable:$true] %s209
          %215 = dma.hbm_to_vmem [thread:$0]  %s208, 2048, %s210, %s199, 64, 64, 4
        $region36: #{tpu_custom_call.1} parent=31 // pred_fallthru
          _
      $region32: #{tpu_custom_call.1} parent=5 // pred_fallthru
        _
      %p216 = scmp.le.s32.totalorder 1, %s18
      %p217 = scmp.lt.s32.totalorder %s18, 3
      %p218 = pnand %p216, %p217
      %p219 = pneg %p218
      // Predicated region
      $region37: #{tpu_custom_call.1} parent=5 // pred_check
        _
      $region38: #{tpu_custom_call.1} parent=5 // pred_check_branch
        %221 = sbr.rel (%p218) target = $region40
      $region39: #{tpu_custom_call.1} parent=5 // pred_region
        %s222 = ssub.s32 %s18, 1
        %s223 = sand.u32 %s31, 1
        %s224 = scalar_lea.sflag [#allocation3], %s223
        %s225 = sand.u32 %s31, 1
        %s226 = smul.addr %s225, 128
        %s227 = scalar_lea.vmem [#allocation2], %s226
        // Predicated region
        $region41: #{tpu_custom_call.1} parent=39 // pred_check
          %p228 = pneg %p44
        $region42: #{tpu_custom_call.1} parent=39 // pred_check_branch
          %230 = sbr.rel (%p228) target = $region44
        $region43: #{tpu_custom_call.1} parent=39 // pred_region
          %231 = dma.done %s224, 2048
        $region44: #{tpu_custom_call.1} parent=39 // pred_fallthru
          _
        // Predicated region
        $region45: #{tpu_custom_call.1} parent=39 // pred_check
          %p232 = pneg %p107
        $region46: #{tpu_custom_call.1} parent=39 // pred_check_branch
          %234 = sbr.rel (%p232) target = $region48
        $region47: #{tpu_custom_call.1} parent=39 // pred_region
          %235 = dma.done [#allocation6], 1024
        $region48: #{tpu_custom_call.1} parent=39 // pred_fallthru
          _
        %s236 = sand.u32 %s31, 1
        %s237 = scalar_lea.sflag [#allocation3], %s236
        %s238 = sand.u32 %s31, 1
        %s239 = smul.addr %s238, 128
        %s240 = scalar_lea.vmem [#allocation2], %s239
        %p241 = pneg %p44
        %p242 = pneg %p41
        %p243 = pneg %p65
        %p244 = pneg %p62
        %p245 = pneg %p86
        %p246 = pneg %p83
        %p247 = pneg %p107
        %p248 = pneg %p104
        %p249 = pneg %p128
        %p250 = pneg %p125
        %p251 = pneg %p154
        %p252 = pneg %p151
        %s253 = sand.u32 %s141, 1
        %s254 = scalar_lea.sflag [#allocation4], %s253
        %s255 = sand.u32 %s141, 1
        %s256 = smul.addr %s255, 128
        %s257 = scalar_lea.vmem [#allocation7], %s256
        %s258 = smul.u32 32, %s23
        %s259 = smul.u32 32, %s23
        %v261 = vld [vmem:[%s227] sm:$0xf]
        %v262 = vld [vmem:[%s227 + $0x4] sm:$0xf]
        %v263 = vld [vmem:[%s227 + $0x8] sm:$0xf]
        %v264 = vld [vmem:[%s227 + $0xc] sm:$0xf]
        %v265 = vld [vmem:[%s227 + $0x10] sm:$0xf]
        %v266 = vld [vmem:[%s227 + $0x14] sm:$0xf]
        %v267 = vld [vmem:[%s227 + $0x18] sm:$0xf]
        %v268 = vld [vmem:[%s227 + $0x1c] sm:$0xf]
        %v269 = vld [vmem:[%s227 + $0x20] sm:$0xf]
        %v270 = vld [vmem:[%s227 + $0x24] sm:$0xf]
        %v271 = vld [vmem:[%s227 + $0x28] sm:$0xf]
        %v272 = vld [vmem:[%s227 + $0x2c] sm:$0xf]
        %v273 = vld [vmem:[%s227 + $0x30] sm:$0xf]
        %v274 = vld [vmem:[%s227 + $0x34] sm:$0xf]
        %v275 = vld [vmem:[%s227 + $0x38] sm:$0xf]
        %v276 = vld [vmem:[%s227 + $0x3c] sm:$0xf]
        %v277 = vld [vmem:[%s227 + $0x40] sm:$0xf]
        %v278 = vld [vmem:[%s227 + $0x44] sm:$0xf]
        %v279 = vld [vmem:[%s227 + $0x48] sm:$0xf]
        %v280 = vld [vmem:[%s227 + $0x4c] sm:$0xf]
        %v281 = vld [vmem:[%s227 + $0x50] sm:$0xf]
        %v282 = vld [vmem:[%s227 + $0x54] sm:$0xf]
        %v283 = vld [vmem:[%s227 + $0x58] sm:$0xf]
        %v284 = vld [vmem:[%s227 + $0x5c] sm:$0xf]
        %v285 = vld [vmem:[%s227 + $0x60] sm:$0xf]
        %v286 = vld [vmem:[%s227 + $0x64] sm:$0xf]
        %v287 = vld [vmem:[%s227 + $0x68] sm:$0xf]
        %v288 = vld [vmem:[%s227 + $0x6c] sm:$0xf]
        %v289 = vld [vmem:[%s227 + $0x70] sm:$0xf]
        %v290 = vld [vmem:[%s227 + $0x74] sm:$0xf]
        %v291 = vld [vmem:[%s227 + $0x78] sm:$0xf]
        %v292 = vld [vmem:[%s227 + $0x7c] sm:$0xf]
        %v293 = vunpack.c.l.bf16 %v261
        %v294 = vunpack.c.l.bf16 %v262
        %v295 = vunpack.c.l.bf16 %v263
        %v296 = vunpack.c.l.bf16 %v264
        %v297 = vunpack.c.l.bf16 %v265
        %v298 = vunpack.c.l.bf16 %v266
        %v299 = vunpack.c.l.bf16 %v267
        %v300 = vunpack.c.l.bf16 %v268
        %v301 = vunpack.c.l.bf16 %v269
        %v302 = vunpack.c.l.bf16 %v270
        %v303 = vunpack.c.l.bf16 %v271
        %v304 = vunpack.c.l.bf16 %v272
        %v305 = vunpack.c.l.bf16 %v273
        %v306 = vunpack.c.l.bf16 %v274
        %v307 = vunpack.c.l.bf16 %v275
        %v308 = vunpack.c.l.bf16 %v276
        %v309 = vunpack.c.l.bf16 %v277
        %v310 = vunpack.c.l.bf16 %v278
        %v311 = vunpack.c.l.bf16 %v279
        %v312 = vunpack.c.l.bf16 %v280
        %v313 = vunpack.c.l.bf16 %v281
        %v314 = vunpack.c.l.bf16 %v282
        %v315 = vunpack.c.l.bf16 %v283
        %v316 = vunpack.c.l.bf16 %v284
        %v317 = vunpack.c.l.bf16 %v285
        %v318 = vunpack.c.l.bf16 %v286
        %v319 = vunpack.c.l.bf16 %v287
        %v320 = vunpack.c.l.bf16 %v288
        %v321 = vunpack.c.l.bf16 %v289
        %v322 = vunpack.c.l.bf16 %v290
        %v323 = vunpack.c.l.bf16 %v291
        %v324 = vunpack.c.l.bf16 %v292
        %325 = vadd.xlane.f32.xlu0 %v293
        %v326 = vpop.xlane.xlu0 %325
        %327 = vadd.xlane.f32.xlu0 %v294
        %v328 = vpop.xlane.xlu0 %327
        %329 = vadd.xlane.f32.xlu0 %v295
        %v330 = vpop.xlane.xlu0 %329
        %331 = vadd.xlane.f32.xlu0 %v296
        %v332 = vpop.xlane.xlu0 %331
        %333 = vadd.xlane.f32.xlu0 %v297
        %v334 = vpop.xlane.xlu0 %333
        %335 = vadd.xlane.f32.xlu0 %v298
        %v336 = vpop.xlane.xlu0 %335
        %337 = vadd.xlane.f32.xlu0 %v299
        %v338 = vpop.xlane.xlu0 %337
        %339 = vadd.xlane.f32.xlu0 %v300
        %v340 = vpop.xlane.xlu0 %339
        %341 = vadd.xlane.f32.xlu0 %v301
        %v342 = vpop.xlane.xlu0 %341
        %343 = vadd.xlane.f32.xlu0 %v302
        %v344 = vpop.xlane.xlu0 %343
        %345 = vadd.xlane.f32.xlu0 %v303
        %v346 = vpop.xlane.xlu0 %345
        %347 = vadd.xlane.f32.xlu0 %v304
        %v348 = vpop.xlane.xlu0 %347
        %349 = vadd.xlane.f32.xlu0 %v305
        %v350 = vpop.xlane.xlu0 %349
        %351 = vadd.xlane.f32.xlu0 %v306
        %v352 = vpop.xlane.xlu0 %351
        %353 = vadd.xlane.f32.xlu0 %v307
        %v354 = vpop.xlane.xlu0 %353
        %355 = vadd.xlane.f32.xlu0 %v308
        %v356 = vpop.xlane.xlu0 %355
        %357 = vadd.xlane.f32.xlu0 %v309
        %v358 = vpop.xlane.xlu0 %357
        %359 = vadd.xlane.f32.xlu0 %v310
        %v360 = vpop.xlane.xlu0 %359
        %361 = vadd.xlane.f32.xlu0 %v311
        %v362 = vpop.xlane.xlu0 %361
        %363 = vadd.xlane.f32.xlu0 %v312
        %v364 = vpop.xlane.xlu0 %363
        %365 = vadd.xlane.f32.xlu0 %v313
        %v366 = vpop.xlane.xlu0 %365
        %367 = vadd.xlane.f32.xlu0 %v314
        %v368 = vpop.xlane.xlu0 %367
        %369 = vadd.xlane.f32.xlu0 %v315
        %v370 = vpop.xlane.xlu0 %369
        %371 = vadd.xlane.f32.xlu0 %v316
        %v372 = vpop.xlane.xlu0 %371
        %373 = vadd.xlane.f32.xlu0 %v317
        %v374 = vpop.xlane.xlu0 %373
        %375 = vadd.xlane.f32.xlu0 %v318
        %v376 = vpop.xlane.xlu0 %375
        %377 = vadd.xlane.f32.xlu0 %v319
        %v378 = vpop.xlane.xlu0 %377
        %379 = vadd.xlane.f32.xlu0 %v320
        %v380 = vpop.xlane.xlu0 %379
        %381 = vadd.xlane.f32.xlu0 %v321
        %v382 = vpop.xlane.xlu0 %381
        %383 = vadd.xlane.f32.xlu0 %v322
        %v384 = vpop.xlane.xlu0 %383
        %385 = vadd.xlane.f32.xlu0 %v323
        %v386 = vpop.xlane.xlu0 %385
        %387 = vadd.xlane.f32.xlu0 %v324
        %v388 = vpop.xlane.xlu0 %387
        %v389 = vmul.f32 %v293, %v293
        %v390 = vmul.f32 %v294, %v294
        %v391 = vmul.f32 %v295, %v295
        %v392 = vmul.f32 %v296, %v296
        %v393 = vmul.f32 %v297, %v297
        %v394 = vmul.f32 %v298, %v298
        %v395 = vmul.f32 %v299, %v299
        %v396 = vmul.f32 %v300, %v300
        %v397 = vmul.f32 %v301, %v301
        %v398 = vmul.f32 %v302, %v302
        %v399 = vmul.f32 %v303, %v303
        %v400 = vmul.f32 %v304, %v304
        %v401 = vmul.f32 %v305, %v305
        %v402 = vmul.f32 %v306, %v306
        %v403 = vmul.f32 %v307, %v307
        %v404 = vmul.f32 %v308, %v308
        %v405 = vmul.f32 %v309, %v309
        %v406 = vmul.f32 %v310, %v310
        %v407 = vmul.f32 %v311, %v311
        %v408 = vmul.f32 %v312, %v312
        %v409 = vmul.f32 %v313, %v313
        %v410 = vmul.f32 %v314, %v314
        %v411 = vmul.f32 %v315, %v315
        %v412 = vmul.f32 %v316, %v316
        %v413 = vmul.f32 %v317, %v317
        %v414 = vmul.f32 %v318, %v318
        %v415 = vmul.f32 %v319, %v319
        %v416 = vmul.f32 %v320, %v320
        %v417 = vmul.f32 %v321, %v321
        %v418 = vmul.f32 %v322, %v322
        %v419 = vmul.f32 %v323, %v323
        %v420 = vmul.f32 %v324, %v324
        %421 = vadd.xlane.f32.xlu0 %v389
        %v422 = vpop.xlane.xlu0 %421
        %423 = vadd.xlane.f32.xlu0 %v390
        %v424 = vpop.xlane.xlu0 %423
        %425 = vadd.xlane.f32.xlu0 %v391
        %v426 = vpop.xlane.xlu0 %425
        %427 = vadd.xlane.f32.xlu0 %v392
        %v428 = vpop.xlane.xlu0 %427
        %429 = vadd.xlane.f32.xlu0 %v393
        %v430 = vpop.xlane.xlu0 %429
        %431 = vadd.xlane.f32.xlu0 %v394
        %v432 = vpop.xlane.xlu0 %431
        %433 = vadd.xlane.f32.xlu0 %v395
        %v434 = vpop.xlane.xlu0 %433
        %435 = vadd.xlane.f32.xlu0 %v396
        %v436 = vpop.xlane.xlu0 %435
        %437 = vadd.xlane.f32.xlu0 %v397
        %v438 = vpop.xlane.xlu0 %437
        %439 = vadd.xlane.f32.xlu0 %v398
        %v440 = vpop.xlane.xlu0 %439
        %441 = vadd.xlane.f32.xlu0 %v399
        %v442 = vpop.xlane.xlu0 %441
        %443 = vadd.xlane.f32.xlu0 %v400
        %v444 = vpop.xlane.xlu0 %443
        %445 = vadd.xlane.f32.xlu0 %v401
        %v446 = vpop.xlane.xlu0 %445
        %447 = vadd.xlane.f32.xlu0 %v402
        %v448 = vpop.xlane.xlu0 %447
        %449 = vadd.xlane.f32.xlu0 %v403
        %v450 = vpop.xlane.xlu0 %449
        %451 = vadd.xlane.f32.xlu0 %v404
        %v452 = vpop.xlane.xlu0 %451
        %453 = vadd.xlane.f32.xlu0 %v405
        %v454 = vpop.xlane.xlu0 %453
        %455 = vadd.xlane.f32.xlu0 %v406
        %v456 = vpop.xlane.xlu0 %455
        %457 = vadd.xlane.f32.xlu0 %v407
        %v458 = vpop.xlane.xlu0 %457
        %459 = vadd.xlane.f32.xlu0 %v408
        %v460 = vpop.xlane.xlu0 %459
        %461 = vadd.xlane.f32.xlu0 %v409
        %v462 = vpop.xlane.xlu0 %461
        %463 = vadd.xlane.f32.xlu0 %v410
        %v464 = vpop.xlane.xlu0 %463
        %465 = vadd.xlane.f32.xlu0 %v411
        %v466 = vpop.xlane.xlu0 %465
        %467 = vadd.xlane.f32.xlu0 %v412
        %v468 = vpop.xlane.xlu0 %467
        %469 = vadd.xlane.f32.xlu0 %v413
        %v470 = vpop.xlane.xlu0 %469
        %471 = vadd.xlane.f32.xlu0 %v414
        %v472 = vpop.xlane.xlu0 %471
        %473 = vadd.xlane.f32.xlu0 %v415
        %v474 = vpop.xlane.xlu0 %473
        %475 = vadd.xlane.f32.xlu0 %v416
        %v476 = vpop.xlane.xlu0 %475
        %477 = vadd.xlane.f32.xlu0 %v417
        %v478 = vpop.xlane.xlu0 %477
        %479 = vadd.xlane.f32.xlu0 %v418
        %v480 = vpop.xlane.xlu0 %479
        %481 = vadd.xlane.f32.xlu0 %v419
        %v482 = vpop.xlane.xlu0 %481
        %483 = vadd.xlane.f32.xlu0 %v420
        %v484 = vpop.xlane.xlu0 %483
        %v485 = vmul.f32 %v326, 0.0078125
        %v486 = vmul.f32 %v328, 0.0078125
        %v487 = vmul.f32 %v330, 0.0078125
        %v488 = vmul.f32 %v332, 0.0078125
        %v489 = vmul.f32 %v334, 0.0078125
        %v490 = vmul.f32 %v336, 0.0078125
        %v491 = vmul.f32 %v338, 0.0078125
        %v492 = vmul.f32 %v340, 0.0078125
        %v493 = vmul.f32 %v342, 0.0078125
        %v494 = vmul.f32 %v344, 0.0078125
        %v495 = vmul.f32 %v346, 0.0078125
        %v496 = vmul.f32 %v348, 0.0078125
        %v497 = vmul.f32 %v350, 0.0078125
        %v498 = vmul.f32 %v352, 0.0078125
        %v499 = vmul.f32 %v354, 0.0078125
        %v500 = vmul.f32 %v356, 0.0078125
        %v501 = vmul.f32 %v358, 0.0078125
        %v502 = vmul.f32 %v360, 0.0078125
        %v503 = vmul.f32 %v362, 0.0078125
        %v504 = vmul.f32 %v364, 0.0078125
        %v505 = vmul.f32 %v366, 0.0078125
        %v506 = vmul.f32 %v368, 0.0078125
        %v507 = vmul.f32 %v370, 0.0078125
        %v508 = vmul.f32 %v372, 0.0078125
        %v509 = vmul.f32 %v374, 0.0078125
        %v510 = vmul.f32 %v376, 0.0078125
        %v511 = vmul.f32 %v378, 0.0078125
        %v512 = vmul.f32 %v380, 0.0078125
        %v513 = vmul.f32 %v382, 0.0078125
        %v514 = vmul.f32 %v384, 0.0078125
        %v515 = vmul.f32 %v386, 0.0078125
        %v516 = vmul.f32 %v388, 0.0078125
        %v517 = vmul.f32 %v326, %v485
        %v518 = vmul.f32 %v328, %v486
        %v519 = vmul.f32 %v330, %v487
        %v520 = vmul.f32 %v332, %v488
        %v521 = vmul.f32 %v334, %v489
        %v522 = vmul.f32 %v336, %v490
        %v523 = vmul.f32 %v338, %v491
        %v524 = vmul.f32 %v340, %v492
        %v525 = vmul.f32 %v342, %v493
        %v526 = vmul.f32 %v344, %v494
        %v527 = vmul.f32 %v346, %v495
        %v528 = vmul.f32 %v348, %v496
        %v529 = vmul.f32 %v350, %v497
        %v530 = vmul.f32 %v352, %v498
        %v531 = vmul.f32 %v354, %v499
        %v532 = vmul.f32 %v356, %v500
        %v533 = vmul.f32 %v358, %v501
        %v534 = vmul.f32 %v360, %v502
        %v535 = vmul.f32 %v362, %v503
        %v536 = vmul.f32 %v364, %v504
        %v537 = vmul.f32 %v366, %v505
        %v538 = vmul.f32 %v368, %v506
        %v539 = vmul.f32 %v370, %v507
        %v540 = vmul.f32 %v372, %v508
        %v541 = vmul.f32 %v374, %v509
        %v542 = vmul.f32 %v376, %v510
        %v543 = vmul.f32 %v378, %v511
        %v544 = vmul.f32 %v380, %v512
        %v545 = vmul.f32 %v382, %v513
        %v546 = vmul.f32 %v384, %v514
        %v547 = vmul.f32 %v386, %v515
        %v548 = vmul.f32 %v388, %v516
        %v549 = vsub.f32 %v422, %v517
        %v550 = vsub.f32 %v424, %v518
        %v551 = vsub.f32 %v426, %v519
        %v552 = vsub.f32 %v428, %v520
        %v553 = vsub.f32 %v430, %v521
        %v554 = vsub.f32 %v432, %v522
        %v555 = vsub.f32 %v434, %v523
        %v556 = vsub.f32 %v436, %v524
        %v557 = vsub.f32 %v438, %v525
        %v558 = vsub.f32 %v440, %v526
        %v559 = vsub.f32 %v442, %v527
        %v560 = vsub.f32 %v444, %v528
        %v561 = vsub.f32 %v446, %v529
        %v562 = vsub.f32 %v448, %v530
        %v563 = vsub.f32 %v450, %v531
        %v564 = vsub.f32 %v452, %v532
        %v565 = vsub.f32 %v454, %v533
        %v566 = vsub.f32 %v456, %v534
        %v567 = vsub.f32 %v458, %v535
        %v568 = vsub.f32 %v460, %v536
        %v569 = vsub.f32 %v462, %v537
        %v570 = vsub.f32 %v464, %v538
        %v571 = vsub.f32 %v466, %v539
        %v572 = vsub.f32 %v468, %v540
        %v573 = vsub.f32 %v470, %v541
        %v574 = vsub.f32 %v472, %v542
        %v575 = vsub.f32 %v474, %v543
        %v576 = vsub.f32 %v476, %v544
        %v577 = vsub.f32 %v478, %v545
        %v578 = vsub.f32 %v480, %v546
        %v579 = vsub.f32 %v482, %v547
        %v580 = vsub.f32 %v484, %v548
        %v581 = vmul.f32 %v549, 0.007874016
        %v582 = vmul.f32 %v550, 0.007874016
        %v583 = vmul.f32 %v551, 0.007874016
        %v584 = vmul.f32 %v552, 0.007874016
        %v585 = vmul.f32 %v553, 0.007874016
        %v586 = vmul.f32 %v554, 0.007874016
        %v587 = vmul.f32 %v555, 0.007874016
        %v588 = vmul.f32 %v556, 0.007874016
        %v589 = vmul.f32 %v557, 0.007874016
        %v590 = vmul.f32 %v558, 0.007874016
        %v591 = vmul.f32 %v559, 0.007874016
        %v592 = vmul.f32 %v560, 0.007874016
        %v593 = vmul.f32 %v561, 0.007874016
        %v594 = vmul.f32 %v562, 0.007874016
        %v595 = vmul.f32 %v563, 0.007874016
        %v596 = vmul.f32 %v564, 0.007874016
        %v597 = vmul.f32 %v565, 0.007874016
        %v598 = vmul.f32 %v566, 0.007874016
        %v599 = vmul.f32 %v567, 0.007874016
        %v600 = vmul.f32 %v568, 0.007874016
        %v601 = vmul.f32 %v569, 0.007874016
        %v602 = vmul.f32 %v570, 0.007874016
        %v603 = vmul.f32 %v571, 0.007874016
        %v604 = vmul.f32 %v572, 0.007874016
        %v605 = vmul.f32 %v573, 0.007874016
        %v606 = vmul.f32 %v574, 0.007874016
        %v607 = vmul.f32 %v575, 0.007874016
        %v608 = vmul.f32 %v576, 0.007874016
        %v609 = vmul.f32 %v577, 0.007874016
        %v610 = vmul.f32 %v578, 0.007874016
        %v611 = vmul.f32 %v579, 0.007874016
        %v612 = vmul.f32 %v580, 0.007874016
        %v613 = vmax.f32 %v581, 0.0
        %v614 = vmax.f32 %v582, 0.0
        %v615 = vmax.f32 %v583, 0.0
        %v616 = vmax.f32 %v584, 0.0
        %v617 = vmax.f32 %v585, 0.0
        %v618 = vmax.f32 %v586, 0.0
        %v619 = vmax.f32 %v587, 0.0
        %v620 = vmax.f32 %v588, 0.0
        %v621 = vmax.f32 %v589, 0.0
        %v622 = vmax.f32 %v590, 0.0
        %v623 = vmax.f32 %v591, 0.0
        %v624 = vmax.f32 %v592, 0.0
        %v625 = vmax.f32 %v593, 0.0
        %v626 = vmax.f32 %v594, 0.0
        %v627 = vmax.f32 %v595, 0.0
        %v628 = vmax.f32 %v596, 0.0
        %v629 = vmax.f32 %v597, 0.0
        %v630 = vmax.f32 %v598, 0.0
        %v631 = vmax.f32 %v599, 0.0
        %v632 = vmax.f32 %v600, 0.0
        %v633 = vmax.f32 %v601, 0.0
        %v634 = vmax.f32 %v602, 0.0
        %v635 = vmax.f32 %v603, 0.0
        %v636 = vmax.f32 %v604, 0.0
        %v637 = vmax.f32 %v605, 0.0
        %v638 = vmax.f32 %v606, 0.0
        %v639 = vmax.f32 %v607, 0.0
        %v640 = vmax.f32 %v608, 0.0
        %v641 = vmax.f32 %v609, 0.0
        %v642 = vmax.f32 %v610, 0.0
        %v643 = vmax.f32 %v611, 0.0
        %v644 = vmax.f32 %v612, 0.0
        %v645 = vrsqrt.pop %v613
        %v646 = vmul.f32 %v613, %v645
        %vm647 = vcmp.eq.f32.partialorder %v613, inf
        %v648 = vsel %vm647, %v613, %v646
        %vm649 = vcmp.eq.f32.partialorder %v613, 0.0
        %v650 = vand.u32 %v613, 2147483648
        %v651 = vsel %vm649, %v650, %v648
        %v652 = vrsqrt.pop %v614
        %v653 = vmul.f32 %v614, %v652
        %vm654 = vcmp.eq.f32.partialorder %v614, inf
        %v655 = vsel %vm654, %v614, %v653
        %vm656 = vcmp.eq.f32.partialorder %v614, 0.0
        %v657 = vand.u32 %v614, 2147483648
        %v658 = vsel %vm656, %v657, %v655
        %v659 = vrsqrt.pop %v615
        %v660 = vmul.f32 %v615, %v659
        %vm661 = vcmp.eq.f32.partialorder %v615, inf
        %v662 = vsel %vm661, %v615, %v660
        %vm663 = vcmp.eq.f32.partialorder %v615, 0.0
        %v664 = vand.u32 %v615, 2147483648
        %v665 = vsel %vm663, %v664, %v662
        %v666 = vrsqrt.pop %v616
        %v667 = vmul.f32 %v616, %v666
        %vm668 = vcmp.eq.f32.partialorder %v616, inf
        %v669 = vsel %vm668, %v616, %v667
        %vm670 = vcmp.eq.f32.partialorder %v616, 0.0
        %v671 = vand.u32 %v616, 2147483648
        %v672 = vsel %vm670, %v671, %v669
        %v673 = vrsqrt.pop %v617
        %v674 = vmul.f32 %v617, %v673
        %vm675 = vcmp.eq.f32.partialorder %v617, inf
        %v676 = vsel %vm675, %v617, %v674
        %vm677 = vcmp.eq.f32.partialorder %v617, 0.0
        %v678 = vand.u32 %v617, 2147483648
        %v679 = vsel %vm677, %v678, %v676
        %v680 = vrsqrt.pop %v618
        %v681 = vmul.f32 %v618, %v680
        %vm682 = vcmp.eq.f32.partialorder %v618, inf
        %v683 = vsel %vm682, %v618, %v681
        %vm684 = vcmp.eq.f32.partialorder %v618, 0.0
        %v685 = vand.u32 %v618, 2147483648
        %v686 = vsel %vm684, %v685, %v683
        %v687 = vrsqrt.pop %v619
        %v688 = vmul.f32 %v619, %v687
        %vm689 = vcmp.eq.f32.partialorder %v619, inf
        %v690 = vsel %vm689, %v619, %v688
        %vm691 = vcmp.eq.f32.partialorder %v619, 0.0
        %v692 = vand.u32 %v619, 2147483648
        %v693 = vsel %vm691, %v692, %v690
        %v694 = vrsqrt.pop %v620
        %v695 = vmul.f32 %v620, %v694
        %vm696 = vcmp.eq.f32.partialorder %v620, inf
        %v697 = vsel %vm696, %v620, %v695
        %vm698 = vcmp.eq.f32.partialorder %v620, 0.0
        %v699 = vand.u32 %v620, 2147483648
        %v700 = vsel %vm698, %v699, %v697
        %v701 = vrsqrt.pop %v621
        %v702 = vmul.f32 %v621, %v701
        %vm703 = vcmp.eq.f32.partialorder %v621, inf
        %v704 = vsel %vm703, %v621, %v702
        %vm705 = vcmp.eq.f32.partialorder %v621, 0.0
        %v706 = vand.u32 %v621, 2147483648
        %v707 = vsel %vm705, %v706, %v704
        %v708 = vrsqrt.pop %v622
        %v709 = vmul.f32 %v622, %v708
        %vm710 = vcmp.eq.f32.partialorder %v622, inf
        %v711 = vsel %vm710, %v622, %v709
        %vm712 = vcmp.eq.f32.partialorder %v622, 0.0
        %v713 = vand.u32 %v622, 2147483648
        %v714 = vsel %vm712, %v713, %v711
        %v715 = vrsqrt.pop %v623
        %v716 = vmul.f32 %v623, %v715
        %vm717 = vcmp.eq.f32.partialorder %v623, inf
        %v718 = vsel %vm717, %v623, %v716
        %vm719 = vcmp.eq.f32.partialorder %v623, 0.0
        %v720 = vand.u32 %v623, 2147483648
        %v721 = vsel %vm719, %v720, %v718
        %v722 = vrsqrt.pop %v624
        %v723 = vmul.f32 %v624, %v722
        %vm724 = vcmp.eq.f32.partialorder %v624, inf
        %v725 = vsel %vm724, %v624, %v723
        %vm726 = vcmp.eq.f32.partialorder %v624, 0.0
        %v727 = vand.u32 %v624, 2147483648
        %v728 = vsel %vm726, %v727, %v725
        %v729 = vrsqrt.pop %v625
        %v730 = vmul.f32 %v625, %v729
        %vm731 = vcmp.eq.f32.partialorder %v625, inf
        %v732 = vsel %vm731, %v625, %v730
        %vm733 = vcmp.eq.f32.partialorder %v625, 0.0
        %v734 = vand.u32 %v625, 2147483648
        %v735 = vsel %vm733, %v734, %v732
        %v736 = vrsqrt.pop %v626
        %v737 = vmul.f32 %v626, %v736
        %vm738 = vcmp.eq.f32.partialorder %v626, inf
        %v739 = vsel %vm738, %v626, %v737
        %vm740 = vcmp.eq.f32.partialorder %v626, 0.0
        %v741 = vand.u32 %v626, 2147483648
        %v742 = vsel %vm740, %v741, %v739
        %v743 = vrsqrt.pop %v627
        %v744 = vmul.f32 %v627, %v743
        %vm745 = vcmp.eq.f32.partialorder %v627, inf
        %v746 = vsel %vm745, %v627, %v744
        %vm747 = vcmp.eq.f32.partialorder %v627, 0.0
        %v748 = vand.u32 %v627, 2147483648
        %v749 = vsel %vm747, %v748, %v746
        %v750 = vrsqrt.pop %v628
        %v751 = vmul.f32 %v628, %v750
        %vm752 = vcmp.eq.f32.partialorder %v628, inf
        %v753 = vsel %vm752, %v628, %v751
        %vm754 = vcmp.eq.f32.partialorder %v628, 0.0
        %v755 = vand.u32 %v628, 2147483648
        %v756 = vsel %vm754, %v755, %v753
        %v757 = vrsqrt.pop %v629
        %v758 = vmul.f32 %v629, %v757
        %vm759 = vcmp.eq.f32.partialorder %v629, inf
        %v760 = vsel %vm759, %v629, %v758
        %vm761 = vcmp.eq.f32.partialorder %v629, 0.0
        %v762 = vand.u32 %v629, 2147483648
        %v763 = vsel %vm761, %v762, %v760
        %v764 = vrsqrt.pop %v630
        %v765 = vmul.f32 %v630, %v764
        %vm766 = vcmp.eq.f32.partialorder %v630, inf
        %v767 = vsel %vm766, %v630, %v765
        %vm768 = vcmp.eq.f32.partialorder %v630, 0.0
        %v769 = vand.u32 %v630, 2147483648
        %v770 = vsel %vm768, %v769, %v767
        %v771 = vrsqrt.pop %v631
        %v772 = vmul.f32 %v631, %v771
        %vm773 = vcmp.eq.f32.partialorder %v631, inf
        %v774 = vsel %vm773, %v631, %v772
        %vm775 = vcmp.eq.f32.partialorder %v631, 0.0
        %v776 = vand.u32 %v631, 2147483648
        %v777 = vsel %vm775, %v776, %v774
        %v778 = vrsqrt.pop %v632
        %v779 = vmul.f32 %v632, %v778
        %vm780 = vcmp.eq.f32.partialorder %v632, inf
        %v781 = vsel %vm780, %v632, %v779
        %vm782 = vcmp.eq.f32.partialorder %v632, 0.0
        %v783 = vand.u32 %v632, 2147483648
        %v784 = vsel %vm782, %v783, %v781
        %v785 = vrsqrt.pop %v633
        %v786 = vmul.f32 %v633, %v785
        %vm787 = vcmp.eq.f32.partialorder %v633, inf
        %v788 = vsel %vm787, %v633, %v786
        %vm789 = vcmp.eq.f32.partialorder %v633, 0.0
        %v790 = vand.u32 %v633, 2147483648
        %v791 = vsel %vm789, %v790, %v788
        %v792 = vrsqrt.pop %v634
        %v793 = vmul.f32 %v634, %v792
        %vm794 = vcmp.eq.f32.partialorder %v634, inf
        %v795 = vsel %vm794, %v634, %v793
        %vm796 = vcmp.eq.f32.partialorder %v634, 0.0
        %v797 = vand.u32 %v634, 2147483648
        %v798 = vsel %vm796, %v797, %v795
        %v799 = vrsqrt.pop %v635
        %v800 = vmul.f32 %v635, %v799
        %vm801 = vcmp.eq.f32.partialorder %v635, inf
        %v802 = vsel %vm801, %v635, %v800
        %vm803 = vcmp.eq.f32.partialorder %v635, 0.0
        %v804 = vand.u32 %v635, 2147483648
        %v805 = vsel %vm803, %v804, %v802
        %v806 = vrsqrt.pop %v636
        %v807 = vmul.f32 %v636, %v806
        %vm808 = vcmp.eq.f32.partialorder %v636, inf
        %v809 = vsel %vm808, %v636, %v807
        %vm810 = vcmp.eq.f32.partialorder %v636, 0.0
        %v811 = vand.u32 %v636, 2147483648
        %v812 = vsel %vm810, %v811, %v809
        %v813 = vrsqrt.pop %v637
        %v814 = vmul.f32 %v637, %v813
        %vm815 = vcmp.eq.f32.partialorder %v637, inf
        %v816 = vsel %vm815, %v637, %v814
        %vm817 = vcmp.eq.f32.partialorder %v637, 0.0
        %v818 = vand.u32 %v637, 2147483648
        %v819 = vsel %vm817, %v818, %v816
        %v820 = vrsqrt.pop %v638
        %v821 = vmul.f32 %v638, %v820
        %vm822 = vcmp.eq.f32.partialorder %v638, inf
        %v823 = vsel %vm822, %v638, %v821
        %vm824 = vcmp.eq.f32.partialorder %v638, 0.0
        %v825 = vand.u32 %v638, 2147483648
        %v826 = vsel %vm824, %v825, %v823
        %v827 = vrsqrt.pop %v639
        %v828 = vmul.f32 %v639, %v827
        %vm829 = vcmp.eq.f32.partialorder %v639, inf
        %v830 = vsel %vm829, %v639, %v828
        %vm831 = vcmp.eq.f32.partialorder %v639, 0.0
        %v832 = vand.u32 %v639, 2147483648
        %v833 = vsel %vm831, %v832, %v830
        %v834 = vrsqrt.pop %v640
        %v835 = vmul.f32 %v640, %v834
        %vm836 = vcmp.eq.f32.partialorder %v640, inf
        %v837 = vsel %vm836, %v640, %v835
        %vm838 = vcmp.eq.f32.partialorder %v640, 0.0
        %v839 = vand.u32 %v640, 2147483648
        %v840 = vsel %vm838, %v839, %v837
        %v841 = vrsqrt.pop %v641
        %v842 = vmul.f32 %v641, %v841
        %vm843 = vcmp.eq.f32.partialorder %v641, inf
        %v844 = vsel %vm843, %v641, %v842
        %vm845 = vcmp.eq.f32.partialorder %v641, 0.0
        %v846 = vand.u32 %v641, 2147483648
        %v847 = vsel %vm845, %v846, %v844
        %v848 = vrsqrt.pop %v642
        %v849 = vmul.f32 %v642, %v848
        %vm850 = vcmp.eq.f32.partialorder %v642, inf
        %v851 = vsel %vm850, %v642, %v849
        %vm852 = vcmp.eq.f32.partialorder %v642, 0.0
        %v853 = vand.u32 %v642, 2147483648
        %v854 = vsel %vm852, %v853, %v851
        %v855 = vrsqrt.pop %v643
        %v856 = vmul.f32 %v643, %v855
        %vm857 = vcmp.eq.f32.partialorder %v643, inf
        %v858 = vsel %vm857, %v643, %v856
        %vm859 = vcmp.eq.f32.partialorder %v643, 0.0
        %v860 = vand.u32 %v643, 2147483648
        %v861 = vsel %vm859, %v860, %v858
        %v862 = vrsqrt.pop %v644
        %v863 = vmul.f32 %v644, %v862
        %vm864 = vcmp.eq.f32.partialorder %v644, inf
        %v865 = vsel %vm864, %v644, %v863
        %vm866 = vcmp.eq.f32.partialorder %v644, 0.0
        %v867 = vand.u32 %v644, 2147483648
        %v868 = vsel %vm866, %v867, %v865
        %v869 = vadd.f32 %v651, 1e-06
        %v870 = vadd.f32 %v658, 1e-06
        %v871 = vadd.f32 %v665, 1e-06
        %v872 = vadd.f32 %v672, 1e-06
        %v873 = vadd.f32 %v679, 1e-06
        %v874 = vadd.f32 %v686, 1e-06
        %v875 = vadd.f32 %v693, 1e-06
        %v876 = vadd.f32 %v700, 1e-06
        %v877 = vadd.f32 %v707, 1e-06
        %v878 = vadd.f32 %v714, 1e-06
        %v879 = vadd.f32 %v721, 1e-06
        %v880 = vadd.f32 %v728, 1e-06
        %v881 = vadd.f32 %v735, 1e-06
        %v882 = vadd.f32 %v742, 1e-06
        %v883 = vadd.f32 %v749, 1e-06
        %v884 = vadd.f32 %v756, 1e-06
        %v885 = vadd.f32 %v763, 1e-06
        %v886 = vadd.f32 %v770, 1e-06
        %v887 = vadd.f32 %v777, 1e-06
        %v888 = vadd.f32 %v784, 1e-06
        %v889 = vadd.f32 %v791, 1e-06
        %v890 = vadd.f32 %v798, 1e-06
        %v891 = vadd.f32 %v805, 1e-06
        %v892 = vadd.f32 %v812, 1e-06
        %v893 = vadd.f32 %v819, 1e-06
        %v894 = vadd.f32 %v826, 1e-06
        %v895 = vadd.f32 %v833, 1e-06
        %v896 = vadd.f32 %v840, 1e-06
        %v897 = vadd.f32 %v847, 1e-06
        %v898 = vadd.f32 %v854, 1e-06
        %v899 = vadd.f32 %v861, 1e-06
        %v900 = vadd.f32 %v868, 1e-06
        %v901 = vrcp.pop %v869
        %v902 = vrcp.pop %v870
        %v903 = vrcp.pop %v871
        %v904 = vrcp.pop %v872
        %v905 = vrcp.pop %v873
        %v906 = vrcp.pop %v874
        %v907 = vrcp.pop %v875
        %v908 = vrcp.pop %v876
        %v909 = vrcp.pop %v877
        %v910 = vrcp.pop %v878
        %v911 = vrcp.pop %v879
        %v912 = vrcp.pop %v880
        %v913 = vrcp.pop %v881
        %v914 = vrcp.pop %v882
        %v915 = vrcp.pop %v883
        %v916 = vrcp.pop %v884
        %v917 = vrcp.pop %v885
        %v918 = vrcp.pop %v886
        %v919 = vrcp.pop %v887
        %v920 = vrcp.pop %v888
        %v921 = vrcp.pop %v889
        %v922 = vrcp.pop %v890
        %v923 = vrcp.pop %v891
        %v924 = vrcp.pop %v892
        %v925 = vrcp.pop %v893
        %v926 = vrcp.pop %v894
        %v927 = vrcp.pop %v895
        %v928 = vrcp.pop %v896
        %v929 = vrcp.pop %v897
        %v930 = vrcp.pop %v898
        %v931 = vrcp.pop %v899
        %v932 = vrcp.pop %v900
        %v933 = vsub.f32 %v293, %v485
        %v934 = vsub.f32 %v294, %v486
        %v935 = vsub.f32 %v295, %v487
        %v936 = vsub.f32 %v296, %v488
        %v937 = vsub.f32 %v297, %v489
        %v938 = vsub.f32 %v298, %v490
        %v939 = vsub.f32 %v299, %v491
        %v940 = vsub.f32 %v300, %v492
        %v941 = vsub.f32 %v301, %v493
        %v942 = vsub.f32 %v302, %v494
        %v943 = vsub.f32 %v303, %v495
        %v944 = vsub.f32 %v304, %v496
        %v945 = vsub.f32 %v305, %v497
        %v946 = vsub.f32 %v306, %v498
        %v947 = vsub.f32 %v307, %v499
        %v948 = vsub.f32 %v308, %v500
        %v949 = vsub.f32 %v309, %v501
        %v950 = vsub.f32 %v310, %v502
        %v951 = vsub.f32 %v311, %v503
        %v952 = vsub.f32 %v312, %v504
        %v953 = vsub.f32 %v313, %v505
        %v954 = vsub.f32 %v314, %v506
        %v955 = vsub.f32 %v315, %v507
        %v956 = vsub.f32 %v316, %v508
        %v957 = vsub.f32 %v317, %v509
        %v958 = vsub.f32 %v318, %v510
        %v959 = vsub.f32 %v319, %v511
        %v960 = vsub.f32 %v320, %v512
        %v961 = vsub.f32 %v321, %v513
        %v962 = vsub.f32 %v322, %v514
        %v963 = vsub.f32 %v323, %v515
        %v964 = vsub.f32 %v324, %v516
        %v965 = vld [vmem:[%s1] sm:$0x1]
        %v967 = vlaneseq
        %v968 = vshrl.u32 %v967, 7
        %v969 = vsub.s32 0, %v968
        %v970 = vrot.slane %v965, %v969
        %v972 = vmul.f32 %v901, %v970
        %v973 = vmul.f32 %v902, %v970
        %v974 = vmul.f32 %v903, %v970
        %v975 = vmul.f32 %v904, %v970
        %v976 = vmul.f32 %v905, %v970
        %v977 = vmul.f32 %v906, %v970
        %v978 = vmul.f32 %v907, %v970
        %v979 = vmul.f32 %v908, %v970
        %v980 = vmul.f32 %v909, %v970
        %v981 = vmul.f32 %v910, %v970
        %v982 = vmul.f32 %v911, %v970
        %v983 = vmul.f32 %v912, %v970
        %v984 = vmul.f32 %v913, %v970
        %v985 = vmul.f32 %v914, %v970
        %v986 = vmul.f32 %v915, %v970
        %v987 = vmul.f32 %v916, %v970
        %v988 = vmul.f32 %v917, %v970
        %v989 = vmul.f32 %v918, %v970
        %v990 = vmul.f32 %v919, %v970
        %v991 = vmul.f32 %v920, %v970
        %v992 = vmul.f32 %v921, %v970
        %v993 = vmul.f32 %v922, %v970
        %v994 = vmul.f32 %v923, %v970
        %v995 = vmul.f32 %v924, %v970
        %v996 = vmul.f32 %v925, %v970
        %v997 = vmul.f32 %v926, %v970
        %v998 = vmul.f32 %v927, %v970
        %v999 = vmul.f32 %v928, %v970
        %v1000 = vmul.f32 %v929, %v970
        %v1001 = vmul.f32 %v930, %v970
        %v1002 = vmul.f32 %v931, %v970
        %v1003 = vmul.f32 %v932, %v970
        %v1004 = vmul.f32 %v933, %v972
        %v1005 = vmul.f32 %v934, %v973
        %v1006 = vmul.f32 %v935, %v974
        %v1007 = vmul.f32 %v936, %v975
        %v1008 = vmul.f32 %v937, %v976
        %v1009 = vmul.f32 %v938, %v977
        %v1010 = vmul.f32 %v939, %v978
        %v1011 = vmul.f32 %v940, %v979
        %v1012 = vmul.f32 %v941, %v980
        %v1013 = vmul.f32 %v942, %v981
        %v1014 = vmul.f32 %v943, %v982
        %v1015 = vmul.f32 %v944, %v983
        %v1016 = vmul.f32 %v945, %v984
        %v1017 = vmul.f32 %v946, %v985
        %v1018 = vmul.f32 %v947, %v986
        %v1019 = vmul.f32 %v948, %v987
        %v1020 = vmul.f32 %v949, %v988
        %v1021 = vmul.f32 %v950, %v989
        %v1022 = vmul.f32 %v951, %v990
        %v1023 = vmul.f32 %v952, %v991
        %v1024 = vmul.f32 %v953, %v992
        %v1025 = vmul.f32 %v954, %v993
        %v1026 = vmul.f32 %v955, %v994
        %v1027 = vmul.f32 %v956, %v995
        %v1028 = vmul.f32 %v957, %v996
        %v1029 = vmul.f32 %v958, %v997
        %v1030 = vmul.f32 %v959, %v998
        %v1031 = vmul.f32 %v960, %v999
        %v1032 = vmul.f32 %v961, %v1000
        %v1033 = vmul.f32 %v962, %v1001
        %v1034 = vmul.f32 %v963, %v1002
        %v1035 = vmul.f32 %v964, %v1003
        %v1036 = vld [vmem:[%s2] sm:$0x1]
        %v1038 = vlaneseq
        %v1039 = vshrl.u32 %v1038, 7
        %v1040 = vsub.s32 0, %v1039
        %v1041 = vrot.slane %v1036, %v1040
        %v1043 = vadd.f32 %v1004, %v1041
        %v1044 = vadd.f32 %v1005, %v1041
        %v1045 = vadd.f32 %v1006, %v1041
        %v1046 = vadd.f32 %v1007, %v1041
        %v1047 = vadd.f32 %v1008, %v1041
        %v1048 = vadd.f32 %v1009, %v1041
        %v1049 = vadd.f32 %v1010, %v1041
        %v1050 = vadd.f32 %v1011, %v1041
        %v1051 = vadd.f32 %v1012, %v1041
        %v1052 = vadd.f32 %v1013, %v1041
        %v1053 = vadd.f32 %v1014, %v1041
        %v1054 = vadd.f32 %v1015, %v1041
        %v1055 = vadd.f32 %v1016, %v1041
        %v1056 = vadd.f32 %v1017, %v1041
        %v1057 = vadd.f32 %v1018, %v1041
        %v1058 = vadd.f32 %v1019, %v1041
        %v1059 = vadd.f32 %v1020, %v1041
        %v1060 = vadd.f32 %v1021, %v1041
        %v1061 = vadd.f32 %v1022, %v1041
        %v1062 = vadd.f32 %v1023, %v1041
        %v1063 = vadd.f32 %v1024, %v1041
        %v1064 = vadd.f32 %v1025, %v1041
        %v1065 = vadd.f32 %v1026, %v1041
        %v1066 = vadd.f32 %v1027, %v1041
        %v1067 = vadd.f32 %v1028, %v1041
        %v1068 = vadd.f32 %v1029, %v1041
        %v1069 = vadd.f32 %v1030, %v1041
        %v1070 = vadd.f32 %v1031, %v1041
        %v1071 = vadd.f32 %v1032, %v1041
        %v1072 = vadd.f32 %v1033, %v1041
        %v1073 = vadd.f32 %v1034, %v1041
        %v1074 = vadd.f32 %v1035, %v1041
        %v1075 = vpack.c.bf16 %v1044, %v1043
        %v1076 = vpack.c.bf16 %v1046, %v1045
        %v1077 = vpack.c.bf16 %v1048, %v1047
        %v1078 = vpack.c.bf16 %v1050, %v1049
        %v1079 = vpack.c.bf16 %v1052, %v1051
        %v1080 = vpack.c.bf16 %v1054, %v1053
        %v1081 = vpack.c.bf16 %v1056, %v1055
        %v1082 = vpack.c.bf16 %v1058, %v1057
        %v1083 = vpack.c.bf16 %v1060, %v1059
        %v1084 = vpack.c.bf16 %v1062, %v1061
        %v1085 = vpack.c.bf16 %v1064, %v1063
        %v1086 = vpack.c.bf16 %v1066, %v1065
        %v1087 = vpack.c.bf16 %v1068, %v1067
        %v1088 = vpack.c.bf16 %v1070, %v1069
        %v1089 = vpack.c.bf16 %v1072, %v1071
        %v1090 = vpack.c.bf16 %v1074, %v1073
        %v1091 = vld [vmem:[#allocation5] sm:$0xf]
        %v1092 = vld [vmem:[#allocation5 + $0x4] sm:$0xf]
        %v1093 = vld [vmem:[#allocation5 + $0x8] sm:$0xf]
        %v1094 = vld [vmem:[#allocation5 + $0xc] sm:$0xf]
        %v1095 = vld [vmem:[#allocation5 + $0x10] sm:$0xf]
        %v1096 = vld [vmem:[#allocation5 + $0x14] sm:$0xf]
        %v1097 = vld [vmem:[#allocation5 + $0x18] sm:$0xf]
        %v1098 = vld [vmem:[#allocation5 + $0x1c] sm:$0xf]
        %v1099 = vld [vmem:[#allocation5 + $0x20] sm:$0xf]
        %v1100 = vld [vmem:[#allocation5 + $0x24] sm:$0xf]
        %v1101 = vld [vmem:[#allocation5 + $0x28] sm:$0xf]
        %v1102 = vld [vmem:[#allocation5 + $0x2c] sm:$0xf]
        %v1103 = vld [vmem:[#allocation5 + $0x30] sm:$0xf]
        %v1104 = vld [vmem:[#allocation5 + $0x34] sm:$0xf]
        %v1105 = vld [vmem:[#allocation5 + $0x38] sm:$0xf]
        %v1106 = vld [vmem:[#allocation5 + $0x3c] sm:$0xf]
        %v1107 = vld [vmem:[%s4] sm:$0x1]
        %v1109 = vlaneseq
        %v1110 = vshrl.u32 %v1109, 7
        %v1111 = vsub.s32 0, %v1110
        %v1112 = vrot.slane %v1107, %v1111
        %v1130 = vunpack.c.l.b16 %v1091
        %v1131 = vunpack.c.l.b16 %v1092
        %v1132 = vunpack.c.l.b16 %v1093
        %v1133 = vunpack.c.l.b16 %v1094
        %v1134 = vunpack.c.l.b16 %v1095
        %v1135 = vunpack.c.l.b16 %v1096
        %v1136 = vunpack.c.l.b16 %v1097
        %v1137 = vunpack.c.l.b16 %v1098
        %v1138 = vunpack.c.l.b16 %v1099
        %v1139 = vunpack.c.l.b16 %v1100
        %v1140 = vunpack.c.l.b16 %v1101
        %v1141 = vunpack.c.l.b16 %v1102
        %v1142 = vunpack.c.l.b16 %v1103
        %v1143 = vunpack.c.l.b16 %v1104
        %v1144 = vunpack.c.l.b16 %v1105
        %v1145 = vunpack.c.l.b16 %v1106
        %v1146 = vpack.c.b16 %v1131, %v1130
        %v1147 = vpack.c.b16 %v1133, %v1132
        %v1148 = vpack.c.b16 %v1135, %v1134
        %v1149 = vpack.c.b16 %v1137, %v1136
        %v1150 = vpack.c.b16 %v1139, %v1138
        %v1151 = vpack.c.b16 %v1141, %v1140
        %v1152 = vpack.c.b16 %v1143, %v1142
        %v1153 = vpack.c.b16 %v1145, %v1144
        %1162 = vmatprep.subr.bf16.mxu0 0
        %1163 = vmatpush1.bf16.msra.mxu0 %v1146
        %1164 = vmatprep.subr.bf16.mxu0 0
        %1165 = vmatpush1.bf16.msra.mxu0 %v1147
        %1166 = vmatprep.subr.bf16.mxu0 0
        %1167 = vmatpush1.bf16.msra.mxu0 %v1148
        %1168 = vmatprep.subr.bf16.mxu0 0
        %1169 = vmatpush1.bf16.msra.mxu0 %v1149
        %1170 = vmatprep.subr.bf16.mxu0 0
        %1171 = vmatpush1.bf16.msra.mxu0 %v1150
        %1172 = vmatprep.subr.bf16.mxu0 0
        %1173 = vmatpush1.bf16.msra.mxu0 %v1151
        %1174 = vmatprep.subr.bf16.mxu0 0
        %1175 = vmatpush1.bf16.msra.mxu0 %v1152
        %1176 = vmatprep.subr.bf16.mxu0 0
        %1177 = vmatpush1.bf16.msra.mxu0 %v1153
        %1178 = vmatprep.subr.bf16.mxu0 0
        %1179 = vmatpush1.bf16.msra.mxu0 0
        %1180 = vmatprep.subr.bf16.mxu0 0
        %1181 = vmatpush1.bf16.msra.mxu0 0
        %1182 = vmatprep.subr.bf16.mxu0 0
        %1183 = vmatpush1.bf16.msra.mxu0 0
        %1184 = vmatprep.subr.bf16.mxu0 0
        %1185 = vmatpush1.bf16.msra.mxu0 0
        %1186 = vmatprep.subr.bf16.mxu0 0
        %1187 = vmatpush1.bf16.msra.mxu0 0
        %1188 = vmatprep.subr.bf16.mxu0 0
        %1189 = vmatpush1.bf16.msra.mxu0 0
        %1190 = vmatprep.subr.bf16.mxu0 0
        %1191 = vmatpush1.bf16.msra.mxu0 0
        %1192 = vmatprep.subr.bf16.mxu0 0
        %1193 = vmatpush1.bf16.msra.mxu0 0
        %1194 = vmatprep.mubr.bf16.mxu0 0
        %1195 = vmatmul.mubr.bf16.gmra.mrb[0].mxu0 %v1075
        %v1196 = vpop.f32.mrb[0].mxu0
        %v1197 = vadd.f32 %v1112, %v1196
        %v1198 = vpop.f32.mrb[0].mxu0
        %v1199 = vpop.f32.mrb[0].mxu0
        %v1200 = vadd.f32 %v1112, %v1199
        %v1201 = vpop.f32.mrb[0].mxu0
        %1202 = vmatprep.mubr.bf16.mxu0 0
        %1203 = vmatmul.mubr.bf16.gmra.mrb[0].mxu0 %v1076
        %v1204 = vpop.f32.mrb[0].mxu0
        %v1205 = vadd.f32 %v1112, %v1204
        %v1206 = vpop.f32.mrb[0].mxu0
        %v1207 = vpop.f32.mrb[0].mxu0
        %v1208 = vadd.f32 %v1112, %v1207
        %v1209 = vpop.f32.mrb[0].mxu0
        %1210 = vmatprep.mubr.bf16.mxu0 0
        %1211 = vmatmul.mubr.bf16.gmra.mrb[0].mxu0 %v1077
        %v1212 = vpop.f32.mrb[0].mxu0
        %v1213 = vadd.f32 %v1112, %v1212
        %v1214 = vpop.f32.mrb[0].mxu0
        %v1215 = vpop.f32.mrb[0].mxu0
        %v1216 = vadd.f32 %v1112, %v1215
        %v1217 = vpop.f32.mrb[0].mxu0
        %1218 = vmatprep.mubr.bf16.mxu0 0
        %1219 = vmatmul.mubr.bf16.gmra.mrb[0].mxu0 %v1078
        %v1220 = vpop.f32.mrb[0].mxu0
        %v1221 = vadd.f32 %v1112, %v1220
        %v1222 = vpop.f32.mrb[0].mxu0
        %v1223 = vpop.f32.mrb[0].mxu0
        %v1224 = vadd.f32 %v1112, %v1223
        %v1225 = vpop.f32.mrb[0].mxu0
        %1226 = vmatprep.mubr.bf16.mxu0 0
        %1227 = vmatmul.mubr.bf16.gmra.mrb[0].mxu0 %v1079
        %v1228 = vpop.f32.mrb[0].mxu0
        %v1229 = vadd.f32 %v1112, %v1228
        %v1230 = vpop.f32.mrb[0].mxu0
        %v1231 = vpop.f32.mrb[0].mxu0
        %v1232 = vadd.f32 %v1112, %v1231
        %v1233 = vpop.f32.mrb[0].mxu0
        %1234 = vmatprep.mubr.bf16.mxu0 0
        %1235 = vmatmul.mubr.bf16.gmra.mrb[0].mxu0 %v1080
        %v1236 = vpop.f32.mrb[0].mxu0
        %v1237 = vadd.f32 %v1112, %v1236
        %v1238 = vpop.f32.mrb[0].mxu0
        %v1239 = vpop.f32.mrb[0].mxu0
        %v1240 = vadd.f32 %v1112, %v1239
        %v1241 = vpop.f32.mrb[0].mxu0
        %1242 = vmatprep.mubr.bf16.mxu0 0
        %1243 = vmatmul.mubr.bf16.gmra.mrb[0].mxu0 %v1081
        %v1244 = vpop.f32.mrb[0].mxu0
        %v1245 = vadd.f32 %v1112, %v1244
        %v1246 = vpop.f32.mrb[0].mxu0
        %v1247 = vpop.f32.mrb[0].mxu0
        %v1248 = vadd.f32 %v1112, %v1247
        %v1249 = vpop.f32.mrb[0].mxu0
        %1250 = vmatprep.mubr.bf16.mxu0 0
        %1251 = vmatmul.mubr.bf16.gmra.mrb[0].mxu0 %v1082
        %v1252 = vpop.f32.mrb[0].mxu0
        %v1253 = vadd.f32 %v1112, %v1252
        %v1254 = vpop.f32.mrb[0].mxu0
        %v1255 = vpop.f32.mrb[0].mxu0
        %v1256 = vadd.f32 %v1112, %v1255
        %v1257 = vpop.f32.mrb[0].mxu0
        %1258 = vmatprep.mubr.bf16.mxu0 0
        %1259 = vmatmul.mubr.bf16.gmra.mrb[0].mxu0 %v1083
        %v1260 = vpop.f32.mrb[0].mxu0
        %v1261 = vadd.f32 %v1112, %v1260
        %v1262 = vpop.f32.mrb[0].mxu0
        %v1263 = vpop.f32.mrb[0].mxu0
        %v1264 = vadd.f32 %v1112, %v1263
        %v1265 = vpop.f32.mrb[0].mxu0
        %1266 = vmatprep.mubr.bf16.mxu0 0
        %1267 = vmatmul.mubr.bf16.gmra.mrb[0].mxu0 %v1084
        %v1268 = vpop.f32.mrb[0].mxu0
        %v1269 = vadd.f32 %v1112, %v1268
        %v1270 = vpop.f32.mrb[0].mxu0
        %v1271 = vpop.f32.mrb[0].mxu0
        %v1272 = vadd.f32 %v1112, %v1271
        %v1273 = vpop.f32.mrb[0].mxu0
        %1274 = vmatprep.mubr.bf16.mxu0 0
        %1275 = vmatmul.mubr.bf16.gmra.mrb[0].mxu0 %v1085
        %v1276 = vpop.f32.mrb[0].mxu0
        %v1277 = vadd.f32 %v1112, %v1276
        %v1278 = vpop.f32.mrb[0].mxu0
        %v1279 = vpop.f32.mrb[0].mxu0
        %v1280 = vadd.f32 %v1112, %v1279
        %v1281 = vpop.f32.mrb[0].mxu0
        %1282 = vmatprep.mubr.bf16.mxu0 0
        %1283 = vmatmul.mubr.bf16.gmra.mrb[0].mxu0 %v1086
        %v1284 = vpop.f32.mrb[0].mxu0
        %v1285 = vadd.f32 %v1112, %v1284
        %v1286 = vpop.f32.mrb[0].mxu0
        %v1287 = vpop.f32.mrb[0].mxu0
        %v1288 = vadd.f32 %v1112, %v1287
        %v1289 = vpop.f32.mrb[0].mxu0
        %1290 = vmatprep.mubr.bf16.mxu0 0
        %1291 = vmatmul.mubr.bf16.gmra.mrb[0].mxu0 %v1087
        %v1292 = vpop.f32.mrb[0].mxu0
        %v1293 = vadd.f32 %v1112, %v1292
        %v1294 = vpop.f32.mrb[0].mxu0
        %v1295 = vpop.f32.mrb[0].mxu0
        %v1296 = vadd.f32 %v1112, %v1295
        %v1297 = vpop.f32.mrb[0].mxu0
        %1298 = vmatprep.mubr.bf16.mxu0 0
        %1299 = vmatmul.mubr.bf16.gmra.mrb[0].mxu0 %v1088
        %v1300 = vpop.f32.mrb[0].mxu0
        %v1301 = vadd.f32 %v1112, %v1300
        %v1302 = vpop.f32.mrb[0].mxu0
        %v1303 = vpop.f32.mrb[0].mxu0
        %v1304 = vadd.f32 %v1112, %v1303
        %v1305 = vpop.f32.mrb[0].mxu0
        %1306 = vmatprep.mubr.bf16.mxu0 0
        %1307 = vmatmul.mubr.bf16.gmra.mrb[0].mxu0 %v1089
        %v1308 = vpop.f32.mrb[0].mxu0
        %v1309 = vadd.f32 %v1112, %v1308
        %v1310 = vpop.f32.mrb[0].mxu0
        %v1311 = vpop.f32.mrb[0].mxu0
        %v1312 = vadd.f32 %v1112, %v1311
        %v1313 = vpop.f32.mrb[0].mxu0
        %1314 = vmatprep.mubr.bf16.mxu0 0
        %1315 = vmatmul.mubr.bf16.gmra.mrb[0].mxu0 %v1090
        %v1316 = vpop.f32.mrb[0].mxu0
        %v1317 = vadd.f32 %v1112, %v1316
        %v1318 = vpop.f32.mrb[0].mxu0
        %v1319 = vpop.f32.mrb[0].mxu0
        %v1320 = vadd.f32 %v1112, %v1319
        %v1321 = vpop.f32.mrb[0].mxu0
        %1322 = vdwg.mxu0
        %v1323 = vadd.f32 %v293, %v1197
        %v1324 = vadd.f32 %v294, %v1200
        %v1325 = vadd.f32 %v295, %v1205
        %v1326 = vadd.f32 %v296, %v1208
        %v1327 = vadd.f32 %v297, %v1213
        %v1328 = vadd.f32 %v298, %v1216
        %v1329 = vadd.f32 %v299, %v1221
        %v1330 = vadd.f32 %v300, %v1224
        %v1331 = vadd.f32 %v301, %v1229
        %v1332 = vadd.f32 %v302, %v1232
        %v1333 = vadd.f32 %v303, %v1237
        %v1334 = vadd.f32 %v304, %v1240
        %v1335 = vadd.f32 %v305, %v1245
        %v1336 = vadd.f32 %v306, %v1248
        %v1337 = vadd.f32 %v307, %v1253
        %v1338 = vadd.f32 %v308, %v1256
        %v1339 = vadd.f32 %v309, %v1261
        %v1340 = vadd.f32 %v310, %v1264
        %v1341 = vadd.f32 %v311, %v1269
        %v1342 = vadd.f32 %v312, %v1272
        %v1343 = vadd.f32 %v313, %v1277
        %v1344 = vadd.f32 %v314, %v1280
        %v1345 = vadd.f32 %v315, %v1285
        %v1346 = vadd.f32 %v316, %v1288
        %v1347 = vadd.f32 %v317, %v1293
        %v1348 = vadd.f32 %v318, %v1296
        %v1349 = vadd.f32 %v319, %v1301
        %v1350 = vadd.f32 %v320, %v1304
        %v1351 = vadd.f32 %v321, %v1309
        %v1352 = vadd.f32 %v322, %v1312
        %v1353 = vadd.f32 %v323, %v1317
        %v1354 = vadd.f32 %v324, %v1320
        %v1355 = vpack.c.bf16 %v1324, %v1323
        %v1356 = vpack.c.bf16 %v1326, %v1325
        %v1357 = vpack.c.bf16 %v1328, %v1327
        %v1358 = vpack.c.bf16 %v1330, %v1329
        %v1359 = vpack.c.bf16 %v1332, %v1331
        %v1360 = vpack.c.bf16 %v1334, %v1333
        %v1361 = vpack.c.bf16 %v1336, %v1335
        %v1362 = vpack.c.bf16 %v1338, %v1337
        %v1363 = vpack.c.bf16 %v1340, %v1339
        %v1364 = vpack.c.bf16 %v1342, %v1341
        %v1365 = vpack.c.bf16 %v1344, %v1343
        %v1366 = vpack.c.bf16 %v1346, %v1345
        %v1367 = vpack.c.bf16 %v1348, %v1347
        %v1368 = vpack.c.bf16 %v1350, %v1349
        %v1369 = vpack.c.bf16 %v1352, %v1351
        %v1370 = vpack.c.bf16 %v1354, %v1353
        %v1387 = vunpack.c.l.b16 %v1355
        %v1388 = vunpack.c.h.b16 %v1355
        %v1389 = vunpack.c.l.b16 %v1356
        %v1390 = vunpack.c.h.b16 %v1356
        %v1391 = vunpack.c.l.b16 %v1357
        %v1392 = vunpack.c.h.b16 %v1357
        %v1393 = vunpack.c.l.b16 %v1358
        %v1394 = vunpack.c.h.b16 %v1358
        %v1395 = vunpack.c.l.b16 %v1359
        %v1396 = vunpack.c.h.b16 %v1359
        %v1397 = vunpack.c.l.b16 %v1360
        %v1398 = vunpack.c.h.b16 %v1360
        %v1399 = vunpack.c.l.b16 %v1361
        %v1400 = vunpack.c.h.b16 %v1361
        %v1401 = vunpack.c.l.b16 %v1362
        %v1402 = vunpack.c.h.b16 %v1362
        %v1403 = vunpack.c.l.b16 %v1363
        %v1404 = vunpack.c.h.b16 %v1363
        %v1405 = vunpack.c.l.b16 %v1364
        %v1406 = vunpack.c.h.b16 %v1364
        %v1407 = vunpack.c.l.b16 %v1365
        %v1408 = vunpack.c.h.b16 %v1365
        %v1409 = vunpack.c.l.b16 %v1366
        %v1410 = vunpack.c.h.b16 %v1366
        %v1411 = vunpack.c.l.b16 %v1367
        %v1412 = vunpack.c.h.b16 %v1367
        %v1413 = vunpack.c.l.b16 %v1368
        %v1414 = vunpack.c.h.b16 %v1368
        %v1415 = vunpack.c.l.b16 %v1369
        %v1416 = vunpack.c.h.b16 %v1369
        %v1417 = vunpack.c.l.b16 %v1370
        %v1418 = vunpack.c.h.b16 %v1370
        %v1419 = vpack.c.b16 %v1387, %v1387
        %v1420 = vpack.c.b16 %v1388, %v1388
        %v1421 = vpack.c.b16 %v1389, %v1389
        %v1422 = vpack.c.b16 %v1390, %v1390
        %v1423 = vpack.c.b16 %v1391, %v1391
        %v1424 = vpack.c.b16 %v1392, %v1392
        %v1425 = vpack.c.b16 %v1393, %v1393
        %v1426 = vpack.c.b16 %v1394, %v1394
        %v1427 = vpack.c.b16 %v1395, %v1395
        %v1428 = vpack.c.b16 %v1396, %v1396
        %v1429 = vpack.c.b16 %v1397, %v1397
        %v1430 = vpack.c.b16 %v1398, %v1398
        %v1431 = vpack.c.b16 %v1399, %v1399
        %v1432 = vpack.c.b16 %v1400, %v1400
        %v1433 = vpack.c.b16 %v1401, %v1401
        %v1434 = vpack.c.b16 %v1402, %v1402
        %v1435 = vpack.c.b16 %v1403, %v1403
        %v1436 = vpack.c.b16 %v1404, %v1404
        %v1437 = vpack.c.b16 %v1405, %v1405
        %v1438 = vpack.c.b16 %v1406, %v1406
        %v1439 = vpack.c.b16 %v1407, %v1407
        %v1440 = vpack.c.b16 %v1408, %v1408
        %v1441 = vpack.c.b16 %v1409, %v1409
        %v1442 = vpack.c.b16 %v1410, %v1410
        %v1443 = vpack.c.b16 %v1411, %v1411
        %v1444 = vpack.c.b16 %v1412, %v1412
        %v1445 = vpack.c.b16 %v1413, %v1413
        %v1446 = vpack.c.b16 %v1414, %v1414
        %v1447 = vpack.c.b16 %v1415, %v1415
        %v1448 = vpack.c.b16 %v1416, %v1416
        %v1449 = vpack.c.b16 %v1417, %v1417
        %v1450 = vpack.c.b16 %v1418, %v1418
        %1483 = vst [vmem:[%s257] sm:$0xf] %v1419
        %1484 = vst [vmem:[%s257 + $0x4] sm:$0xf] %v1420
        %1485 = vst [vmem:[%s257 + $0x8] sm:$0xf] %v1421
        %1486 = vst [vmem:[%s257 + $0xc] sm:$0xf] %v1422
        %1487 = vst [vmem:[%s257 + $0x10] sm:$0xf] %v1423
        %1488 = vst [vmem:[%s257 + $0x14] sm:$0xf] %v1424
        %1489 = vst [vmem:[%s257 + $0x18] sm:$0xf] %v1425
        %1490 = vst [vmem:[%s257 + $0x1c] sm:$0xf] %v1426
        %1491 = vst [vmem:[%s257 + $0x20] sm:$0xf] %v1427
        %1492 = vst [vmem:[%s257 + $0x24] sm:$0xf] %v1428
        %1493 = vst [vmem:[%s257 + $0x28] sm:$0xf] %v1429
        %1494 = vst [vmem:[%s257 + $0x2c] sm:$0xf] %v1430
        %1495 = vst [vmem:[%s257 + $0x30] sm:$0xf] %v1431
        %1496 = vst [vmem:[%s257 + $0x34] sm:$0xf] %v1432
        %1497 = vst [vmem:[%s257 + $0x38] sm:$0xf] %v1433
        %1498 = vst [vmem:[%s257 + $0x3c] sm:$0xf] %v1434
        %1499 = vst [vmem:[%s257 + $0x40] sm:$0xf] %v1435
        %1500 = vst [vmem:[%s257 + $0x44] sm:$0xf] %v1436
        %1501 = vst [vmem:[%s257 + $0x48] sm:$0xf] %v1437
        %1502 = vst [vmem:[%s257 + $0x4c] sm:$0xf] %v1438
        %1503 = vst [vmem:[%s257 + $0x50] sm:$0xf] %v1439
        %1504 = vst [vmem:[%s257 + $0x54] sm:$0xf] %v1440
        %1505 = vst [vmem:[%s257 + $0x58] sm:$0xf] %v1441
        %1506 = vst [vmem:[%s257 + $0x5c] sm:$0xf] %v1442
        %1507 = vst [vmem:[%s257 + $0x60] sm:$0xf] %v1443
        %1508 = vst [vmem:[%s257 + $0x64] sm:$0xf] %v1444
        %1509 = vst [vmem:[%s257 + $0x68] sm:$0xf] %v1445
        %1510 = vst [vmem:[%s257 + $0x6c] sm:$0xf] %v1446
        %1511 = vst [vmem:[%s257 + $0x70] sm:$0xf] %v1447
        %1512 = vst [vmem:[%s257 + $0x74] sm:$0xf] %v1448
        %1513 = vst [vmem:[%s257 + $0x78] sm:$0xf] %v1449
        %1514 = vst [vmem:[%s257 + $0x7c] sm:$0xf] %v1450
        %s1515 = sand.u32 %s141, 1
        %s1516 = scalar_lea.sflag [#allocation4], %s1515
        %s1517 = sand.u32 %s141, 1
        %s1518 = smul.addr %s1517, 128
        %s1519 = scalar_lea.vmem [#allocation7], %s1518
        // Predicated region
        $region49: #{tpu_custom_call.1} parent=39 // pred_check
          %p1520 = pneg %p151
        $region50: #{tpu_custom_call.1} parent=39 // pred_check_branch
          %1522 = sbr.rel (%p1520) target = $region52
        $region51: #{tpu_custom_call.1} parent=39 // pred_region
          %s1523 = smul.u32 32, %s23
          %s1525 = ssub.s32 2048, 2048
          %1526 = vsyncadd %s1516, %s1525
          %s1527 = smul.addr %s1523, 64
          %s1528 = scalar_lea.hbm %s5, %s1527
          %s1529 = sshll.u32 %s1519, 4
          %s1530 = int_to_ptr.vmem [resolvable:$true] %s1529
          %1535 = dma.vmem_to_hbm [thread:$0]  %s1530, 2048, %s1528, %s1516, 64, 64, 4
        $region52: #{tpu_custom_call.1} parent=39 // pred_fallthru
          _
      $region40: #{tpu_custom_call.1} parent=5 // pred_fallthru
        _
      %p1536 = scmp.le.s32.totalorder 2, %s18
      // Predicated region
      $region53: #{tpu_custom_call.1} parent=5 // pred_check
        %p1537 = pneg %p1536
      $region54: #{tpu_custom_call.1} parent=5 // pred_check_branch
        %1539 = sbr.rel (%p1537) target = $region56
      $region55: #{tpu_custom_call.1} parent=5 // pred_region
        %s1540 = ssub.s32 %s18, 2
        // Predicated region
        $region57: #{tpu_custom_call.1} parent=55 // pred_check
          %p1541 = pneg %p157
        $region58: #{tpu_custom_call.1} parent=55 // pred_check_branch
          %1543 = sbr.rel (%p1541) target = $region60
        $region59: #{tpu_custom_call.1} parent=55 // pred_region
          %s1544 = sand.u32 %s142, 1
          %s1545 = scalar_lea.sflag [#allocation4], %s1544
          %s1546 = sand.u32 %s142, 1
          %s1547 = smul.addr %s1546, 128
          %s1548 = scalar_lea.vmem [#allocation7], %s1547
          %1549 = dma.done %s1545, 2048
        $region60: #{tpu_custom_call.1} parent=55 // pred_fallthru
          _
      $region56: #{tpu_custom_call.1} parent=5 // pred_fallthru
        _
    $region6: #{tpu_custom_call.1} parent=1 // loop_footer
      %s22 = sadd.s32 1, %s18
    $region7: #{tpu_custom_call.1} parent=1 // loop_footer_branch
      %17 = sbr.rel target = $region3
    $region8: #{tpu_custom_call.1} parent=1 // loop_exit
      _
    %1550 = vsyncpa [#allocation3], 1
    %s1551 = scalar_lea.sflag [#allocation3], 1
    %1552 = vsyncpa %s1551, 1
    %1553 = vsyncpa [#allocation6], 1
    %1554 = vsyncpa [#allocation4], 1
    %s1555 = scalar_lea.sflag [#allocation4], 1
    %1556 = vsyncpa %s1555, 1

</llo_original>
